<compile_context>
chip_gen: v7x
topology: tpu7x:2x2x1
jax: 0.10.0
libtpu: 0.0.40
codegen_flags: <defaults>
</compile_context>

<pallas_src>
import functools

import numpy as np
import jax
import jax.numpy as jnp
from jax.experimental import pallas as pl
from jax.experimental.pallas import tpu as pltpu

# ----------------- scaled-down configuration -----------------
FEATURE_C = 32     # stands in for the 1024-channel input features
MODULE_DIM = 128   # real module_dim=128 (keeps outputs lane-dense)
H = W = 8          # stands in for 14x14
HW = H * W
PROJ_DIM = 128     # stands in for classifier_proj_dim=512
FC_DIM = 128       # stands in for classifier_fc_layers=(1024,)

PROGRAM_TOKENS = ['<NULL>', '<START>', '<END>', 'scene', 'filter_red',
                  'relate_left', 'union', 'intersect']
VOCAB = {
    'program_token_to_idx': {t: i for i, t in enumerate(PROGRAM_TOKENS)},
    'program_idx_to_token': {i: t for i, t in enumerate(PROGRAM_TOKENS)},
    'answer_idx_to_token': {i: 'ans%d' % i for i in range(10)},
}


def get_num_inputs(fn_str):
    # mirrors iep.programs.get_num_inputs
    if fn_str == 'scene':
        return 0
    if 'equal' in fn_str or fn_str in ('union', 'intersect',
                                       'less_than', 'greater_than'):
        return 2
    return 1


# ----------------- host-built constant matrices -----------------
def _build_shift_matrices(h, w):
    # s[t] is the (HW,HW) 0/1 matrix implementing the zero-padded spatial shift
    # of tap t = kh*3+kw of a 3x3 'same' conv:  shifted = s[t] @ x_flat.
    s = np.zeros((9, h * w, h * w), np.float32)
    for kh in range(3):
        for kw in range(3):
            t = kh * 3 + kw
            dh, dw = kh - 1, kw - 1
            for i in range(h):
                si = i + dh
                if not (0 <= si < h):
                    continue
                for j in range(w):
                    sj = j + dw
                    if not (0 <= sj < w):
                        continue
                    s[t, i * w + j, si * w + sj] = 1.0
    return jnp.asarray(s, jnp.bfloat16)


def _build_pool_matrices(h, w):
    # g[k] gathers tap k of a 2x2/stride-2 max pool: tap_k = g[k] @ p_flat.
    ho, wo = h // 2, w // 2
    g = np.zeros((4, ho * wo, h * w), np.float32)
    for dh in range(2):
        for dw in range(2):
            k = dh * 2 + dw
            for i in range(ho):
                for j in range(wo):
                    g[k, i * wo + j, (2 * i + dh) * w + (2 * j + dw)] = 1.0
    return jnp.asarray(g, jnp.bfloat16)


def build_consts():
    return {'s': _build_shift_matrices(H, W), 'g': _build_pool_matrices(H, W)}


# ----------------- Pallas kernels -----------------
_VMEM_SPEC = pl.BlockSpec(memory_space=pltpu.MemorySpace.VMEM)
_PARALLEL = pltpu.CompilerParams(dimension_semantics=("parallel",))


def _const_spec(shape):
    shape = tuple(int(d) for d in shape)
    return pl.BlockSpec(shape, lambda i: (0,) * len(shape))


def _conv3x3_acc(s_ref, x, w_ref, b_ref):
    """3x3 'same' conv of one image, accumulated in f32 on the MXU.

    x:     (HW, Cin) bf16 value
    s_ref: (9, HW, HW) bf16 shift/zero-pad selection matrices
    w_ref: (9, Cin, Cout) bf16 (tap-major conv weight)
    b_ref: (1, Cout) f32 bias
    returns (HW, Cout) f32
    """
    hw = x.shape[0]
    cout = w_ref.shape[-1]
    acc = jnp.zeros((hw, cout), jnp.float32) + b_ref[...]
    for t in range(9):
        if t == 4:          # center tap: shift matrix is the identity
            shifted = x
        else:               # exact 0/1 selection -> exact shifted activations
            shifted = jnp.dot(s_ref[t], x,
                              preferred_element_type=jnp.float32).astype(x.dtype)
        acc = acc + jnp.dot(shifted, w_ref[t],
                            preferred_element_type=jnp.float32)
    return acc


def _double_conv_kernel(x_ref, s_ref, w1_ref, b1_ref, w2_ref, b2_ref, o_ref,
                        *, residual):
    # Fused stem pair (residual=False) or ResidualBlock (residual=True):
    #   h = relu(conv1(x)); out = relu(conv2(h) [+ x])
    x = x_ref[0]                                        # (HW, Cin) bf16
    h = jnp.maximum(_conv3x3_acc(s_ref, x, w1_ref, b1_ref), 0.0).astype(x.dtype)
    out = _conv3x3_acc(s_ref, h, w2_ref, b2_ref)
    if residual:
        out = out + x.astype(jnp.float32)
    o_ref[0] = jnp.maximum(out, 0.0).astype(o_ref.dtype)


def _concat_block_kernel(x_ref, y_ref, s_ref, wpx_ref, wpy_ref, bp_ref,
                         w1_ref, b1_ref, w2_ref, b2_ref, o_ref):
    # Fused ConcatBlock: relu(conv1x1(cat[x,y])) -> ResidualBlock, one call.
    # The 1x1-proj weight is split on the host so no in-kernel concat is needed.
    x = x_ref[0]
    y = y_ref[0]
    z = (jnp.dot(x, wpx_ref[...], preferred_element_type=jnp.float32)
         + jnp.dot(y, wpy_ref[...], preferred_element_type=jnp.float32)
         + bp_ref[...])
    z = jnp.maximum(z, 0.0).astype(x.dtype)             # proj output (HW, D)
    h = jnp.maximum(_conv3x3_acc(s_ref, z, w1_ref, b1_ref), 0.0).astype(x.dtype)
    out = _conv3x3_acc(s_ref, h, w2_ref, b2_ref) + z.astype(jnp.float32)
    o_ref[0] = jnp.maximum(out, 0.0).astype(o_ref.dtype)


def _proj_pool_kernel(x_ref, g_ref, wp_ref, bp_ref, o_ref):
    # classifier head part 1: 1x1 proj + relu + 2x2/stride-2 max pool (fused).
    x = x_ref[0]                                        # (HW, D) bf16
    p = jnp.dot(x, wp_ref[...], preferred_element_type=jnp.float32) + bp_ref[...]
    p = jnp.maximum(p, 0.0).astype(x.dtype)             # (HW, Cp) bf16
    t0 = jnp.dot(g_ref[0], p, preferred_element_type=jnp.float32)
    t1 = jnp.dot(g_ref[1], p, preferred_element_type=jnp.float32)
    t2 = jnp.dot(g_ref[2], p, preferred_element_type=jnp.float32)
    t3 = jnp.dot(g_ref[3], p, preferred_element_type=jnp.float32)
    pooled = jnp.maximum(jnp.maximum(t0, t1), jnp.maximum(t2, t3))
    o_ref[0] = pooled.astype(o_ref.dtype)               # (HoWo, Cp)


def _mlp_kernel(x_ref, w1_ref, b1_ref, w2_ref, b2_ref, o_ref):
    # classifier head part 2: Linear + relu + Linear (fused).
    h = (jnp.dot(x_ref[...], w1_ref[...], preferred_element_type=jnp.float32)
         + b1_ref[...])
    h = jnp.maximum(h, 0.0).astype(x_ref.dtype)
    o_ref[...] = (jnp.dot(h, w2_ref[...], preferred_element_type=jnp.float32)
                  + b2_ref[...])


# ----------------- pallas_call wrappers -----------------
def fused_double_conv(x, s_mats, p1, p2, *, residual):
    # x: (N, HW, Cin) bf16 -> (N, HW, Cout) bf16; one image per grid step.
    n, hw, cin = x.shape
    cout = p2['w'].shape[-1]
    kern = functools.partial(_double_conv_kernel, residual=residual)
    return pl.pallas_call(
        kern,
        out_shape=jax.ShapeDtypeStruct((n, hw, cout), jnp.bfloat16),
        grid=(n,),
        in_specs=[pl.BlockSpec((1, hw, cin), lambda i: (i, 0, 0)),
                  _const_spec(s_mats.shape),
                  _const_spec(p1['w'].shape), _const_spec(p1['b'].shape),
                  _const_spec(p2['w'].shape), _const_spec(p2['b'].shape)],
        out_specs=pl.BlockSpec((1, hw, cout), lambda i: (i, 0, 0)),
        compiler_params=_PARALLEL,
    )(x, s_mats, p1['w'], p1['b'], p2['w'], p2['b'])


def residual_block(x, p, s_mats):
    return fused_double_conv(x, s_mats, p['conv1'], p['conv2'], residual=True)


def stem_forward(x, p, s_mats):
    return fused_double_conv(x, s_mats, p['conv1'], p['conv2'], residual=False)


def concat_block(x, y, p, s_mats):
    n, hw, d = x.shape
    res = p['res']
    return pl.pallas_call(
        _concat_block_kernel,
        out_shape=jax.ShapeDtypeStruct((n, hw, d), jnp.bfloat16),
        grid=(n,),
        in_specs=[pl.BlockSpec((1, hw, d), lambda i: (i, 0, 0)),
                  pl.BlockSpec((1, hw, d), lambda i: (i, 0, 0)),
                  _const_spec(s_mats.shape),
                  _const_spec(p['wpx'].shape), _const_spec(p['wpy'].shape),
                  _const_spec(p['bp'].shape),
                  _const_spec(res['conv1']['w'].shape),
                  _const_spec(res['conv1']['b'].shape),
                  _const_spec(res['conv2']['w'].shape),
                  _const_spec(res['conv2']['b'].shape)],
        out_specs=pl.BlockSpec((1, hw, d), lambda i: (i, 0, 0)),
        compiler_params=_PARALLEL,
    )(x, y, s_mats, p['wpx'], p['wpy'], p['bp'],
      res['conv1']['w'], res['conv1']['b'],
      res['conv2']['w'], res['conv2']['b'])


def classifier_forward(x, p, g_mats):
    # build_classifier: conv1x1 proj + relu -> maxpool2 -> flatten ->
    #                   Linear + relu -> Linear   (batchnorm/dropout off)
    n, hw, d = x.shape
    cp = p['proj']['w'].shape[-1]
    howo = g_mats.shape[1]
    pooled = pl.pallas_call(
        _proj_pool_kernel,
        out_shape=jax.ShapeDtypeStruct((n, howo, cp), jnp.bfloat16),
        grid=(n,),
        in_specs=[pl.BlockSpec((1, hw, d), lambda i: (i, 0, 0)),
                  _const_spec(g_mats.shape),
                  _const_spec(p['proj']['w'].shape),
                  _const_spec(p['proj']['b'].shape)],
        out_specs=pl.BlockSpec((1, howo, cp), lambda i: (i, 0, 0)),
        compiler_params=_PARALLEL,
    )(x, g_mats, p['proj']['w'], p['proj']['b'])
    # flatten (h, w, c) order; fc1 weight rows were permuted at init to match
    # PyTorch's (c, h, w) Flatten order, so semantics are preserved.
    flat = pooled.reshape(n, -1)
    num_answers = p['fc_final']['w'].shape[-1]
    return pl.pallas_call(
        _mlp_kernel,
        out_shape=jax.ShapeDtypeStruct((n, num_answers), jnp.float32),
        in_specs=[_VMEM_SPEC] * 5,
        out_specs=_VMEM_SPEC,
    )(flat, p['fc1']['w'], p['fc1']['b'], p['fc_final']['w'], p['fc_final']['b'])


# ----------------- deterministic parameter init (bf16 weights, f32 bias) -----
def _conv3x3_params(key, cin, cout):
    kw_, kb = jax.random.split(key)
    w = jax.random.normal(kw_, (3, 3, cin, cout), jnp.float32) / np.sqrt(9 * cin)
    b = jax.random.normal(kb, (cout,), jnp.float32) * 0.01
    return {'w': jnp.asarray(w.reshape(9, cin, cout), jnp.bfloat16),
            'b': jnp.asarray(b.reshape(1, cout), jnp.float32)}


def _linear_params(key, din, dout):
    kw_, kb = jax.random.split(key)
    w = jax.random.normal(kw_, (din, dout), jnp.float32) / np.sqrt(din)
    b = jax.random.normal(kb, (dout,), jnp.float32) * 0.01
    return {'w': jnp.asarray(w, jnp.bfloat16),
            'b': jnp.asarray(b.reshape(1, dout), jnp.float32)}


def _fc1_params(key, cp, ho, wo, dout):
    # weight generated in PyTorch (c,h,w)-flatten row order, then permuted to the
    # (h,w,c) order the kernel flattens pooled NHWC activations in.
    kw_, kb = jax.random.split(key)
    din = cp * ho * wo
    w_chw = jax.random.normal(kw_, (din, dout), jnp.float32) / np.sqrt(din)
    w_hwc = w_chw.reshape(cp, ho, wo, dout).transpose(1, 2, 0, 3).reshape(din, dout)
    b = jax.random.normal(kb, (dout,), jnp.float32) * 0.01
    return {'w': jnp.asarray(w_hwc, jnp.bfloat16),
            'b': jnp.asarray(b.reshape(1, dout), jnp.float32)}


def _residual_block_params(key, dim):
    k1, k2 = jax.random.split(key)
    return {'conv1': _conv3x3_params(k1, dim, dim),
            'conv2': _conv3x3_params(k2, dim, dim)}


def _concat_block_params(key, dim):
    k1, k2 = jax.random.split(key)
    proj = _linear_params(k1, 2 * dim, dim)
    return {'wpx': proj['w'][:dim], 'wpy': proj['w'][dim:], 'bp': proj['b'],
            'res': _residual_block_params(k2, dim)}


def init_params(key):
    keys = jax.random.split(key, 6)
    stem = {'conv1': _conv3x3_params(keys[0], FEATURE_C, MODULE_DIM),
            'conv2': _conv3x3_params(keys[1], MODULE_DIM, MODULE_DIM)}
    modules = {}
    mod_keys = jax.random.split(keys[2], len(PROGRAM_TOKENS))
    for tok, k in zip(PROGRAM_TOKENS, mod_keys):
        n_in = get_num_inputs(tok)
        if tok == 'scene' or n_in == 1:
            modules[tok] = _residual_block_params(k, MODULE_DIM)
        elif n_in == 2:
            modules[tok] = _concat_block_params(k, MODULE_DIM)
    num_answers = len(VOCAB['answer_idx_to_token'])
    classifier = {
        'proj': _linear_params(keys[3], MODULE_DIM, PROJ_DIM),
        'fc1': _fc1_params(keys[4], PROJ_DIM, H // 2, W // 2, FC_DIM),
        'fc_final': _linear_params(keys[5], FC_DIM, num_answers),
    }
    return {'stem': stem, 'modules': modules, 'classifier': classifier}


# ----------------- program interpreter (_forward_modules_ints) -----------------
# TODO(synk): the per-example recursive program interpretation is inherently
# data-dependent host control flow (as in the PyTorch original); it stays in
# Python over concrete program ints.  The leaf 'scene' module is batched over
# the full batch; batching identical non-leaf sub-trees across examples is left
# as future work.
def _forward_modules_ints_helper(scene_i, program_row, j, params, s_mats):
    L = program_row.shape[0]
    if j < L:
        fn_str = VOCAB['program_idx_to_token'][int(program_row[j])]
    else:
        fn_str = 'scene'
    if fn_str == '<NULL>':
        fn_str = 'scene'
    elif fn_str == '<START>':
        return _forward_modules_ints_helper(scene_i, program_row, j + 1,
                                            params, s_mats)
    j += 1
    if fn_str == 'scene':
        return scene_i, j
    num_inputs = get_num_inputs(fn_str)
    module_inputs = []
    while len(module_inputs) < num_inputs:
        cur, j = _forward_modules_ints_helper(scene_i, program_row, j,
                                              params, s_mats)
        module_inputs.append(cur)
    mod_p = params['modules'][fn_str]
    if num_inputs == 2:
        out = concat_block(module_inputs[0], module_inputs[1], mod_p, s_mats)
    else:
        out = residual_block(module_inputs[0], mod_p, s_mats)
    return out, j


def module_net_forward(x_nchw, program_np, params, consts):
    # x_nchw: (N, C, H, W) like PyTorch; program_np: (N, L) int prefix programs
    n = x_nchw.shape[0]
    assert n == program_np.shape[0]
    cin = x_nchw.shape[1]
    # NCHW -> NHWC -> (N, H*W, C) bf16: channels on lanes, pixels on rows.
    x = jnp.transpose(x_nchw, (0, 2, 3, 1)).reshape(n, HW, cin).astype(jnp.bfloat16)
    if cin == FEATURE_C:
        feats = stem_forward(x, params['stem'], consts['s'])
    elif cin == MODULE_DIM:
        feats = x
    else:
        raise ValueError('Invalid features dimensions')
    # 'scene' is the leaf of every program: run its ResidualBlock once, batched.
    scene_out = residual_block(feats, params['modules']['scene'], consts['s'])
    outs = []
    for i in range(n):
        out_i, _ = _forward_modules_ints_helper(scene_out[i:i + 1],
                                                program_np[i], 0,
                                                params, consts['s'])
        outs.append(out_i)
    final = jnp.concatenate(outs, axis=0)          # (N, HW, D) bf16
    return classifier_forward(final, params['classifier'], consts['g'])


# ----------------- demo -----------------
if __name__ == "__main__":
    key = jax.random.PRNGKey(0)
    k_params, k_x = jax.random.split(key)
    params = init_params(k_params)
    consts = build_consts()

    N = 2
    x = jax.random.normal(k_x, (N, FEATURE_C, H, W), jnp.float32)  # NCHW input

    t = VOCAB['program_token_to_idx']
    program = np.array([
        # <START> union( filter_red(scene), relate_left(scene) ) <END> <NULL>
        [t['<START>'], t['union'], t['filter_red'], t['scene'],
         t['relate_left'], t['scene'], t['<END>'], t['<NULL>']],
        # <START> filter_red(scene) <END> <NULL> ...
        [t['<START>'], t['filter_red'], t['scene'], t['<END>'],
         t['<NULL>'], t['<NULL>'], t['<NULL>'], t['<NULL>']],
    ], dtype=np.int32)

    out = module_net_forward(x, program, params, consts)
    out = jax.block_until_ready(out)

    num_answers = len(VOCAB['answer_idx_to_token'])
    assert out.shape == (N, num_answers), out.shape
    assert bool(jnp.all(jnp.isfinite(out)))
    print("KERNEL_OK")
</pallas_src>

<mosaic_0001>
module attributes {stable_mosaic.version = 11 : i64} {
  func.func @_double_conv_kernel(%arg0: i32, %arg1: memref<1x64x32xbf16, #tpu.memory_space<vmem>>, %arg2: memref<9x64x64xbf16, #tpu.memory_space<vmem>>, %arg3: memref<9x32x128xbf16, #tpu.memory_space<vmem>>, %arg4: memref<1x128xf32, #tpu.memory_space<vmem>>, %arg5: memref<9x128x128xbf16, #tpu.memory_space<vmem>>, %arg6: memref<1x128xf32, #tpu.memory_space<vmem>>, %arg7: memref<1x64x128xbf16, #tpu.memory_space<vmem>>) attributes {dimension_semantics = [#tpu.dimension_semantics<parallel>], iteration_bounds = array<i64: 2>, scalar_prefetch = 0 : i64, scratch_operands = 0 : i64, tpu.core_type = #tpu.core_type<tc>, window_params = [{transform_indices = @transform_0, window_bounds = array<i64: 1, 64, 32>}, {pipeline_mode = #tpu.pipeline_mode<synchronous>, transform_indices = @transform_1, window_bounds = array<i64: 9, 64, 64>}, {pipeline_mode = #tpu.pipeline_mode<synchronous>, transform_indices = @transform_2, window_bounds = array<i64: 9, 32, 128>}, {pipeline_mode = #tpu.pipeline_mode<synchronous>, transform_indices = @transform_3, window_bounds = array<i64: 1, 128>}, {pipeline_mode = #tpu.pipeline_mode<synchronous>, transform_indices = @transform_4, window_bounds = array<i64: 9, 128, 128>}, {pipeline_mode = #tpu.pipeline_mode<synchronous>, transform_indices = @transform_5, window_bounds = array<i64: 1, 128>}, {transform_indices = @transform_6, window_bounds = array<i64: 1, 64, 128>}]} {
    %c0 = arith.constant 0 : index
    %c0_0 = arith.constant 0 : index
    %c0_1 = arith.constant 0 : index
    %0 = vector.load %arg1[%c0, %c0_0, %c0_1] : memref<1x64x32xbf16, #tpu.memory_space<vmem>>, vector<1x64x32xbf16>
    %1 = vector.shape_cast %0 : vector<1x64x32xbf16> to vector<64x32xbf16>
    %cst = arith.constant 0.000000e+00 : f32
    %2 = vector.broadcast %cst : f32 to vector<64x128xf32>
    %c0_2 = arith.constant 0 : index
    %c0_3 = arith.constant 0 : index
    %3 = vector.load %arg4[%c0_2, %c0_3] : memref<1x128xf32, #tpu.memory_space<vmem>>, vector<1x128xf32>
    %4 = vector.broadcast %3 : vector<1x128xf32> to vector<64x128xf32>
    %5 = arith.addf %2, %4 : vector<64x128xf32>
    %c0_4 = arith.constant 0 : index
    %c0_5 = arith.constant 0 : index
    %c0_6 = arith.constant 0 : index
    %6 = vector.load %arg2[%c0_4, %c0_5, %c0_6] : memref<9x64x64xbf16, #tpu.memory_space<vmem>>, vector<1x64x64xbf16>
    %7 = vector.shape_cast %6 : vector<1x64x64xbf16> to vector<64x64xbf16>
    %cst_7 = arith.constant dense<0.000000e+00> : vector<64x32xf32>
    %8 = tpu.matmul %7, %1, %cst_7 {dimension_numbers = #tpu.dot_dimension_numbers<[1], [0], [0], [1], [0, 0, 1, 1], [], []>} : vector<64x64xbf16>, vector<64x32xbf16>, vector<64x32xf32> -> vector<64x32xf32>
    %9 = arith.truncf %8 : vector<64x32xf32> to vector<64x32xbf16>
    %c0_8 = arith.constant 0 : index
    %c0_9 = arith.constant 0 : index
    %c0_10 = arith.constant 0 : index
    %10 = vector.load %arg3[%c0_8, %c0_9, %c0_10] : memref<9x32x128xbf16, #tpu.memory_space<vmem>>, vector<1x32x128xbf16>
    %11 = vector.shape_cast %10 : vector<1x32x128xbf16> to vector<32x128xbf16>
    %cst_11 = arith.constant dense<0.000000e+00> : vector<64x128xf32>
    %12 = tpu.matmul %9, %11, %cst_11 {dimension_numbers = #tpu.dot_dimension_numbers<[1], [0], [0], [1], [0, 0, 1, 1], [], []>} : vector<64x32xbf16>, vector<32x128xbf16>, vector<64x128xf32> -> vector<64x128xf32>
    %13 = arith.addf %5, %12 : vector<64x128xf32>
    %c1 = arith.constant 1 : index
    %c0_12 = arith.constant 0 : index
    %c0_13 = arith.constant 0 : index
    %14 = vector.load %arg2[%c1, %c0_12, %c0_13] : memref<9x64x64xbf16, #tpu.memory_space<vmem>>, vector<1x64x64xbf16>
    %15 = vector.shape_cast %14 : vector<1x64x64xbf16> to vector<64x64xbf16>
    %cst_14 = arith.constant dense<0.000000e+00> : vector<64x32xf32>
    %16 = tpu.matmul %15, %1, %cst_14 {dimension_numbers = #tpu.dot_dimension_numbers<[1], [0], [0], [1], [0, 0, 1, 1], [], []>} : vector<64x64xbf16>, vector<64x32xbf16>, vector<64x32xf32> -> vector<64x32xf32>
    %17 = arith.truncf %16 : vector<64x32xf32> to vector<64x32xbf16>
    %c1_15 = arith.constant 1 : index
    %c0_16 = arith.constant 0 : index
    %c0_17 = arith.constant 0 : index
    %18 = vector.load %arg3[%c1_15, %c0_16, %c0_17] : memref<9x32x128xbf16, #tpu.memory_space<vmem>>, vector<1x32x128xbf16>
    %19 = vector.shape_cast %18 : vector<1x32x128xbf16> to vector<32x128xbf16>
    %cst_18 = arith.constant dense<0.000000e+00> : vector<64x128xf32>
    %20 = tpu.matmul %17, %19, %cst_18 {dimension_numbers = #tpu.dot_dimension_numbers<[1], [0], [0], [1], [0, 0, 1, 1], [], []>} : vector<64x32xbf16>, vector<32x128xbf16>, vector<64x128xf32> -> vector<64x128xf32>
    %21 = arith.addf %13, %20 : vector<64x128xf32>
    %c2 = arith.constant 2 : index
    %c0_19 = arith.constant 0 : index
    %c0_20 = arith.constant 0 : index
    %22 = vector.load %arg2[%c2, %c0_19, %c0_20] : memref<9x64x64xbf16, #tpu.memory_space<vmem>>, vector<1x64x64xbf16>
    %23 = vector.shape_cast %22 : vector<1x64x64xbf16> to vector<64x64xbf16>
    %cst_21 = arith.constant dense<0.000000e+00> : vector<64x32xf32>
    %24 = tpu.matmul %23, %1, %cst_21 {dimension_numbers = #tpu.dot_dimension_numbers<[1], [0], [0], [1], [0, 0, 1, 1], [], []>} : vector<64x64xbf16>, vector<64x32xbf16>, vector<64x32xf32> -> vector<64x32xf32>
    %25 = arith.truncf %24 : vector<64x32xf32> to vector<64x32xbf16>
    %c2_22 = arith.constant 2 : index
    %c0_23 = arith.constant 0 : index
    %c0_24 = arith.constant 0 : index
    %26 = vector.load %arg3[%c2_22, %c0_23, %c0_24] : memref<9x32x128xbf16, #tpu.memory_space<vmem>>, vector<1x32x128xbf16>
    %27 = vector.shape_cast %26 : vector<1x32x128xbf16> to vector<32x128xbf16>
    %cst_25 = arith.constant dense<0.000000e+00> : vector<64x128xf32>
    %28 = tpu.matmul %25, %27, %cst_25 {dimension_numbers = #tpu.dot_dimension_numbers<[1], [0], [0], [1], [0, 0, 1, 1], [], []>} : vector<64x32xbf16>, vector<32x128xbf16>, vector<64x128xf32> -> vector<64x128xf32>
    %29 = arith.addf %21, %28 : vector<64x128xf32>
    %c3 = arith.constant 3 : index
    %c0_26 = arith.constant 0 : index
    %c0_27 = arith.constant 0 : index
    %30 = vector.load %arg2[%c3, %c0_26, %c0_27] : memref<9x64x64xbf16, #tpu.memory_space<vmem>>, vector<1x64x64xbf16>
    %31 = vector.shape_cast %30 : vector<1x64x64xbf16> to vector<64x64xbf16>
    %cst_28 = arith.constant dense<0.000000e+00> : vector<64x32xf32>
    %32 = tpu.matmul %31, %1, %cst_28 {dimension_numbers = #tpu.dot_dimension_numbers<[1], [0], [0], [1], [0, 0, 1, 1], [], []>} : vector<64x64xbf16>, vector<64x32xbf16>, vector<64x32xf32> -> vector<64x32xf32>
    %33 = arith.truncf %32 : vector<64x32xf32> to vector<64x32xbf16>
    %c3_29 = arith.constant 3 : index
    %c0_30 = arith.constant 0 : index
    %c0_31 = arith.constant 0 : index
    %34 = vector.load %arg3[%c3_29, %c0_30, %c0_31] : memref<9x32x128xbf16, #tpu.memory_space<vmem>>, vector<1x32x128xbf16>
    %35 = vector.shape_cast %34 : vector<1x32x128xbf16> to vector<32x128xbf16>
    %cst_32 = arith.constant dense<0.000000e+00> : vector<64x128xf32>
    %36 = tpu.matmul %33, %35, %cst_32 {dimension_numbers = #tpu.dot_dimension_numbers<[1], [0], [0], [1], [0, 0, 1, 1], [], []>} : vector<64x32xbf16>, vector<32x128xbf16>, vector<64x128xf32> -> vector<64x128xf32>
    %37 = arith.addf %29, %36 : vector<64x128xf32>
    %c4 = arith.constant 4 : index
    %c0_33 = arith.constant 0 : index
    %c0_34 = arith.constant 0 : index
    %38 = vector.load %arg3[%c4, %c0_33, %c0_34] : memref<9x32x128xbf16, #tpu.memory_space<vmem>>, vector<1x32x128xbf16>
    %39 = vector.shape_cast %38 : vector<1x32x128xbf16> to vector<32x128xbf16>
    %cst_35 = arith.constant dense<0.000000e+00> : vector<64x128xf32>
    %40 = tpu.matmul %1, %39, %cst_35 {dimension_numbers = #tpu.dot_dimension_numbers<[1], [0], [0], [1], [0, 0, 1, 1], [], []>} : vector<64x32xbf16>, vector<32x128xbf16>, vector<64x128xf32> -> vector<64x128xf32>
    %41 = arith.addf %37, %40 : vector<64x128xf32>
    %c5 = arith.constant 5 : index
    %c0_36 = arith.constant 0 : index
    %c0_37 = arith.constant 0 : index
    %42 = vector.load %arg2[%c5, %c0_36, %c0_37] : memref<9x64x64xbf16, #tpu.memory_space<vmem>>, vector<1x64x64xbf16>
    %43 = vector.shape_cast %42 : vector<1x64x64xbf16> to vector<64x64xbf16>
    %cst_38 = arith.constant dense<0.000000e+00> : vector<64x32xf32>
    %44 = tpu.matmul %43, %1, %cst_38 {dimension_numbers = #tpu.dot_dimension_numbers<[1], [0], [0], [1], [0, 0, 1, 1], [], []>} : vector<64x64xbf16>, vector<64x32xbf16>, vector<64x32xf32> -> vector<64x32xf32>
    %45 = arith.truncf %44 : vector<64x32xf32> to vector<64x32xbf16>
    %c5_39 = arith.constant 5 : index
    %c0_40 = arith.constant 0 : index
    %c0_41 = arith.constant 0 : index
    %46 = vector.load %arg3[%c5_39, %c0_40, %c0_41] : memref<9x32x128xbf16, #tpu.memory_space<vmem>>, vector<1x32x128xbf16>
    %47 = vector.shape_cast %46 : vector<1x32x128xbf16> to vector<32x128xbf16>
    %cst_42 = arith.constant dense<0.000000e+00> : vector<64x128xf32>
    %48 = tpu.matmul %45, %47, %cst_42 {dimension_numbers = #tpu.dot_dimension_numbers<[1], [0], [0], [1], [0, 0, 1, 1], [], []>} : vector<64x32xbf16>, vector<32x128xbf16>, vector<64x128xf32> -> vector<64x128xf32>
    %49 = arith.addf %41, %48 : vector<64x128xf32>
    %c6 = arith.constant 6 : index
    %c0_43 = arith.constant 0 : index
    %c0_44 = arith.constant 0 : index
    %50 = vector.load %arg2[%c6, %c0_43, %c0_44] : memref<9x64x64xbf16, #tpu.memory_space<vmem>>, vector<1x64x64xbf16>
    %51 = vector.shape_cast %50 : vector<1x64x64xbf16> to vector<64x64xbf16>
    %cst_45 = arith.constant dense<0.000000e+00> : vector<64x32xf32>
    %52 = tpu.matmul %51, %1, %cst_45 {dimension_numbers = #tpu.dot_dimension_numbers<[1], [0], [0], [1], [0, 0, 1, 1], [], []>} : vector<64x64xbf16>, vector<64x32xbf16>, vector<64x32xf32> -> vector<64x32xf32>
    %53 = arith.truncf %52 : vector<64x32xf32> to vector<64x32xbf16>
    %c6_46 = arith.constant 6 : index
    %c0_47 = arith.constant 0 : index
    %c0_48 = arith.constant 0 : index
    %54 = vector.load %arg3[%c6_46, %c0_47, %c0_48] : memref<9x32x128xbf16, #tpu.memory_space<vmem>>, vector<1x32x128xbf16>
    %55 = vector.shape_cast %54 : vector<1x32x128xbf16> to vector<32x128xbf16>
    %cst_49 = arith.constant dense<0.000000e+00> : vector<64x128xf32>
    %56 = tpu.matmul %53, %55, %cst_49 {dimension_numbers = #tpu.dot_dimension_numbers<[1], [0], [0], [1], [0, 0, 1, 1], [], []>} : vector<64x32xbf16>, vector<32x128xbf16>, vector<64x128xf32> -> vector<64x128xf32>
    %57 = arith.addf %49, %56 : vector<64x128xf32>
    %c7 = arith.constant 7 : index
    %c0_50 = arith.constant 0 : index
    %c0_51 = arith.constant 0 : index
    %58 = vector.load %arg2[%c7, %c0_50, %c0_51] : memref<9x64x64xbf16, #tpu.memory_space<vmem>>, vector<1x64x64xbf16>
    %59 = vector.shape_cast %58 : vector<1x64x64xbf16> to vector<64x64xbf16>
    %cst_52 = arith.constant dense<0.000000e+00> : vector<64x32xf32>
    %60 = tpu.matmul %59, %1, %cst_52 {dimension_numbers = #tpu.dot_dimension_numbers<[1], [0], [0], [1], [0, 0, 1, 1], [], []>} : vector<64x64xbf16>, vector<64x32xbf16>, vector<64x32xf32> -> vector<64x32xf32>
    %61 = arith.truncf %60 : vector<64x32xf32> to vector<64x32xbf16>
    %c7_53 = arith.constant 7 : index
    %c0_54 = arith.constant 0 : index
    %c0_55 = arith.constant 0 : index
    %62 = vector.load %arg3[%c7_53, %c0_54, %c0_55] : memref<9x32x128xbf16, #tpu.memory_space<vmem>>, vector<1x32x128xbf16>
    %63 = vector.shape_cast %62 : vector<1x32x128xbf16> to vector<32x128xbf16>
    %cst_56 = arith.constant dense<0.000000e+00> : vector<64x128xf32>
    %64 = tpu.matmul %61, %63, %cst_56 {dimension_numbers = #tpu.dot_dimension_numbers<[1], [0], [0], [1], [0, 0, 1, 1], [], []>} : vector<64x32xbf16>, vector<32x128xbf16>, vector<64x128xf32> -> vector<64x128xf32>
    %65 = arith.addf %57, %64 : vector<64x128xf32>
    %c8 = arith.constant 8 : index
    %c0_57 = arith.constant 0 : index
    %c0_58 = arith.constant 0 : index
    %66 = vector.load %arg2[%c8, %c0_57, %c0_58] : memref<9x64x64xbf16, #tpu.memory_space<vmem>>, vector<1x64x64xbf16>
    %67 = vector.shape_cast %66 : vector<1x64x64xbf16> to vector<64x64xbf16>
    %cst_59 = arith.constant dense<0.000000e+00> : vector<64x32xf32>
    %68 = tpu.matmul %67, %1, %cst_59 {dimension_numbers = #tpu.dot_dimension_numbers<[1], [0], [0], [1], [0, 0, 1, 1], [], []>} : vector<64x64xbf16>, vector<64x32xbf16>, vector<64x32xf32> -> vector<64x32xf32>
    %69 = arith.truncf %68 : vector<64x32xf32> to vector<64x32xbf16>
    %c8_60 = arith.constant 8 : index
    %c0_61 = arith.constant 0 : index
    %c0_62 = arith.constant 0 : index
    %70 = vector.load %arg3[%c8_60, %c0_61, %c0_62] : memref<9x32x128xbf16, #tpu.memory_space<vmem>>, vector<1x32x128xbf16>
    %71 = vector.shape_cast %70 : vector<1x32x128xbf16> to vector<32x128xbf16>
    %cst_63 = arith.constant dense<0.000000e+00> : vector<64x128xf32>
    %72 = tpu.matmul %69, %71, %cst_63 {dimension_numbers = #tpu.dot_dimension_numbers<[1], [0], [0], [1], [0, 0, 1, 1], [], []>} : vector<64x32xbf16>, vector<32x128xbf16>, vector<64x128xf32> -> vector<64x128xf32>
    %73 = arith.addf %65, %72 : vector<64x128xf32>
    %cst_64 = arith.constant 0.000000e+00 : f32
    %74 = vector.broadcast %cst_64 : f32 to vector<64x128xf32>
    %75 = arith.maximumf %73, %74 : vector<64x128xf32>
    %76 = arith.truncf %75 : vector<64x128xf32> to vector<64x128xbf16>
    %cst_65 = arith.constant 0.000000e+00 : f32
    %77 = vector.broadcast %cst_65 : f32 to vector<64x128xf32>
    %c0_66 = arith.constant 0 : index
    %c0_67 = arith.constant 0 : index
    %78 = vector.load %arg6[%c0_66, %c0_67] : memref<1x128xf32, #tpu.memory_space<vmem>>, vector<1x128xf32>
    %79 = vector.broadcast %78 : vector<1x128xf32> to vector<64x128xf32>
    %80 = arith.addf %77, %79 : vector<64x128xf32>
    %c0_68 = arith.constant 0 : index
    %c0_69 = arith.constant 0 : index
    %c0_70 = arith.constant 0 : index
    %81 = vector.load %arg2[%c0_68, %c0_69, %c0_70] : memref<9x64x64xbf16, #tpu.memory_space<vmem>>, vector<1x64x64xbf16>
    %82 = vector.shape_cast %81 : vector<1x64x64xbf16> to vector<64x64xbf16>
    %cst_71 = arith.constant dense<0.000000e+00> : vector<64x128xf32>
    %83 = tpu.matmul %82, %76, %cst_71 {dimension_numbers = #tpu.dot_dimension_numbers<[1], [0], [0], [1], [0, 0, 1, 1], [], []>} : vector<64x64xbf16>, vector<64x128xbf16>, vector<64x128xf32> -> vector<64x128xf32>
    %84 = arith.truncf %83 : vector<64x128xf32> to vector<64x128xbf16>
    %c0_72 = arith.constant 0 : index
    %c0_73 = arith.constant 0 : index
    %c0_74 = arith.constant 0 : index
    %85 = vector.load %arg5[%c0_72, %c0_73, %c0_74] : memref<9x128x128xbf16, #tpu.memory_space<vmem>>, vector<1x128x128xbf16>
    %86 = vector.shape_cast %85 : vector<1x128x128xbf16> to vector<128x128xbf16>
    %cst_75 = arith.constant dense<0.000000e+00> : vector<64x128xf32>
    %87 = tpu.matmul %84, %86, %cst_75 {dimension_numbers = #tpu.dot_dimension_numbers<[1], [0], [0], [1], [0, 0, 1, 1], [], []>} : vector<64x128xbf16>, vector<128x128xbf16>, vector<64x128xf32> -> vector<64x128xf32>
    %88 = arith.addf %80, %87 : vector<64x128xf32>
    %c1_76 = arith.constant 1 : index
    %c0_77 = arith.constant 0 : index
    %c0_78 = arith.constant 0 : index
    %89 = vector.load %arg2[%c1_76, %c0_77, %c0_78] : memref<9x64x64xbf16, #tpu.memory_space<vmem>>, vector<1x64x64xbf16>
    %90 = vector.shape_cast %89 : vector<1x64x64xbf16> to vector<64x64xbf16>
    %cst_79 = arith.constant dense<0.000000e+00> : vector<64x128xf32>
    %91 = tpu.matmul %90, %76, %cst_79 {dimension_numbers = #tpu.dot_dimension_numbers<[1], [0], [0], [1], [0, 0, 1, 1], [], []>} : vector<64x64xbf16>, vector<64x128xbf16>, vector<64x128xf32> -> vector<64x128xf32>
    %92 = arith.truncf %91 : vector<64x128xf32> to vector<64x128xbf16>
    %c1_80 = arith.constant 1 : index
    %c0_81 = arith.constant 0 : index
    %c0_82 = arith.constant 0 : index
    %93 = vector.load %arg5[%c1_80, %c0_81, %c0_82] : memref<9x128x128xbf16, #tpu.memory_space<vmem>>, vector<1x128x128xbf16>
    %94 = vector.shape_cast %93 : vector<1x128x128xbf16> to vector<128x128xbf16>
    %cst_83 = arith.constant dense<0.000000e+00> : vector<64x128xf32>
    %95 = tpu.matmul %92, %94, %cst_83 {dimension_numbers = #tpu.dot_dimension_numbers<[1], [0], [0], [1], [0, 0, 1, 1], [], []>} : vector<64x128xbf16>, vector<128x128xbf16>, vector<64x128xf32> -> vector<64x128xf32>
    %96 = arith.addf %88, %95 : vector<64x128xf32>
    %c2_84 = arith.constant 2 : index
    %c0_85 = arith.constant 0 : index
    %c0_86 = arith.constant 0 : index
    %97 = vector.load %arg2[%c2_84, %c0_85, %c0_86] : memref<9x64x64xbf16, #tpu.memory_space<vmem>>, vector<1x64x64xbf16>
    %98 = vector.shape_cast %97 : vector<1x64x64xbf16> to vector<64x64xbf16>
    %cst_87 = arith.constant dense<0.000000e+00> : vector<64x128xf32>
    %99 = tpu.matmul %98, %76, %cst_87 {dimension_numbers = #tpu.dot_dimension_numbers<[1], [0], [0], [1], [0, 0, 1, 1], [], []>} : vector<64x64xbf16>, vector<64x128xbf16>, vector<64x128xf32> -> vector<64x128xf32>
    %100 = arith.truncf %99 : vector<64x128xf32> to vector<64x128xbf16>
    %c2_88 = arith.constant 2 : index
    %c0_89 = arith.constant 0 : index
    %c0_90 = arith.constant 0 : index
    %101 = vector.load %arg5[%c2_88, %c0_89, %c0_90] : memref<9x128x128xbf16, #tpu.memory_space<vmem>>, vector<1x128x128xbf16>
    %102 = vector.shape_cast %101 : vector<1x128x128xbf16> to vector<128x128xbf16>
    %cst_91 = arith.constant dense<0.000000e+00> : vector<64x128xf32>
    %103 = tpu.matmul %100, %102, %cst_91 {dimension_numbers = #tpu.dot_dimension_numbers<[1], [0], [0], [1], [0, 0, 1, 1], [], []>} : vector<64x128xbf16>, vector<128x128xbf16>, vector<64x128xf32> -> vector<64x128xf32>
    %104 = arith.addf %96, %103 : vector<64x128xf32>
    %c3_92 = arith.constant 3 : index
    %c0_93 = arith.constant 0 : index
    %c0_94 = arith.constant 0 : index
    %105 = vector.load %arg2[%c3_92, %c0_93, %c0_94] : memref<9x64x64xbf16, #tpu.memory_space<vmem>>, vector<1x64x64xbf16>
    %106 = vector.shape_cast %105 : vector<1x64x64xbf16> to vector<64x64xbf16>
    %cst_95 = arith.constant dense<0.000000e+00> : vector<64x128xf32>
    %107 = tpu.matmul %106, %76, %cst_95 {dimension_numbers = #tpu.dot_dimension_numbers<[1], [0], [0], [1], [0, 0, 1, 1], [], []>} : vector<64x64xbf16>, vector<64x128xbf16>, vector<64x128xf32> -> vector<64x128xf32>
    %108 = arith.truncf %107 : vector<64x128xf32> to vector<64x128xbf16>
    %c3_96 = arith.constant 3 : index
    %c0_97 = arith.constant 0 : index
    %c0_98 = arith.constant 0 : index
    %109 = vector.load %arg5[%c3_96, %c0_97, %c0_98] : memref<9x128x128xbf16, #tpu.memory_space<vmem>>, vector<1x128x128xbf16>
    %110 = vector.shape_cast %109 : vector<1x128x128xbf16> to vector<128x128xbf16>
    %cst_99 = arith.constant dense<0.000000e+00> : vector<64x128xf32>
    %111 = tpu.matmul %108, %110, %cst_99 {dimension_numbers = #tpu.dot_dimension_numbers<[1], [0], [0], [1], [0, 0, 1, 1], [], []>} : vector<64x128xbf16>, vector<128x128xbf16>, vector<64x128xf32> -> vector<64x128xf32>
    %112 = arith.addf %104, %111 : vector<64x128xf32>
    %c4_100 = arith.constant 4 : index
    %c0_101 = arith.constant 0 : index
    %c0_102 = arith.constant 0 : index
    %113 = vector.load %arg5[%c4_100, %c0_101, %c0_102] : memref<9x128x128xbf16, #tpu.memory_space<vmem>>, vector<1x128x128xbf16>
    %114 = vector.shape_cast %113 : vector<1x128x128xbf16> to vector<128x128xbf16>
    %cst_103 = arith.constant dense<0.000000e+00> : vector<64x128xf32>
    %115 = tpu.matmul %76, %114, %cst_103 {dimension_numbers = #tpu.dot_dimension_numbers<[1], [0], [0], [1], [0, 0, 1, 1], [], []>} : vector<64x128xbf16>, vector<128x128xbf16>, vector<64x128xf32> -> vector<64x128xf32>
    %116 = arith.addf %112, %115 : vector<64x128xf32>
    %c5_104 = arith.constant 5 : index
    %c0_105 = arith.constant 0 : index
    %c0_106 = arith.constant 0 : index
    %117 = vector.load %arg2[%c5_104, %c0_105, %c0_106] : memref<9x64x64xbf16, #tpu.memory_space<vmem>>, vector<1x64x64xbf16>
    %118 = vector.shape_cast %117 : vector<1x64x64xbf16> to vector<64x64xbf16>
    %cst_107 = arith.constant dense<0.000000e+00> : vector<64x128xf32>
    %119 = tpu.matmul %118, %76, %cst_107 {dimension_numbers = #tpu.dot_dimension_numbers<[1], [0], [0], [1], [0, 0, 1, 1], [], []>} : vector<64x64xbf16>, vector<64x128xbf16>, vector<64x128xf32> -> vector<64x128xf32>
    %120 = arith.truncf %119 : vector<64x128xf32> to vector<64x128xbf16>
    %c5_108 = arith.constant 5 : index
    %c0_109 = arith.constant 0 : index
    %c0_110 = arith.constant 0 : index
    %121 = vector.load %arg5[%c5_108, %c0_109, %c0_110] : memref<9x128x128xbf16, #tpu.memory_space<vmem>>, vector<1x128x128xbf16>
    %122 = vector.shape_cast %121 : vector<1x128x128xbf16> to vector<128x128xbf16>
    %cst_111 = arith.constant dense<0.000000e+00> : vector<64x128xf32>
    %123 = tpu.matmul %120, %122, %cst_111 {dimension_numbers = #tpu.dot_dimension_numbers<[1], [0], [0], [1], [0, 0, 1, 1], [], []>} : vector<64x128xbf16>, vector<128x128xbf16>, vector<64x128xf32> -> vector<64x128xf32>
    %124 = arith.addf %116, %123 : vector<64x128xf32>
    %c6_112 = arith.constant 6 : index
    %c0_113 = arith.constant 0 : index
    %c0_114 = arith.constant 0 : index
    %125 = vector.load %arg2[%c6_112, %c0_113, %c0_114] : memref<9x64x64xbf16, #tpu.memory_space<vmem>>, vector<1x64x64xbf16>
    %126 = vector.shape_cast %125 : vector<1x64x64xbf16> to vector<64x64xbf16>
    %cst_115 = arith.constant dense<0.000000e+00> : vector<64x128xf32>
    %127 = tpu.matmul %126, %76, %cst_115 {dimension_numbers = #tpu.dot_dimension_numbers<[1], [0], [0], [1], [0, 0, 1, 1], [], []>} : vector<64x64xbf16>, vector<64x128xbf16>, vector<64x128xf32> -> vector<64x128xf32>
    %128 = arith.truncf %127 : vector<64x128xf32> to vector<64x128xbf16>
    %c6_116 = arith.constant 6 : index
    %c0_117 = arith.constant 0 : index
    %c0_118 = arith.constant 0 : index
    %129 = vector.load %arg5[%c6_116, %c0_117, %c0_118] : memref<9x128x128xbf16, #tpu.memory_space<vmem>>, vector<1x128x128xbf16>
    %130 = vector.shape_cast %129 : vector<1x128x128xbf16> to vector<128x128xbf16>
    %cst_119 = arith.constant dense<0.000000e+00> : vector<64x128xf32>
    %131 = tpu.matmul %128, %130, %cst_119 {dimension_numbers = #tpu.dot_dimension_numbers<[1], [0], [0], [1], [0, 0, 1, 1], [], []>} : vector<64x128xbf16>, vector<128x128xbf16>, vector<64x128xf32> -> vector<64x128xf32>
    %132 = arith.addf %124, %131 : vector<64x128xf32>
    %c7_120 = arith.constant 7 : index
    %c0_121 = arith.constant 0 : index
    %c0_122 = arith.constant 0 : index
    %133 = vector.load %arg2[%c7_120, %c0_121, %c0_122] : memref<9x64x64xbf16, #tpu.memory_space<vmem>>, vector<1x64x64xbf16>
    %134 = vector.shape_cast %133 : vector<1x64x64xbf16> to vector<64x64xbf16>
    %cst_123 = arith.constant dense<0.000000e+00> : vector<64x128xf32>
    %135 = tpu.matmul %134, %76, %cst_123 {dimension_numbers = #tpu.dot_dimension_numbers<[1], [0], [0], [1], [0, 0, 1, 1], [], []>} : vector<64x64xbf16>, vector<64x128xbf16>, vector<64x128xf32> -> vector<64x128xf32>
    %136 = arith.truncf %135 : vector<64x128xf32> to vector<64x128xbf16>
    %c7_124 = arith.constant 7 : index
    %c0_125 = arith.constant 0 : index
    %c0_126 = arith.constant 0 : index
    %137 = vector.load %arg5[%c7_124, %c0_125, %c0_126] : memref<9x128x128xbf16, #tpu.memory_space<vmem>>, vector<1x128x128xbf16>
    %138 = vector.shape_cast %137 : vector<1x128x128xbf16> to vector<128x128xbf16>
    %cst_127 = arith.constant dense<0.000000e+00> : vector<64x128xf32>
    %139 = tpu.matmul %136, %138, %cst_127 {dimension_numbers = #tpu.dot_dimension_numbers<[1], [0], [0], [1], [0, 0, 1, 1], [], []>} : vector<64x128xbf16>, vector<128x128xbf16>, vector<64x128xf32> -> vector<64x128xf32>
    %140 = arith.addf %132, %139 : vector<64x128xf32>
    %c8_128 = arith.constant 8 : index
    %c0_129 = arith.constant 0 : index
    %c0_130 = arith.constant 0 : index
    %141 = vector.load %arg2[%c8_128, %c0_129, %c0_130] : memref<9x64x64xbf16, #tpu.memory_space<vmem>>, vector<1x64x64xbf16>
    %142 = vector.shape_cast %141 : vector<1x64x64xbf16> to vector<64x64xbf16>
    %cst_131 = arith.constant dense<0.000000e+00> : vector<64x128xf32>
    %143 = tpu.matmul %142, %76, %cst_131 {dimension_numbers = #tpu.dot_dimension_numbers<[1], [0], [0], [1], [0, 0, 1, 1], [], []>} : vector<64x64xbf16>, vector<64x128xbf16>, vector<64x128xf32> -> vector<64x128xf32>
    %144 = arith.truncf %143 : vector<64x128xf32> to vector<64x128xbf16>
    %c8_132 = arith.constant 8 : index
    %c0_133 = arith.constant 0 : index
    %c0_134 = arith.constant 0 : index
    %145 = vector.load %arg5[%c8_132, %c0_133, %c0_134] : memref<9x128x128xbf16, #tpu.memory_space<vmem>>, vector<1x128x128xbf16>
    %146 = vector.shape_cast %145 : vector<1x128x128xbf16> to vector<128x128xbf16>
    %cst_135 = arith.constant dense<0.000000e+00> : vector<64x128xf32>
    %147 = tpu.matmul %144, %146, %cst_135 {dimension_numbers = #tpu.dot_dimension_numbers<[1], [0], [0], [1], [0, 0, 1, 1], [], []>} : vector<64x128xbf16>, vector<128x128xbf16>, vector<64x128xf32> -> vector<64x128xf32>
    %148 = arith.addf %140, %147 : vector<64x128xf32>
    %cst_136 = arith.constant 0.000000e+00 : f32
    %149 = vector.broadcast %cst_136 : f32 to vector<64x128xf32>
    %150 = arith.maximumf %148, %149 : vector<64x128xf32>
    %151 = arith.truncf %150 : vector<64x128xf32> to vector<64x128xbf16>
    %c0_137 = arith.constant 0 : index
    %c0_138 = arith.constant 0 : index
    %c0_139 = arith.constant 0 : index
    %152 = vector.load %arg7[%c0_137, %c0_138, %c0_139] : memref<1x64x128xbf16, #tpu.memory_space<vmem>>, vector<1x64x128xbf16>
    %153 = vector.shape_cast %152 : vector<1x64x128xbf16> to vector<64x128xbf16>
    %154 = vector.shape_cast %151 : vector<64x128xbf16> to vector<1x64x128xbf16>
    tpu.vector_store %arg7[%c0_137, %c0_138, %c0_139], %154 {strides = array<i32>} : memref<1x64x128xbf16, #tpu.memory_space<vmem>>, vector<1x64x128xbf16>,
    return
  }
  func.func @transform_0(%arg0: i32) -> (i32, i32, i32) {
    %c0_i32 = arith.constant 0 : i32
    %c0_i32_0 = arith.constant 0 : i32
    %c0_i32_1 = arith.constant 0 : i32
    return %arg0, %c0_i32, %c0_i32_0 : i32, i32, i32
  }
  func.func @transform_1(%arg0: i32) -> (i32, i32, i32) {
    %c0_i32 = arith.constant 0 : i32
    %c0_i32_0 = arith.constant 0 : i32
    %c0_i32_1 = arith.constant 0 : i32
    %c0_i32_2 = arith.constant 0 : i32
    return %c0_i32, %c0_i32_0, %c0_i32_1 : i32, i32, i32
  }
  func.func @transform_2(%arg0: i32) -> (i32, i32, i32) {
    %c0_i32 = arith.constant 0 : i32
    %c0_i32_0 = arith.constant 0 : i32
    %c0_i32_1 = arith.constant 0 : i32
    %c0_i32_2 = arith.constant 0 : i32
    return %c0_i32, %c0_i32_0, %c0_i32_1 : i32, i32, i32
  }
  func.func @transform_3(%arg0: i32) -> (i32, i32) {
    %c0_i32 = arith.constant 0 : i32
    %c0_i32_0 = arith.constant 0 : i32
    %c0_i32_1 = arith.constant 0 : i32
    return %c0_i32, %c0_i32_0 : i32, i32
  }
  func.func @transform_4(%arg0: i32) -> (i32, i32, i32) {
    %c0_i32 = arith.constant 0 : i32
    %c0_i32_0 = arith.constant 0 : i32
    %c0_i32_1 = arith.constant 0 : i32
    %c0_i32_2 = arith.constant 0 : i32
    return %c0_i32, %c0_i32_0, %c0_i32_1 : i32, i32, i32
  }
  func.func @transform_5(%arg0: i32) -> (i32, i32) {
    %c0_i32 = arith.constant 0 : i32
    %c0_i32_0 = arith.constant 0 : i32
    %c0_i32_1 = arith.constant 0 : i32
    return %c0_i32, %c0_i32_0 : i32, i32
  }
  func.func @transform_6(%arg0: i32) -> (i32, i32, i32) {
    %c0_i32 = arith.constant 0 : i32
    %c0_i32_0 = arith.constant 0 : i32
    %c0_i32_1 = arith.constant 0 : i32
    return %arg0, %c0_i32, %c0_i32_0 : i32, i32, i32
  }
}

</mosaic_0001>

<llo_original>
// kernel: tpu_custom_call.1
$region0: #{tpu_custom_call.1}
  #allocation0 [shape = 'u32[]', space=smem, size = 0x4, offset = 0x4, fixed_abs, tag = 'smem constant byte address 0x4 - core index']
  #allocation1 [shape = 'u32[144,128]{1,0:T(1,128)}', space=vmem, size = 0x12000, scoped, tag = 'internal scratch']
  %s0 = inlined_call_operand.vmem [shape: bf16[2,64,32], index: 0, kind: input, shape index: {}]
  %s1 = inlined_call_operand.hbm [shape: bf16[9,64,64], index: 1, kind: input, shape index: {}]
  %s2 = inlined_call_operand.hbm [shape: bf16[9,32,128], index: 2, kind: input, shape index: {}]
  %s3 = inlined_call_operand.vmem [shape: f32[1,128], index: 3, kind: input, shape index: {}]
  %s4 = inlined_call_operand.hbm [shape: bf16[9,128,128], index: 4, kind: input, shape index: {}]
  %s5 = inlined_call_operand.vmem [shape: f32[1,128], index: 5, kind: input, shape index: {}]
  %s6 = inlined_call_operand.hbm [shape: bf16[2,64,128], index: 6, kind: output, shape index: {}]
  %s7 = sld [smem:[#allocation0]]
  $region69: #{tpu_custom_call.1} parent=0
    _
  %s9 = ssub.s32 1, %s7
  %s10 = scalar_select 0, %s9, %s7
  $region1: #{tpu_custom_call.1} parent=0
    #allocation2 [shape = 'u8[147456]{0}', space=vmem, size = 0x24000, scoped, tag = 'input window, operand 1, single buffered']
    #allocation3 [shape = 's32[2]{0}', space=sflag, size = 0x8, scoped, tag = 'scoped memory for tpu_custom_call.1']
    #allocation4 [shape = 's32[2]{0}', space=sflag, size = 0x8, scoped, tag = 'scoped memory for tpu_custom_call.1']
    #allocation5 [shape = 'u8[73728]{0}', space=vmem, size = 0x12000, scoped, tag = 'input window, operand 2, single buffered']
    #allocation6 [shape = 's32[1]{0}', space=sflag, size = 0x4, scoped, tag = 'scoped memory for tpu_custom_call.1']
    #allocation7 [shape = 'u8[294912]{0}', space=vmem, size = 0x48000, scoped, tag = 'input window, operand 4, single buffered']
    #allocation8 [shape = 'u8[32768]{0}', space=vmem, size = 0x8000, scoped, tag = 'output window, operand 0']
    %11 = vsyncpa [#allocation3], 0
    %12 = vsyncpa [#allocation6], 0
    %13 = vsyncpa [#allocation4], 0
    %s14 = scalar_lea.sflag [#allocation4], 1
    %15 = vsyncpa %s14, 0
    loop: start=0, step=1, limit=4
    $region2: #{tpu_custom_call.1} parent=1 // loop_pre_header
      _
    $region3: #{tpu_custom_call.1} parent=1 // loop_header
      %s17 = sphi 0, %s21
      %p18 = scmp.ge.s32.totalorder %s17, 4
      %s27 = sphi 0, %s29
      %s30 = sphi 0, %s27
      %s31 = sphi 0, %s30
      %s47 = sphi 0, %s31
      %s51 = sphi 0, %s51
      %s53 = sphi 0, %s51
      %s54 = sphi 0, %s53
      %s68 = sphi 0, %s54
      %s72 = sphi 0, %s72
      %s74 = sphi 0, %s72
      %s75 = sphi 0, %s74
      %s89 = sphi 0, %s75
      %s93 = sphi 0, %s93
      %s95 = sphi 0, %s93
      %s96 = sphi 0, %s95
      %s110 = sphi 0, %s96
      %s114 = sphi 0, %s114
      %s116 = sphi 0, %s114
      %s117 = sphi 0, %s116
      %s131 = sphi 0, %s117
      %s135 = sphi 0, %s135
      %s137 = sphi 0, %s135
      %s138 = sphi 0, %s137
      %s152 = sphi 0, %s138
      %s158 = sphi 0, %s160
      %s161 = sphi 0, %s158
      %s162 = sphi 0, %s161
      %s178 = sphi 0, %s162
    $region4: #{tpu_custom_call.1} parent=1 // loop_header_branch
      %20 = sbr.rel (%p18) target = $region8
    $region5: #{tpu_custom_call.1} parent=1 // loop_body
      %s22 = ssub.s32 %s17, 1
      %s23 = ssub.s32 %s17, 2
      %s24 = sadd.s32 %s17, 1
      %s25 = ssub.s32 %s17, %s24
      %p26 = scmp.eq.s32.totalorder %s25, 0
      %s28 = sadd.s32 %s27, 1
      %s29 = scalar_select %p26, %s27, %s28
      %p32 = pneg %p26
      %p33 = scmp.eq.s32.totalorder %s17, 1
      %p34 = por %p32, %p33
      %p35 = scmp.ne.s32.totalorder %s27, %s30
      %p36 = scmp.eq.s32.totalorder %s17, 0
      %p37 = por %p35, %p36
      %p38 = scmp.ne.s32.totalorder %s27, %s30
      %p39 = scmp.eq.s32.totalorder %s22, 1
      %p40 = por %p38, %p39
      %p41 = scmp.ne.s32.totalorder %s30, %s31
      %p42 = scmp.eq.s32.totalorder %s22, 0
      %p43 = por %p41, %p42
      %p44 = scmp.ne.s32.totalorder %s30, %s31
      %p45 = scmp.eq.s32.totalorder %s23, 1
      %p46 = por %p44, %p45
      %p48 = scmp.ne.s32.totalorder %s31, %s47
      %p49 = scmp.eq.s32.totalorder %s23, 0
      %p50 = por %p48, %p49
      %s52 = sadd.s32 %s51, 1
      %p55 = scmp.eq.s32.totalorder %s17, 1
      %p56 = scmp.ne.s32.totalorder %s51, %s53
      %p57 = scmp.eq.s32.totalorder %s17, 0
      %p58 = por %p56, %p57
      %p59 = scmp.ne.s32.totalorder %s51, %s53
      %p60 = scmp.eq.s32.totalorder %s22, 1
      %p61 = por %p59, %p60
      %p62 = scmp.ne.s32.totalorder %s53, %s54
      %p63 = scmp.eq.s32.totalorder %s22, 0
      %p64 = por %p62, %p63
      %p65 = scmp.ne.s32.totalorder %s53, %s54
      %p66 = scmp.eq.s32.totalorder %s23, 1
      %p67 = por %p65, %p66
      %p69 = scmp.ne.s32.totalorder %s54, %s68
      %p70 = scmp.eq.s32.totalorder %s23, 0
      %p71 = por %p69, %p70
      %s73 = sadd.s32 %s72, 1
      %p76 = scmp.eq.s32.totalorder %s17, 1
      %p77 = scmp.ne.s32.totalorder %s72, %s74
      %p78 = scmp.eq.s32.totalorder %s17, 0
      %p79 = por %p77, %p78
      %p80 = scmp.ne.s32.totalorder %s72, %s74
      %p81 = scmp.eq.s32.totalorder %s22, 1
      %p82 = por %p80, %p81
      %p83 = scmp.ne.s32.totalorder %s74, %s75
      %p84 = scmp.eq.s32.totalorder %s22, 0
      %p85 = por %p83, %p84
      %p86 = scmp.ne.s32.totalorder %s74, %s75
      %p87 = scmp.eq.s32.totalorder %s23, 1
      %p88 = por %p86, %p87
      %p90 = scmp.ne.s32.totalorder %s75, %s89
      %p91 = scmp.eq.s32.totalorder %s23, 0
      %p92 = por %p90, %p91
      %s94 = sadd.s32 %s93, 1
      %p97 = scmp.eq.s32.totalorder %s17, 1
      %p98 = scmp.ne.s32.totalorder %s93, %s95
      %p99 = scmp.eq.s32.totalorder %s17, 0
      %p100 = por %p98, %p99
      %p101 = scmp.ne.s32.totalorder %s93, %s95
      %p102 = scmp.eq.s32.totalorder %s22, 1
      %p103 = por %p101, %p102
      %p104 = scmp.ne.s32.totalorder %s95, %s96
      %p105 = scmp.eq.s32.totalorder %s22, 0
      %p106 = por %p104, %p105
      %p107 = scmp.ne.s32.totalorder %s95, %s96
      %p108 = scmp.eq.s32.totalorder %s23, 1
      %p109 = por %p107, %p108
      %p111 = scmp.ne.s32.totalorder %s96, %s110
      %p112 = scmp.eq.s32.totalorder %s23, 0
      %p113 = por %p111, %p112
      %s115 = sadd.s32 %s114, 1
      %p118 = scmp.eq.s32.totalorder %s17, 1
      %p119 = scmp.ne.s32.totalorder %s114, %s116
      %p120 = scmp.eq.s32.totalorder %s17, 0
      %p121 = por %p119, %p120
      %p122 = scmp.ne.s32.totalorder %s114, %s116
      %p123 = scmp.eq.s32.totalorder %s22, 1
      %p124 = por %p122, %p123
      %p125 = scmp.ne.s32.totalorder %s116, %s117
      %p126 = scmp.eq.s32.totalorder %s22, 0
      %p127 = por %p125, %p126
      %p128 = scmp.ne.s32.totalorder %s116, %s117
      %p129 = scmp.eq.s32.totalorder %s23, 1
      %p130 = por %p128, %p129
      %p132 = scmp.ne.s32.totalorder %s117, %s131
      %p133 = scmp.eq.s32.totalorder %s23, 0
      %p134 = por %p132, %p133
      %s136 = sadd.s32 %s135, 1
      %p139 = scmp.eq.s32.totalorder %s17, 1
      %p140 = scmp.ne.s32.totalorder %s135, %s137
      %p141 = scmp.eq.s32.totalorder %s17, 0
      %p142 = por %p140, %p141
      %p143 = scmp.ne.s32.totalorder %s135, %s137
      %p144 = scmp.eq.s32.totalorder %s22, 1
      %p145 = por %p143, %p144
      %p146 = scmp.ne.s32.totalorder %s137, %s138
      %p147 = scmp.eq.s32.totalorder %s22, 0
      %p148 = por %p146, %p147
      %p149 = scmp.ne.s32.totalorder %s137, %s138
      %p150 = scmp.eq.s32.totalorder %s23, 1
      %p151 = por %p149, %p150
      %p153 = scmp.ne.s32.totalorder %s138, %s152
      %p154 = scmp.eq.s32.totalorder %s23, 0
      %p155 = por %p153, %p154
      %s156 = ssub.s32 %s17, %s24
      %p157 = scmp.eq.s32.totalorder %s156, 0
      %s159 = sadd.s32 %s158, 1
      %s160 = scalar_select %p157, %s158, %s159
      %p163 = pneg %p157
      %p164 = scmp.eq.s32.totalorder %s17, 1
      %p165 = por %p163, %p164
      %p166 = scmp.ne.s32.totalorder %s158, %s161
      %p167 = scmp.eq.s32.totalorder %s17, 0
      %p168 = por %p166, %p167
      %p169 = scmp.ne.s32.totalorder %s158, %s161
      %p170 = scmp.eq.s32.totalorder %s22, 1
      %p171 = por %p169, %p170
      %p172 = scmp.ne.s32.totalorder %s161, %s162
      %p173 = scmp.eq.s32.totalorder %s22, 0
      %p174 = por %p172, %p173
      %p175 = scmp.ne.s32.totalorder %s161, %s162
      %p176 = scmp.eq.s32.totalorder %s23, 1
      %p177 = por %p175, %p176
      %p179 = scmp.ne.s32.totalorder %s162, %s178
      %p180 = scmp.eq.s32.totalorder %s23, 0
      %p181 = por %p179, %p180
      %p182 = scmp.le.s32.totalorder 1, %s17
      %p183 = scmp.lt.s32.totalorder %s17, 3
      %p184 = pnand %p182, %p183
      %p185 = pneg %p184
      // Predicated region
      $region9: #{tpu_custom_call.1} parent=5 // pred_check
        _
      $region10: #{tpu_custom_call.1} parent=5 // pred_check_branch
        %187 = sbr.rel (%p184) target = $region12
      $region11: #{tpu_custom_call.1} parent=5 // pred_region
        %s188 = ssub.s32 %s17, 1
        // Predicated region
        $region13: #{tpu_custom_call.1} parent=11 // pred_check
          %p189 = pneg %p64
        $region14: #{tpu_custom_call.1} parent=11 // pred_check_branch
          %191 = sbr.rel (%p189) target = $region16
        $region15: #{tpu_custom_call.1} parent=11 // pred_region
          %s193 = ssub.s32 4608, 4608
          %194 = vsyncadd [#allocation3], %s193
          %s195 = sshll.u32 [#allocation2], 4
          %s196 = int_to_ptr.vmem [resolvable:$true] %s195
          %201 = dma.hbm_to_vmem [thread:$0]  %s1, 4608, %s196, [#allocation3], 64, 64, 4
        $region16: #{tpu_custom_call.1} parent=11 // pred_fallthru
          _
        // Predicated region
        $region17: #{tpu_custom_call.1} parent=11 // pred_check
          %p202 = pneg %p85
        $region18: #{tpu_custom_call.1} parent=11 // pred_check_branch
          %204 = sbr.rel (%p202) target = $region20
        $region19: #{tpu_custom_call.1} parent=11 // pred_region
          %s206 = ssub.s32 2304, 2304
          %207 = vsyncadd [#allocation6], %s206
          %s208 = sshll.u32 [#allocation5], 4
          %s209 = int_to_ptr.vmem [resolvable:$true] %s208
          %214 = dma.hbm_to_vmem [thread:$0]  %s2, 2304, %s209, [#allocation6], 64, 64, 4
        $region20: #{tpu_custom_call.1} parent=11 // pred_fallthru
          _
        // Predicated region
        $region21: #{tpu_custom_call.1} parent=11 // pred_check
          %p215 = pneg %p106
        $region22: #{tpu_custom_call.1} parent=11 // pred_check_branch
          %217 = sbr.rel (%p215) target = $region24
        $region23: #{tpu_custom_call.1} parent=11 // pred_region
          _
        $region24: #{tpu_custom_call.1} parent=11 // pred_fallthru
          _
        // Predicated region
        $region25: #{tpu_custom_call.1} parent=11 // pred_check
          %p218 = pneg %p127
        $region26: #{tpu_custom_call.1} parent=11 // pred_check_branch
          %220 = sbr.rel (%p218) target = $region28
        $region27: #{tpu_custom_call.1} parent=11 // pred_region
          %s222 = ssub.s32 9216, 9216
          %223 = vsyncadd [#allocation6], %s222
          %s224 = sshll.u32 [#allocation7], 4
          %s225 = int_to_ptr.vmem [resolvable:$true] %s224
          %230 = dma.hbm_to_vmem [thread:$0]  %s4, 9216, %s225, [#allocation6], 64, 64, 4
        $region28: #{tpu_custom_call.1} parent=11 // pred_fallthru
          _
        // Predicated region
        $region29: #{tpu_custom_call.1} parent=11 // pred_check
          %p231 = pneg %p148
        $region30: #{tpu_custom_call.1} parent=11 // pred_check_branch
          %233 = sbr.rel (%p231) target = $region32
        $region31: #{tpu_custom_call.1} parent=11 // pred_region
          _
        $region32: #{tpu_custom_call.1} parent=11 // pred_fallthru
          _
      $region12: #{tpu_custom_call.1} parent=5 // pred_fallthru
        _
      %p234 = scmp.lt.s32.totalorder %s17, 2
      // Predicated region
      $region33: #{tpu_custom_call.1} parent=5 // pred_check
        %p235 = pneg %p234
      $region34: #{tpu_custom_call.1} parent=5 // pred_check_branch
        %237 = sbr.rel (%p235) target = $region36
      $region35: #{tpu_custom_call.1} parent=5 // pred_region
        // Predicated region
        $region37: #{tpu_custom_call.1} parent=35 // pred_check
          %p238 = pneg %p37
        $region38: #{tpu_custom_call.1} parent=35 // pred_check_branch
          %240 = sbr.rel (%p238) target = $region40
        $region39: #{tpu_custom_call.1} parent=35 // pred_region
          %p241 = scmp.lt.s32.totalorder %s17, 1
          %s242 = scalar_select %p241, %s17, 1
          %s243 = smul.addr %s242, 8
          %s244 = smul.addr %s243, 4
          %s245 = scalar_lea.vmem %s0, %s244
        $region40: #{tpu_custom_call.1} parent=35 // pred_fallthru
          _
      $region36: #{tpu_custom_call.1} parent=5 // pred_fallthru
        _
      %p246 = scmp.le.s32.totalorder 1, %s17
      %p247 = scmp.lt.s32.totalorder %s17, 3
      %p248 = pnand %p246, %p247
      %p249 = pneg %p248
      // Predicated region
      $region41: #{tpu_custom_call.1} parent=5 // pred_check
        _
      $region42: #{tpu_custom_call.1} parent=5 // pred_check_branch
        %251 = sbr.rel (%p248) target = $region44
      $region43: #{tpu_custom_call.1} parent=5 // pred_region
        %s252 = ssub.s32 %s17, 1
        // Predicated region
        $region45: #{tpu_custom_call.1} parent=43 // pred_check
          %p253 = pneg %p64
        $region46: #{tpu_custom_call.1} parent=43 // pred_check_branch
          %255 = sbr.rel (%p253) target = $region48
        $region47: #{tpu_custom_call.1} parent=43 // pred_region
          %256 = dma.done [#allocation3], 4608
        $region48: #{tpu_custom_call.1} parent=43 // pred_fallthru
          _
        // Predicated region
        $region49: #{tpu_custom_call.1} parent=43 // pred_check
          %p257 = pneg %p85
        $region50: #{tpu_custom_call.1} parent=43 // pred_check_branch
          %259 = sbr.rel (%p257) target = $region52
        $region51: #{tpu_custom_call.1} parent=43 // pred_region
          %260 = dma.done [#allocation6], 2304
        $region52: #{tpu_custom_call.1} parent=43 // pred_fallthru
          _
        // Predicated region
        $region53: #{tpu_custom_call.1} parent=43 // pred_check
          %p261 = pneg %p127
        $region54: #{tpu_custom_call.1} parent=43 // pred_check_branch
          %263 = sbr.rel (%p261) target = $region56
        $region55: #{tpu_custom_call.1} parent=43 // pred_region
          %264 = dma.done [#allocation6], 9216
        $region56: #{tpu_custom_call.1} parent=43 // pred_fallthru
          _
        %p265 = scmp.lt.s32.totalorder %s22, 1
        %s266 = scalar_select %p265, %s22, 1
        %s267 = smul.addr %s266, 8
        %s268 = smul.addr %s267, 4
        %s269 = scalar_lea.vmem %s0, %s268
        %p270 = pneg %p43
        %p271 = pneg %p40
        %p272 = pneg %p64
        %p273 = pneg %p61
        %p274 = pneg %p85
        %p275 = pneg %p82
        %p276 = pneg %p106
        %p277 = pneg %p103
        %p278 = pneg %p127
        %p279 = pneg %p124
        %p280 = pneg %p148
        %p281 = pneg %p145
        %p282 = pneg %p174
        %p283 = pneg %p171
        %s284 = sand.u32 %s161, 1
        %s285 = scalar_lea.sflag [#allocation4], %s284
        %s286 = sand.u32 %s161, 1
        %s287 = smul.addr %s286, 32
        %s288 = scalar_lea.vmem [#allocation8], %s287
        %p289 = scmp.lt.s32.totalorder %s22, 1
        %s290 = scalar_select %p289, %s22, 1
        %s291 = smul.addr %s290, 8
        %s292 = smul.addr %s291, 4
        %s293 = scalar_lea.vmem %s0, %s292
        %v295 = vld [vmem:[%s293] sm:$0xf]
        %v296 = vld [vmem:[%s293 + $0x4] sm:$0xf]
        %v297 = vld [vmem:[%s293 + $0x8] sm:$0xf]
        %v298 = vld [vmem:[%s293 + $0xc] sm:$0xf]
        %v299 = vld [vmem:[%s293 + $0x10] sm:$0xf]
        %v300 = vld [vmem:[%s293 + $0x14] sm:$0xf]
        %v301 = vld [vmem:[%s293 + $0x18] sm:$0xf]
        %v302 = vld [vmem:[%s293 + $0x1c] sm:$0xf]
        %v303 = vld [vmem:[%s3] sm:$0x1]
        %v305 = vlaneseq
        %v306 = vshrl.u32 %v305, 7
        %v307 = vsub.s32 0, %v306
        %v308 = vrot.slane %v303, %v307
        %v310 = vadd.f32 %v308, 0.0
        %v311 = vld [vmem:[#allocation2] sm:$0xf]
        %v312 = vld [vmem:[#allocation2 + $0x4] sm:$0xf]
        %v313 = vld [vmem:[#allocation2 + $0x8] sm:$0xf]
        %v314 = vld [vmem:[#allocation2 + $0xc] sm:$0xf]
        %v315 = vld [vmem:[#allocation2 + $0x10] sm:$0xf]
        %v316 = vld [vmem:[#allocation2 + $0x14] sm:$0xf]
        %v317 = vld [vmem:[#allocation2 + $0x18] sm:$0xf]
        %v318 = vld [vmem:[#allocation2 + $0x1c] sm:$0xf]
        %v327 = vunpack.c.l.b16 %v311
        %v328 = vunpack.c.l.b16 %v312
        %v329 = vunpack.c.l.b16 %v313
        %v330 = vunpack.c.l.b16 %v314
        %v331 = vunpack.c.l.b16 %v315
        %v332 = vunpack.c.l.b16 %v316
        %v333 = vunpack.c.l.b16 %v317
        %v334 = vunpack.c.l.b16 %v318
        %v335 = vpack.c.b16 %v328, %v327
        %v336 = vpack.c.b16 %v330, %v329
        %v337 = vpack.c.b16 %v332, %v331
        %v338 = vpack.c.b16 %v334, %v333
        %v347 = vunpack.c.l.b16 %v295
        %v348 = vunpack.c.l.b16 %v296
        %v349 = vunpack.c.l.b16 %v297
        %v350 = vunpack.c.l.b16 %v298
        %v351 = vunpack.c.l.b16 %v299
        %v352 = vunpack.c.l.b16 %v300
        %v353 = vunpack.c.l.b16 %v301
        %v354 = vunpack.c.l.b16 %v302
        %v355 = vpack.c.b16 %v348, %v347
        %v356 = vpack.c.b16 %v350, %v349
        %v357 = vpack.c.b16 %v352, %v351
        %v358 = vpack.c.b16 %v354, %v353
        %vm363 = vcmask 523264
        %v365 = vsel %vm363, %v335, 0
        %v368 = vsel %vm363, %v336, 0
        %v371 = vsel %vm363, %v337, 0
        %v374 = vsel %vm363, %v338, 0
        %376 = vmatprep.subr.bf16.mxu0 0
        %377 = vmatpush1.bf16.msra.mxu0 %v355
        %378 = vmatprep.subr.bf16.mxu0 0
        %379 = vmatpush1.bf16.msra.mxu0 %v356
        %380 = vmatprep.subr.bf16.mxu0 0
        %381 = vmatpush1.bf16.msra.mxu0 %v357
        %382 = vmatprep.subr.bf16.mxu0 0
        %383 = vmatpush1.bf16.msra.mxu0 %v358
        %384 = vmatprep.subr.bf16.mxu0 0
        %385 = vmatpush1.bf16.msra.mxu0 0
        %386 = vmatprep.subr.bf16.mxu0 0
        %387 = vmatpush1.bf16.msra.mxu0 0
        %388 = vmatprep.subr.bf16.mxu0 0
        %389 = vmatpush1.bf16.msra.mxu0 0
        %390 = vmatprep.subr.bf16.mxu0 0
        %391 = vmatpush1.bf16.msra.mxu0 0
        %392 = vmatprep.subr.bf16.mxu0 0
        %393 = vmatpush1.bf16.msra.mxu0 0
        %394 = vmatprep.subr.bf16.mxu0 0
        %395 = vmatpush1.bf16.msra.mxu0 0
        %396 = vmatprep.subr.bf16.mxu0 0
        %397 = vmatpush1.bf16.msra.mxu0 0
        %398 = vmatprep.subr.bf16.mxu0 0
        %399 = vmatpush1.bf16.msra.mxu0 0
        %400 = vmatprep.subr.bf16.mxu0 0
        %401 = vmatpush1.bf16.msra.mxu0 0
        %402 = vmatprep.subr.bf16.mxu0 0
        %403 = vmatpush1.bf16.msra.mxu0 0
        %404 = vmatprep.subr.bf16.mxu0 0
        %405 = vmatpush1.bf16.msra.mxu0 0
        %406 = vmatprep.subr.bf16.mxu0 0
        %407 = vmatpush1.bf16.msra.mxu0 0
        %408 = vmatprep.mubr.bf16.mxu0 0
        %409 = vmatmul.mubr.bf16.gmra.mrb[0].mxu0 %v365
        %v410 = vpop.f32.mrb[0].mxu0
        %v411 = vadd.f32 0.0, %v410
        %v412 = vpop.f32.mrb[0].mxu0
        %v413 = vpop.f32.mrb[0].mxu0
        %v414 = vadd.f32 0.0, %v413
        %v415 = vpop.f32.mrb[0].mxu0
        %416 = vmatprep.mubr.bf16.mxu0 0
        %417 = vmatmul.mubr.bf16.gmra.mrb[0].mxu0 %v368
        %v418 = vpop.f32.mrb[0].mxu0
        %v419 = vadd.f32 0.0, %v418
        %v420 = vpop.f32.mrb[0].mxu0
        %v421 = vpop.f32.mrb[0].mxu0
        %v422 = vadd.f32 0.0, %v421
        %v423 = vpop.f32.mrb[0].mxu0
        %424 = vmatprep.mubr.bf16.mxu0 0
        %425 = vmatmul.mubr.bf16.gmra.mrb[0].mxu0 %v371
        %v426 = vpop.f32.mrb[0].mxu0
        %v427 = vadd.f32 0.0, %v426
        %v428 = vpop.f32.mrb[0].mxu0
        %v429 = vpop.f32.mrb[0].mxu0
        %v430 = vadd.f32 0.0, %v429
        %v431 = vpop.f32.mrb[0].mxu0
        %432 = vmatprep.mubr.bf16.mxu0 0
        %433 = vmatmul.mubr.bf16.gmra.mrb[0].mxu0 %v374
        %v434 = vpop.f32.mrb[0].mxu0
        %v435 = vadd.f32 0.0, %v434
        %v436 = vpop.f32.mrb[0].mxu0
        %v437 = vpop.f32.mrb[0].mxu0
        %v438 = vadd.f32 0.0, %v437
        %v439 = vpop.f32.mrb[0].mxu0
        %440 = vdwg.mxu0
        %v441 = vpack.c.bf16 %v414, %v411
        %v442 = vpack.c.bf16 %v422, %v419
        %v443 = vpack.c.bf16 %v430, %v427
        %v444 = vpack.c.bf16 %v438, %v435
        %v445 = vld [vmem:[#allocation5] sm:$0xf]
        %v446 = vld [vmem:[#allocation5 + $0x4] sm:$0xf]
        %v447 = vld [vmem:[#allocation5 + $0x8] sm:$0xf]
        %v448 = vld [vmem:[#allocation5 + $0xc] sm:$0xf]
        %v453 = vunpack.c.l.b16 %v445
        %v454 = vunpack.c.l.b16 %v446
        %v455 = vunpack.c.l.b16 %v447
        %v456 = vunpack.c.l.b16 %v448
        %v457 = vpack.c.b16 %v454, %v453
        %v458 = vpack.c.b16 %v456, %v455
        %vm461 = vcmask 261120
        %v463 = vsel %vm461, %v441, 0
        %v466 = vsel %vm461, %v442, 0
        %v469 = vsel %vm461, %v443, 0
        %v472 = vsel %vm461, %v444, 0
        %474 = vmatprep.subr.bf16.mxu0 0
        %475 = vmatpush1.bf16.msra.mxu0 %v457
        %476 = vmatprep.subr.bf16.mxu0 0
        %477 = vmatpush1.bf16.msra.mxu0 %v458
        %478 = vmatprep.subr.bf16.mxu0 0
        %479 = vmatpush1.bf16.msra.mxu0 0
        %480 = vmatprep.subr.bf16.mxu0 0
        %481 = vmatpush1.bf16.msra.mxu0 0
        %482 = vmatprep.subr.bf16.mxu0 0
        %483 = vmatpush1.bf16.msra.mxu0 0
        %484 = vmatprep.subr.bf16.mxu0 0
        %485 = vmatpush1.bf16.msra.mxu0 0
        %486 = vmatprep.subr.bf16.mxu0 0
        %487 = vmatpush1.bf16.msra.mxu0 0
        %488 = vmatprep.subr.bf16.mxu0 0
        %489 = vmatpush1.bf16.msra.mxu0 0
        %490 = vmatprep.subr.bf16.mxu0 0
        %491 = vmatpush1.bf16.msra.mxu0 0
        %492 = vmatprep.subr.bf16.mxu0 0
        %493 = vmatpush1.bf16.msra.mxu0 0
        %494 = vmatprep.subr.bf16.mxu0 0
        %495 = vmatpush1.bf16.msra.mxu0 0
        %496 = vmatprep.subr.bf16.mxu0 0
        %497 = vmatpush1.bf16.msra.mxu0 0
        %498 = vmatprep.subr.bf16.mxu0 0
        %499 = vmatpush1.bf16.msra.mxu0 0
        %500 = vmatprep.subr.bf16.mxu0 0
        %501 = vmatpush1.bf16.msra.mxu0 0
        %502 = vmatprep.subr.bf16.mxu0 0
        %503 = vmatpush1.bf16.msra.mxu0 0
        %504 = vmatprep.subr.bf16.mxu0 0
        %505 = vmatpush1.bf16.msra.mxu0 0
        %506 = vmatprep.mubr.bf16.mxu0 0
        %507 = vmatmul.mubr.bf16.gmra.mrb[0].mxu0 %v463
        %v508 = vpop.f32.mrb[0].mxu0
        %v509 = vadd.f32 0.0, %v508
        %v510 = vpop.f32.mrb[0].mxu0
        %v511 = vpop.f32.mrb[0].mxu0
        %v512 = vadd.f32 0.0, %v511
        %v513 = vpop.f32.mrb[0].mxu0
        %514 = vmatprep.mubr.bf16.mxu0 0
        %515 = vmatmul.mubr.bf16.gmra.mrb[0].mxu0 %v466
        %v516 = vpop.f32.mrb[0].mxu0
        %v517 = vadd.f32 0.0, %v516
        %v518 = vpop.f32.mrb[0].mxu0
        %v519 = vpop.f32.mrb[0].mxu0
        %v520 = vadd.f32 0.0, %v519
        %v521 = vpop.f32.mrb[0].mxu0
        %522 = vmatprep.mubr.bf16.mxu0 0
        %523 = vmatmul.mubr.bf16.gmra.mrb[0].mxu0 %v469
        %v524 = vpop.f32.mrb[0].mxu0
        %v525 = vadd.f32 0.0, %v524
        %v526 = vpop.f32.mrb[0].mxu0
        %v527 = vpop.f32.mrb[0].mxu0
        %v528 = vadd.f32 0.0, %v527
        %v529 = vpop.f32.mrb[0].mxu0
        %530 = vmatprep.mubr.bf16.mxu0 0
        %531 = vmatmul.mubr.bf16.gmra.mrb[0].mxu0 %v472
        %v532 = vpop.f32.mrb[0].mxu0
        %v533 = vadd.f32 0.0, %v532
        %v534 = vpop.f32.mrb[0].mxu0
        %v535 = vpop.f32.mrb[0].mxu0
        %v536 = vadd.f32 0.0, %v535
        %v537 = vpop.f32.mrb[0].mxu0
        %538 = vdwg.mxu0
        %v539 = vadd.f32 %v310, %v509
        %v540 = vadd.f32 %v310, %v512
        %v541 = vadd.f32 %v310, %v517
        %v542 = vadd.f32 %v310, %v520
        %v543 = vadd.f32 %v310, %v525
        %v544 = vadd.f32 %v310, %v528
        %v545 = vadd.f32 %v310, %v533
        %v546 = vadd.f32 %v310, %v536
        %s547 = scalar_lea.vmem [#allocation2], 32
        %v548 = vld [vmem:[%s547] sm:$0xf]
        %v549 = vld [vmem:[%s547 + $0x4] sm:$0xf]
        %v550 = vld [vmem:[%s547 + $0x8] sm:$0xf]
        %v551 = vld [vmem:[%s547 + $0xc] sm:$0xf]
        %v552 = vld [vmem:[%s547 + $0x10] sm:$0xf]
        %v553 = vld [vmem:[%s547 + $0x14] sm:$0xf]
        %v554 = vld [vmem:[%s547 + $0x18] sm:$0xf]
        %v555 = vld [vmem:[%s547 + $0x1c] sm:$0xf]
        %v564 = vunpack.c.l.b16 %v548
        %v565 = vunpack.c.l.b16 %v549
        %v566 = vunpack.c.l.b16 %v550
        %v567 = vunpack.c.l.b16 %v551
        %v568 = vunpack.c.l.b16 %v552
        %v569 = vunpack.c.l.b16 %v553
        %v570 = vunpack.c.l.b16 %v554
        %v571 = vunpack.c.l.b16 %v555
        %v572 = vpack.c.b16 %v565, %v564
        %v573 = vpack.c.b16 %v567, %v566
        %v574 = vpack.c.b16 %v569, %v568
        %v575 = vpack.c.b16 %v571, %v570
        %v577 = vsel %vm363, %v572, 0
        %v580 = vsel %vm363, %v573, 0
        %v583 = vsel %vm363, %v574, 0
        %v586 = vsel %vm363, %v575, 0
        %588 = vmatprep.subr.bf16.mxu0 0
        %589 = vmatpush1.bf16.msra.mxu0 %v355
        %590 = vmatprep.subr.bf16.mxu0 0
        %591 = vmatpush1.bf16.msra.mxu0 %v356
        %592 = vmatprep.subr.bf16.mxu0 0
        %593 = vmatpush1.bf16.msra.mxu0 %v357
        %594 = vmatprep.subr.bf16.mxu0 0
        %595 = vmatpush1.bf16.msra.mxu0 %v358
        %596 = vmatprep.subr.bf16.mxu0 0
        %597 = vmatpush1.bf16.msra.mxu0 0
        %598 = vmatprep.subr.bf16.mxu0 0
        %599 = vmatpush1.bf16.msra.mxu0 0
        %600 = vmatprep.subr.bf16.mxu0 0
        %601 = vmatpush1.bf16.msra.mxu0 0
        %602 = vmatprep.subr.bf16.mxu0 0
        %603 = vmatpush1.bf16.msra.mxu0 0
        %604 = vmatprep.subr.bf16.mxu0 0
        %605 = vmatpush1.bf16.msra.mxu0 0
        %606 = vmatprep.subr.bf16.mxu0 0
        %607 = vmatpush1.bf16.msra.mxu0 0
        %608 = vmatprep.subr.bf16.mxu0 0
        %609 = vmatpush1.bf16.msra.mxu0 0
        %610 = vmatprep.subr.bf16.mxu0 0
        %611 = vmatpush1.bf16.msra.mxu0 0
        %612 = vmatprep.subr.bf16.mxu0 0
        %613 = vmatpush1.bf16.msra.mxu0 0
        %614 = vmatprep.subr.bf16.mxu0 0
        %615 = vmatpush1.bf16.msra.mxu0 0
        %616 = vmatprep.subr.bf16.mxu0 0
        %617 = vmatpush1.bf16.msra.mxu0 0
        %618 = vmatprep.subr.bf16.mxu0 0
        %619 = vmatpush1.bf16.msra.mxu0 0
        %620 = vmatprep.mubr.bf16.mxu0 0
        %621 = vmatmul.mubr.bf16.gmra.mrb[0].mxu0 %v577
        %v622 = vpop.f32.mrb[0].mxu0
        %v623 = vadd.f32 0.0, %v622
        %v624 = vpop.f32.mrb[0].mxu0
        %v625 = vpop.f32.mrb[0].mxu0
        %v626 = vadd.f32 0.0, %v625
        %v627 = vpop.f32.mrb[0].mxu0
        %628 = vmatprep.mubr.bf16.mxu0 0
        %629 = vmatmul.mubr.bf16.gmra.mrb[0].mxu0 %v580
        %v630 = vpop.f32.mrb[0].mxu0
        %v631 = vadd.f32 0.0, %v630
        %v632 = vpop.f32.mrb[0].mxu0
        %v633 = vpop.f32.mrb[0].mxu0
        %v634 = vadd.f32 0.0, %v633
        %v635 = vpop.f32.mrb[0].mxu0
        %636 = vmatprep.mubr.bf16.mxu0 0
        %637 = vmatmul.mubr.bf16.gmra.mrb[0].mxu0 %v583
        %v638 = vpop.f32.mrb[0].mxu0
        %v639 = vadd.f32 0.0, %v638
        %v640 = vpop.f32.mrb[0].mxu0
        %v641 = vpop.f32.mrb[0].mxu0
        %v642 = vadd.f32 0.0, %v641
        %v643 = vpop.f32.mrb[0].mxu0
        %644 = vmatprep.mubr.bf16.mxu0 0
        %645 = vmatmul.mubr.bf16.gmra.mrb[0].mxu0 %v586
        %v646 = vpop.f32.mrb[0].mxu0
        %v647 = vadd.f32 0.0, %v646
        %v648 = vpop.f32.mrb[0].mxu0
        %v649 = vpop.f32.mrb[0].mxu0
        %v650 = vadd.f32 0.0, %v649
        %v651 = vpop.f32.mrb[0].mxu0
        %652 = vdwg.mxu0
        %v653 = vpack.c.bf16 %v626, %v623
        %v654 = vpack.c.bf16 %v634, %v631
        %v655 = vpack.c.bf16 %v642, %v639
        %v656 = vpack.c.bf16 %v650, %v647
        %s657 = scalar_lea.vmem [#allocation5], 16
        %v658 = vld [vmem:[%s657] sm:$0xf]
        %v659 = vld [vmem:[%s657 + $0x4] sm:$0xf]
        %v660 = vld [vmem:[%s657 + $0x8] sm:$0xf]
        %v661 = vld [vmem:[%s657 + $0xc] sm:$0xf]
        %v666 = vunpack.c.l.b16 %v658
        %v667 = vunpack.c.l.b16 %v659
        %v668 = vunpack.c.l.b16 %v660
        %v669 = vunpack.c.l.b16 %v661
        %v670 = vpack.c.b16 %v667, %v666
        %v671 = vpack.c.b16 %v669, %v668
        %v675 = vsel %vm461, %v653, 0
        %v678 = vsel %vm461, %v654, 0
        %v681 = vsel %vm461, %v655, 0
        %v684 = vsel %vm461, %v656, 0
        %686 = vmatprep.subr.bf16.mxu0 0
        %687 = vmatpush1.bf16.msra.mxu0 %v670
        %688 = vmatprep.subr.bf16.mxu0 0
        %689 = vmatpush1.bf16.msra.mxu0 %v671
        %690 = vmatprep.subr.bf16.mxu0 0
        %691 = vmatpush1.bf16.msra.mxu0 0
        %692 = vmatprep.subr.bf16.mxu0 0
        %693 = vmatpush1.bf16.msra.mxu0 0
        %694 = vmatprep.subr.bf16.mxu0 0
        %695 = vmatpush1.bf16.msra.mxu0 0
        %696 = vmatprep.subr.bf16.mxu0 0
        %697 = vmatpush1.bf16.msra.mxu0 0
        %698 = vmatprep.subr.bf16.mxu0 0
        %699 = vmatpush1.bf16.msra.mxu0 0
        %700 = vmatprep.subr.bf16.mxu0 0
        %701 = vmatpush1.bf16.msra.mxu0 0
        %702 = vmatprep.subr.bf16.mxu0 0
        %703 = vmatpush1.bf16.msra.mxu0 0
        %704 = vmatprep.subr.bf16.mxu0 0
        %705 = vmatpush1.bf16.msra.mxu0 0
        %706 = vmatprep.subr.bf16.mxu0 0
        %707 = vmatpush1.bf16.msra.mxu0 0
        %708 = vmatprep.subr.bf16.mxu0 0
        %709 = vmatpush1.bf16.msra.mxu0 0
        %710 = vmatprep.subr.bf16.mxu0 0
        %711 = vmatpush1.bf16.msra.mxu0 0
        %712 = vmatprep.subr.bf16.mxu0 0
        %713 = vmatpush1.bf16.msra.mxu0 0
        %714 = vmatprep.subr.bf16.mxu0 0
        %715 = vmatpush1.bf16.msra.mxu0 0
        %716 = vmatprep.subr.bf16.mxu0 0
        %717 = vmatpush1.bf16.msra.mxu0 0
        %718 = vmatprep.mubr.bf16.mxu0 0
        %719 = vmatmul.mubr.bf16.gmra.mrb[0].mxu0 %v675
        %v720 = vpop.f32.mrb[0].mxu0
        %v721 = vadd.f32 0.0, %v720
        %v722 = vpop.f32.mrb[0].mxu0
        %v723 = vpop.f32.mrb[0].mxu0
        %v724 = vadd.f32 0.0, %v723
        %v725 = vpop.f32.mrb[0].mxu0
        %726 = vmatprep.mubr.bf16.mxu0 0
        %727 = vmatmul.mubr.bf16.gmra.mrb[0].mxu0 %v678
        %v728 = vpop.f32.mrb[0].mxu0
        %v729 = vadd.f32 0.0, %v728
        %v730 = vpop.f32.mrb[0].mxu0
        %v731 = vpop.f32.mrb[0].mxu0
        %v732 = vadd.f32 0.0, %v731
        %v733 = vpop.f32.mrb[0].mxu0
        %734 = vmatprep.mubr.bf16.mxu0 0
        %735 = vmatmul.mubr.bf16.gmra.mrb[0].mxu0 %v681
        %v736 = vpop.f32.mrb[0].mxu0
        %v737 = vadd.f32 0.0, %v736
        %v738 = vpop.f32.mrb[0].mxu0
        %v739 = vpop.f32.mrb[0].mxu0
        %v740 = vadd.f32 0.0, %v739
        %v741 = vpop.f32.mrb[0].mxu0
        %742 = vmatprep.mubr.bf16.mxu0 0
        %743 = vmatmul.mubr.bf16.gmra.mrb[0].mxu0 %v684
        %v744 = vpop.f32.mrb[0].mxu0
        %v745 = vadd.f32 0.0, %v744
        %v746 = vpop.f32.mrb[0].mxu0
        %v747 = vpop.f32.mrb[0].mxu0
        %v748 = vadd.f32 0.0, %v747
        %v749 = vpop.f32.mrb[0].mxu0
        %750 = vdwg.mxu0
        %v751 = vadd.f32 %v539, %v721
        %v752 = vadd.f32 %v540, %v724
        %v753 = vadd.f32 %v541, %v729
        %v754 = vadd.f32 %v542, %v732
        %v755 = vadd.f32 %v543, %v737
        %v756 = vadd.f32 %v544, %v740
        %v757 = vadd.f32 %v545, %v745
        %v758 = vadd.f32 %v546, %v748
        %s759 = scalar_lea.vmem [#allocation2], 64
        %v760 = vld [vmem:[%s759] sm:$0xf]
        %v761 = vld [vmem:[%s759 + $0x4] sm:$0xf]
        %v762 = vld [vmem:[%s759 + $0x8] sm:$0xf]
        %v763 = vld [vmem:[%s759 + $0xc] sm:$0xf]
        %v764 = vld [vmem:[%s759 + $0x10] sm:$0xf]
        %v765 = vld [vmem:[%s759 + $0x14] sm:$0xf]
        %v766 = vld [vmem:[%s759 + $0x18] sm:$0xf]
        %v767 = vld [vmem:[%s759 + $0x1c] sm:$0xf]
        %v776 = vunpack.c.l.b16 %v760
        %v777 = vunpack.c.l.b16 %v761
        %v778 = vunpack.c.l.b16 %v762
        %v779 = vunpack.c.l.b16 %v763
        %v780 = vunpack.c.l.b16 %v764
        %v781 = vunpack.c.l.b16 %v765
        %v782 = vunpack.c.l.b16 %v766
        %v783 = vunpack.c.l.b16 %v767
        %v784 = vpack.c.b16 %v777, %v776
        %v785 = vpack.c.b16 %v779, %v778
        %v786 = vpack.c.b16 %v781, %v780
        %v787 = vpack.c.b16 %v783, %v782
        %v789 = vsel %vm363, %v784, 0
        %v792 = vsel %vm363, %v785, 0
        %v795 = vsel %vm363, %v786, 0
        %v798 = vsel %vm363, %v787, 0
        %800 = vmatprep.subr.bf16.mxu0 0
        %801 = vmatpush1.bf16.msra.mxu0 %v355
        %802 = vmatprep.subr.bf16.mxu0 0
        %803 = vmatpush1.bf16.msra.mxu0 %v356
        %804 = vmatprep.subr.bf16.mxu0 0
        %805 = vmatpush1.bf16.msra.mxu0 %v357
        %806 = vmatprep.subr.bf16.mxu0 0
        %807 = vmatpush1.bf16.msra.mxu0 %v358
        %808 = vmatprep.subr.bf16.mxu0 0
        %809 = vmatpush1.bf16.msra.mxu0 0
        %810 = vmatprep.subr.bf16.mxu0 0
        %811 = vmatpush1.bf16.msra.mxu0 0
        %812 = vmatprep.subr.bf16.mxu0 0
        %813 = vmatpush1.bf16.msra.mxu0 0
        %814 = vmatprep.subr.bf16.mxu0 0
        %815 = vmatpush1.bf16.msra.mxu0 0
        %816 = vmatprep.subr.bf16.mxu0 0
        %817 = vmatpush1.bf16.msra.mxu0 0
        %818 = vmatprep.subr.bf16.mxu0 0
        %819 = vmatpush1.bf16.msra.mxu0 0
        %820 = vmatprep.subr.bf16.mxu0 0
        %821 = vmatpush1.bf16.msra.mxu0 0
        %822 = vmatprep.subr.bf16.mxu0 0
        %823 = vmatpush1.bf16.msra.mxu0 0
        %824 = vmatprep.subr.bf16.mxu0 0
        %825 = vmatpush1.bf16.msra.mxu0 0
        %826 = vmatprep.subr.bf16.mxu0 0
        %827 = vmatpush1.bf16.msra.mxu0 0
        %828 = vmatprep.subr.bf16.mxu0 0
        %829 = vmatpush1.bf16.msra.mxu0 0
        %830 = vmatprep.subr.bf16.mxu0 0
        %831 = vmatpush1.bf16.msra.mxu0 0
        %832 = vmatprep.mubr.bf16.mxu0 0
        %833 = vmatmul.mubr.bf16.gmra.mrb[0].mxu0 %v789
        %v834 = vpop.f32.mrb[0].mxu0
        %v835 = vadd.f32 0.0, %v834
        %v836 = vpop.f32.mrb[0].mxu0
        %v837 = vpop.f32.mrb[0].mxu0
        %v838 = vadd.f32 0.0, %v837
        %v839 = vpop.f32.mrb[0].mxu0
        %840 = vmatprep.mubr.bf16.mxu0 0
        %841 = vmatmul.mubr.bf16.gmra.mrb[0].mxu0 %v792
        %v842 = vpop.f32.mrb[0].mxu0
        %v843 = vadd.f32 0.0, %v842
        %v844 = vpop.f32.mrb[0].mxu0
        %v845 = vpop.f32.mrb[0].mxu0
        %v846 = vadd.f32 0.0, %v845
        %v847 = vpop.f32.mrb[0].mxu0
        %848 = vmatprep.mubr.bf16.mxu0 0
        %849 = vmatmul.mubr.bf16.gmra.mrb[0].mxu0 %v795
        %v850 = vpop.f32.mrb[0].mxu0
        %v851 = vadd.f32 0.0, %v850
        %v852 = vpop.f32.mrb[0].mxu0
        %v853 = vpop.f32.mrb[0].mxu0
        %v854 = vadd.f32 0.0, %v853
        %v855 = vpop.f32.mrb[0].mxu0
        %856 = vmatprep.mubr.bf16.mxu0 0
        %857 = vmatmul.mubr.bf16.gmra.mrb[0].mxu0 %v798
        %v858 = vpop.f32.mrb[0].mxu0
        %v859 = vadd.f32 0.0, %v858
        %v860 = vpop.f32.mrb[0].mxu0
        %v861 = vpop.f32.mrb[0].mxu0
        %v862 = vadd.f32 0.0, %v861
        %v863 = vpop.f32.mrb[0].mxu0
        %864 = vdwg.mxu0
        %v865 = vpack.c.bf16 %v838, %v835
        %v866 = vpack.c.bf16 %v846, %v843
        %v867 = vpack.c.bf16 %v854, %v851
        %v868 = vpack.c.bf16 %v862, %v859
        %s869 = scalar_lea.vmem [#allocation5], 32
        %v870 = vld [vmem:[%s869] sm:$0xf]
        %v871 = vld [vmem:[%s869 + $0x4] sm:$0xf]
        %v872 = vld [vmem:[%s869 + $0x8] sm:$0xf]
        %v873 = vld [vmem:[%s869 + $0xc] sm:$0xf]
        %v878 = vunpack.c.l.b16 %v870
        %v879 = vunpack.c.l.b16 %v871
        %v880 = vunpack.c.l.b16 %v872
        %v881 = vunpack.c.l.b16 %v873
        %v882 = vpack.c.b16 %v879, %v878
        %v883 = vpack.c.b16 %v881, %v880
        %v887 = vsel %vm461, %v865, 0
        %v890 = vsel %vm461, %v866, 0
        %v893 = vsel %vm461, %v867, 0
        %v896 = vsel %vm461, %v868, 0
        %898 = vmatprep.subr.bf16.mxu0 0
        %899 = vmatpush1.bf16.msra.mxu0 %v882
        %900 = vmatprep.subr.bf16.mxu0 0
        %901 = vmatpush1.bf16.msra.mxu0 %v883
        %902 = vmatprep.subr.bf16.mxu0 0
        %903 = vmatpush1.bf16.msra.mxu0 0
        %904 = vmatprep.subr.bf16.mxu0 0
        %905 = vmatpush1.bf16.msra.mxu0 0
        %906 = vmatprep.subr.bf16.mxu0 0
        %907 = vmatpush1.bf16.msra.mxu0 0
        %908 = vmatprep.subr.bf16.mxu0 0
        %909 = vmatpush1.bf16.msra.mxu0 0
        %910 = vmatprep.subr.bf16.mxu0 0
        %911 = vmatpush1.bf16.msra.mxu0 0
        %912 = vmatprep.subr.bf16.mxu0 0
        %913 = vmatpush1.bf16.msra.mxu0 0
        %914 = vmatprep.subr.bf16.mxu0 0
        %915 = vmatpush1.bf16.msra.mxu0 0
        %916 = vmatprep.subr.bf16.mxu0 0
        %917 = vmatpush1.bf16.msra.mxu0 0
        %918 = vmatprep.subr.bf16.mxu0 0
        %919 = vmatpush1.bf16.msra.mxu0 0
        %920 = vmatprep.subr.bf16.mxu0 0
        %921 = vmatpush1.bf16.msra.mxu0 0
        %922 = vmatprep.subr.bf16.mxu0 0
        %923 = vmatpush1.bf16.msra.mxu0 0
        %924 = vmatprep.subr.bf16.mxu0 0
        %925 = vmatpush1.bf16.msra.mxu0 0
        %926 = vmatprep.subr.bf16.mxu0 0
        %927 = vmatpush1.bf16.msra.mxu0 0
        %928 = vmatprep.subr.bf16.mxu0 0
        %929 = vmatpush1.bf16.msra.mxu0 0
        %930 = vmatprep.mubr.bf16.mxu0 0
        %931 = vmatmul.mubr.bf16.gmra.mrb[0].mxu0 %v887
        %v932 = vpop.f32.mrb[0].mxu0
        %v933 = vadd.f32 0.0, %v932
        %v934 = vpop.f32.mrb[0].mxu0
        %v935 = vpop.f32.mrb[0].mxu0
        %v936 = vadd.f32 0.0, %v935
        %v937 = vpop.f32.mrb[0].mxu0
        %938 = vmatprep.mubr.bf16.mxu0 0
        %939 = vmatmul.mubr.bf16.gmra.mrb[0].mxu0 %v890
        %v940 = vpop.f32.mrb[0].mxu0
        %v941 = vadd.f32 0.0, %v940
        %v942 = vpop.f32.mrb[0].mxu0
        %v943 = vpop.f32.mrb[0].mxu0
        %v944 = vadd.f32 0.0, %v943
        %v945 = vpop.f32.mrb[0].mxu0
        %946 = vmatprep.mubr.bf16.mxu0 0
        %947 = vmatmul.mubr.bf16.gmra.mrb[0].mxu0 %v893
        %v948 = vpop.f32.mrb[0].mxu0
        %v949 = vadd.f32 0.0, %v948
        %v950 = vpop.f32.mrb[0].mxu0
        %v951 = vpop.f32.mrb[0].mxu0
        %v952 = vadd.f32 0.0, %v951
        %v953 = vpop.f32.mrb[0].mxu0
        %954 = vmatprep.mubr.bf16.mxu0 0
        %955 = vmatmul.mubr.bf16.gmra.mrb[0].mxu0 %v896
        %v956 = vpop.f32.mrb[0].mxu0
        %v957 = vadd.f32 0.0, %v956
        %v958 = vpop.f32.mrb[0].mxu0
        %v959 = vpop.f32.mrb[0].mxu0
        %v960 = vadd.f32 0.0, %v959
        %v961 = vpop.f32.mrb[0].mxu0
        %962 = vdwg.mxu0
        %v963 = vadd.f32 %v751, %v933
        %v964 = vadd.f32 %v752, %v936
        %v965 = vadd.f32 %v753, %v941
        %v966 = vadd.f32 %v754, %v944
        %v967 = vadd.f32 %v755, %v949
        %v968 = vadd.f32 %v756, %v952
        %v969 = vadd.f32 %v757, %v957
        %v970 = vadd.f32 %v758, %v960
        %s971 = scalar_lea.vmem [#allocation2], 96
        %v972 = vld [vmem:[%s971] sm:$0xf]
        %v973 = vld [vmem:[%s971 + $0x4] sm:$0xf]
        %v974 = vld [vmem:[%s971 + $0x8] sm:$0xf]
        %v975 = vld [vmem:[%s971 + $0xc] sm:$0xf]
        %v976 = vld [vmem:[%s971 + $0x10] sm:$0xf]
        %v977 = vld [vmem:[%s971 + $0x14] sm:$0xf]
        %v978 = vld [vmem:[%s971 + $0x18] sm:$0xf]
        %v979 = vld [vmem:[%s971 + $0x1c] sm:$0xf]
        %v988 = vunpack.c.l.b16 %v972
        %v989 = vunpack.c.l.b16 %v973
        %v990 = vunpack.c.l.b16 %v974
        %v991 = vunpack.c.l.b16 %v975
        %v992 = vunpack.c.l.b16 %v976
        %v993 = vunpack.c.l.b16 %v977
        %v994 = vunpack.c.l.b16 %v978
        %v995 = vunpack.c.l.b16 %v979
        %v996 = vpack.c.b16 %v989, %v988
        %v997 = vpack.c.b16 %v991, %v990
        %v998 = vpack.c.b16 %v993, %v992
        %v999 = vpack.c.b16 %v995, %v994
        %v1001 = vsel %vm363, %v996, 0
        %v1004 = vsel %vm363, %v997, 0
        %v1007 = vsel %vm363, %v998, 0
        %v1010 = vsel %vm363, %v999, 0
        %1012 = vmatprep.subr.bf16.mxu0 0
        %1013 = vmatpush1.bf16.msra.mxu0 %v355
        %1014 = vmatprep.subr.bf16.mxu0 0
        %1015 = vmatpush1.bf16.msra.mxu0 %v356
        %1016 = vmatprep.subr.bf16.mxu0 0
        %1017 = vmatpush1.bf16.msra.mxu0 %v357
        %1018 = vmatprep.subr.bf16.mxu0 0
        %1019 = vmatpush1.bf16.msra.mxu0 %v358
        %1020 = vmatprep.subr.bf16.mxu0 0
        %1021 = vmatpush1.bf16.msra.mxu0 0
        %1022 = vmatprep.subr.bf16.mxu0 0
        %1023 = vmatpush1.bf16.msra.mxu0 0
        %1024 = vmatprep.subr.bf16.mxu0 0
        %1025 = vmatpush1.bf16.msra.mxu0 0
        %1026 = vmatprep.subr.bf16.mxu0 0
        %1027 = vmatpush1.bf16.msra.mxu0 0
        %1028 = vmatprep.subr.bf16.mxu0 0
        %1029 = vmatpush1.bf16.msra.mxu0 0
        %1030 = vmatprep.subr.bf16.mxu0 0
        %1031 = vmatpush1.bf16.msra.mxu0 0
        %1032 = vmatprep.subr.bf16.mxu0 0
        %1033 = vmatpush1.bf16.msra.mxu0 0
        %1034 = vmatprep.subr.bf16.mxu0 0
        %1035 = vmatpush1.bf16.msra.mxu0 0
        %1036 = vmatprep.subr.bf16.mxu0 0
        %1037 = vmatpush1.bf16.msra.mxu0 0
        %1038 = vmatprep.subr.bf16.mxu0 0
        %1039 = vmatpush1.bf16.msra.mxu0 0
        %1040 = vmatprep.subr.bf16.mxu0 0
        %1041 = vmatpush1.bf16.msra.mxu0 0
        %1042 = vmatprep.subr.bf16.mxu0 0
        %1043 = vmatpush1.bf16.msra.mxu0 0
        %1044 = vmatprep.mubr.bf16.mxu0 0
        %1045 = vmatmul.mubr.bf16.gmra.mrb[0].mxu0 %v1001
        %v1046 = vpop.f32.mrb[0].mxu0
        %v1047 = vadd.f32 0.0, %v1046
        %v1048 = vpop.f32.mrb[0].mxu0
        %v1049 = vpop.f32.mrb[0].mxu0
        %v1050 = vadd.f32 0.0, %v1049
        %v1051 = vpop.f32.mrb[0].mxu0
        %1052 = vmatprep.mubr.bf16.mxu0 0
        %1053 = vmatmul.mubr.bf16.gmra.mrb[0].mxu0 %v1004
        %v1054 = vpop.f32.mrb[0].mxu0
        %v1055 = vadd.f32 0.0, %v1054
        %v1056 = vpop.f32.mrb[0].mxu0
        %v1057 = vpop.f32.mrb[0].mxu0
        %v1058 = vadd.f32 0.0, %v1057
        %v1059 = vpop.f32.mrb[0].mxu0
        %1060 = vmatprep.mubr.bf16.mxu0 0
        %1061 = vmatmul.mubr.bf16.gmra.mrb[0].mxu0 %v1007
        %v1062 = vpop.f32.mrb[0].mxu0
        %v1063 = vadd.f32 0.0, %v1062
        %v1064 = vpop.f32.mrb[0].mxu0
        %v1065 = vpop.f32.mrb[0].mxu0
        %v1066 = vadd.f32 0.0, %v1065
        %v1067 = vpop.f32.mrb[0].mxu0
        %1068 = vmatprep.mubr.bf16.mxu0 0
        %1069 = vmatmul.mubr.bf16.gmra.mrb[0].mxu0 %v1010
        %v1070 = vpop.f32.mrb[0].mxu0
        %v1071 = vadd.f32 0.0, %v1070
        %v1072 = vpop.f32.mrb[0].mxu0
        %v1073 = vpop.f32.mrb[0].mxu0
        %v1074 = vadd.f32 0.0, %v1073
        %v1075 = vpop.f32.mrb[0].mxu0
        %1076 = vdwg.mxu0
        %v1077 = vpack.c.bf16 %v1050, %v1047
        %v1078 = vpack.c.bf16 %v1058, %v1055
        %v1079 = vpack.c.bf16 %v1066, %v1063
        %v1080 = vpack.c.bf16 %v1074, %v1071
        %s1081 = scalar_lea.vmem [#allocation5], 48
        %v1082 = vld [vmem:[%s1081] sm:$0xf]
        %v1083 = vld [vmem:[%s1081 + $0x4] sm:$0xf]
        %v1084 = vld [vmem:[%s1081 + $0x8] sm:$0xf]
        %v1085 = vld [vmem:[%s1081 + $0xc] sm:$0xf]
        %v1090 = vunpack.c.l.b16 %v1082
        %v1091 = vunpack.c.l.b16 %v1083
        %v1092 = vunpack.c.l.b16 %v1084
        %v1093 = vunpack.c.l.b16 %v1085
        %v1094 = vpack.c.b16 %v1091, %v1090
        %v1095 = vpack.c.b16 %v1093, %v1092
        %v1099 = vsel %vm461, %v1077, 0
        %v1102 = vsel %vm461, %v1078, 0
        %v1105 = vsel %vm461, %v1079, 0
        %v1108 = vsel %vm461, %v1080, 0
        %1110 = vmatprep.subr.bf16.mxu0 0
        %1111 = vmatpush1.bf16.msra.mxu0 %v1094
        %1112 = vmatprep.subr.bf16.mxu0 0
        %1113 = vmatpush1.bf16.msra.mxu0 %v1095
        %1114 = vmatprep.subr.bf16.mxu0 0
        %1115 = vmatpush1.bf16.msra.mxu0 0
        %1116 = vmatprep.subr.bf16.mxu0 0
        %1117 = vmatpush1.bf16.msra.mxu0 0
        %1118 = vmatprep.subr.bf16.mxu0 0
        %1119 = vmatpush1.bf16.msra.mxu0 0
        %1120 = vmatprep.subr.bf16.mxu0 0
        %1121 = vmatpush1.bf16.msra.mxu0 0
        %1122 = vmatprep.subr.bf16.mxu0 0
        %1123 = vmatpush1.bf16.msra.mxu0 0
        %1124 = vmatprep.subr.bf16.mxu0 0
        %1125 = vmatpush1.bf16.msra.mxu0 0
        %1126 = vmatprep.subr.bf16.mxu0 0
        %1127 = vmatpush1.bf16.msra.mxu0 0
        %1128 = vmatprep.subr.bf16.mxu0 0
        %1129 = vmatpush1.bf16.msra.mxu0 0
        %1130 = vmatprep.subr.bf16.mxu0 0
        %1131 = vmatpush1.bf16.msra.mxu0 0
        %1132 = vmatprep.subr.bf16.mxu0 0
        %1133 = vmatpush1.bf16.msra.mxu0 0
        %1134 = vmatprep.subr.bf16.mxu0 0
        %1135 = vmatpush1.bf16.msra.mxu0 0
        %1136 = vmatprep.subr.bf16.mxu0 0
        %1137 = vmatpush1.bf16.msra.mxu0 0
        %1138 = vmatprep.subr.bf16.mxu0 0
        %1139 = vmatpush1.bf16.msra.mxu0 0
        %1140 = vmatprep.subr.bf16.mxu0 0
        %1141 = vmatpush1.bf16.msra.mxu0 0
        %1142 = vmatprep.mubr.bf16.mxu0 0
        %1143 = vmatmul.mubr.bf16.gmra.mrb[0].mxu0 %v1099
        %v1144 = vpop.f32.mrb[0].mxu0
        %v1145 = vadd.f32 0.0, %v1144
        %v1146 = vpop.f32.mrb[0].mxu0
        %v1147 = vpop.f32.mrb[0].mxu0
        %v1148 = vadd.f32 0.0, %v1147
        %v1149 = vpop.f32.mrb[0].mxu0
        %1150 = vmatprep.mubr.bf16.mxu0 0
        %1151 = vmatmul.mubr.bf16.gmra.mrb[0].mxu0 %v1102
        %v1152 = vpop.f32.mrb[0].mxu0
        %v1153 = vadd.f32 0.0, %v1152
        %v1154 = vpop.f32.mrb[0].mxu0
        %v1155 = vpop.f32.mrb[0].mxu0
        %v1156 = vadd.f32 0.0, %v1155
        %v1157 = vpop.f32.mrb[0].mxu0
        %1158 = vmatprep.mubr.bf16.mxu0 0
        %1159 = vmatmul.mubr.bf16.gmra.mrb[0].mxu0 %v1105
        %v1160 = vpop.f32.mrb[0].mxu0
        %v1161 = vadd.f32 0.0, %v1160
        %v1162 = vpop.f32.mrb[0].mxu0
        %v1163 = vpop.f32.mrb[0].mxu0
        %v1164 = vadd.f32 0.0, %v1163
        %v1165 = vpop.f32.mrb[0].mxu0
        %1166 = vmatprep.mubr.bf16.mxu0 0
        %1167 = vmatmul.mubr.bf16.gmra.mrb[0].mxu0 %v1108
        %v1168 = vpop.f32.mrb[0].mxu0
        %v1169 = vadd.f32 0.0, %v1168
        %v1170 = vpop.f32.mrb[0].mxu0
        %v1171 = vpop.f32.mrb[0].mxu0
        %v1172 = vadd.f32 0.0, %v1171
        %v1173 = vpop.f32.mrb[0].mxu0
        %1174 = vdwg.mxu0
        %v1175 = vadd.f32 %v963, %v1145
        %v1176 = vadd.f32 %v964, %v1148
        %v1177 = vadd.f32 %v965, %v1153
        %v1178 = vadd.f32 %v966, %v1156
        %v1179 = vadd.f32 %v967, %v1161
        %v1180 = vadd.f32 %v968, %v1164
        %v1181 = vadd.f32 %v969, %v1169
        %v1182 = vadd.f32 %v970, %v1172
        %s1183 = scalar_lea.vmem [#allocation5], 64
        %v1184 = vld [vmem:[%s1183] sm:$0xf]
        %v1185 = vld [vmem:[%s1183 + $0x4] sm:$0xf]
        %v1186 = vld [vmem:[%s1183 + $0x8] sm:$0xf]
        %v1187 = vld [vmem:[%s1183 + $0xc] sm:$0xf]
        %v1192 = vunpack.c.l.b16 %v1184
        %v1193 = vunpack.c.l.b16 %v1185
        %v1194 = vunpack.c.l.b16 %v1186
        %v1195 = vunpack.c.l.b16 %v1187
        %v1196 = vpack.c.b16 %v1193, %v1192
        %v1197 = vpack.c.b16 %v1195, %v1194
        %v1201 = vsel %vm461, %v355, 0
        %v1204 = vsel %vm461, %v356, 0
        %v1207 = vsel %vm461, %v357, 0
        %v1210 = vsel %vm461, %v358, 0
        %1212 = vmatprep.subr.bf16.mxu0 0
        %1213 = vmatpush1.bf16.msra.mxu0 %v1196
        %1214 = vmatprep.subr.bf16.mxu0 0
        %1215 = vmatpush1.bf16.msra.mxu0 %v1197
        %1216 = vmatprep.subr.bf16.mxu0 0
        %1217 = vmatpush1.bf16.msra.mxu0 0
        %1218 = vmatprep.subr.bf16.mxu0 0
        %1219 = vmatpush1.bf16.msra.mxu0 0
        %1220 = vmatprep.subr.bf16.mxu0 0
        %1221 = vmatpush1.bf16.msra.mxu0 0
        %1222 = vmatprep.subr.bf16.mxu0 0
        %1223 = vmatpush1.bf16.msra.mxu0 0
        %1224 = vmatprep.subr.bf16.mxu0 0
        %1225 = vmatpush1.bf16.msra.mxu0 0
        %1226 = vmatprep.subr.bf16.mxu0 0
        %1227 = vmatpush1.bf16.msra.mxu0 0
        %1228 = vmatprep.subr.bf16.mxu0 0
        %1229 = vmatpush1.bf16.msra.mxu0 0
        %1230 = vmatprep.subr.bf16.mxu0 0
        %1231 = vmatpush1.bf16.msra.mxu0 0
        %1232 = vmatprep.subr.bf16.mxu0 0
        %1233 = vmatpush1.bf16.msra.mxu0 0
        %1234 = vmatprep.subr.bf16.mxu0 0
        %1235 = vmatpush1.bf16.msra.mxu0 0
        %1236 = vmatprep.subr.bf16.mxu0 0
        %1237 = vmatpush1.bf16.msra.mxu0 0
        %1238 = vmatprep.subr.bf16.mxu0 0
        %1239 = vmatpush1.bf16.msra.mxu0 0
        %1240 = vmatprep.subr.bf16.mxu0 0
        %1241 = vmatpush1.bf16.msra.mxu0 0
        %1242 = vmatprep.subr.bf16.mxu0 0
        %1243 = vmatpush1.bf16.msra.mxu0 0
        %1244 = vmatprep.mubr.bf16.mxu0 0
        %1245 = vmatmul.mubr.bf16.gmra.mrb[0].mxu0 %v1201
        %v1246 = vpop.f32.mrb[0].mxu0
        %v1247 = vadd.f32 0.0, %v1246
        %v1248 = vpop.f32.mrb[0].mxu0
        %v1249 = vpop.f32.mrb[0].mxu0
        %v1250 = vadd.f32 0.0, %v1249
        %v1251 = vpop.f32.mrb[0].mxu0
        %1252 = vmatprep.mubr.bf16.mxu0 0
        %1253 = vmatmul.mubr.bf16.gmra.mrb[0].mxu0 %v1204
        %v1254 = vpop.f32.mrb[0].mxu0
        %v1255 = vadd.f32 0.0, %v1254
        %v1256 = vpop.f32.mrb[0].mxu0
        %v1257 = vpop.f32.mrb[0].mxu0
        %v1258 = vadd.f32 0.0, %v1257
        %v1259 = vpop.f32.mrb[0].mxu0
        %1260 = vmatprep.mubr.bf16.mxu0 0
        %1261 = vmatmul.mubr.bf16.gmra.mrb[0].mxu0 %v1207
        %v1262 = vpop.f32.mrb[0].mxu0
        %v1263 = vadd.f32 0.0, %v1262
        %v1264 = vpop.f32.mrb[0].mxu0
        %v1265 = vpop.f32.mrb[0].mxu0
        %v1266 = vadd.f32 0.0, %v1265
        %v1267 = vpop.f32.mrb[0].mxu0
        %1268 = vmatprep.mubr.bf16.mxu0 0
        %1269 = vmatmul.mubr.bf16.gmra.mrb[0].mxu0 %v1210
        %v1270 = vpop.f32.mrb[0].mxu0
        %v1271 = vadd.f32 0.0, %v1270
        %v1272 = vpop.f32.mrb[0].mxu0
        %v1273 = vpop.f32.mrb[0].mxu0
        %v1274 = vadd.f32 0.0, %v1273
        %v1275 = vpop.f32.mrb[0].mxu0
        %1276 = vdwg.mxu0
        %v1277 = vadd.f32 %v1175, %v1247
        %v1278 = vadd.f32 %v1176, %v1250
        %v1279 = vadd.f32 %v1177, %v1255
        %v1280 = vadd.f32 %v1178, %v1258
        %v1281 = vadd.f32 %v1179, %v1263
        %v1282 = vadd.f32 %v1180, %v1266
        %v1283 = vadd.f32 %v1181, %v1271
        %v1284 = vadd.f32 %v1182, %v1274
        %s1285 = scalar_lea.vmem [#allocation2], 160
        %v1286 = vld [vmem:[%s1285] sm:$0xf]
        %v1287 = vld [vmem:[%s1285 + $0x4] sm:$0xf]
        %v1288 = vld [vmem:[%s1285 + $0x8] sm:$0xf]
        %v1289 = vld [vmem:[%s1285 + $0xc] sm:$0xf]
        %v1290 = vld [vmem:[%s1285 + $0x10] sm:$0xf]
        %v1291 = vld [vmem:[%s1285 + $0x14] sm:$0xf]
        %v1292 = vld [vmem:[%s1285 + $0x18] sm:$0xf]
        %v1293 = vld [vmem:[%s1285 + $0x1c] sm:$0xf]
        %v1302 = vunpack.c.l.b16 %v1286
        %v1303 = vunpack.c.l.b16 %v1287
        %v1304 = vunpack.c.l.b16 %v1288
        %v1305 = vunpack.c.l.b16 %v1289
        %v1306 = vunpack.c.l.b16 %v1290
        %v1307 = vunpack.c.l.b16 %v1291
        %v1308 = vunpack.c.l.b16 %v1292
        %v1309 = vunpack.c.l.b16 %v1293
        %v1310 = vpack.c.b16 %v1303, %v1302
        %v1311 = vpack.c.b16 %v1305, %v1304
        %v1312 = vpack.c.b16 %v1307, %v1306
        %v1313 = vpack.c.b16 %v1309, %v1308
        %v1315 = vsel %vm363, %v1310, 0
        %v1318 = vsel %vm363, %v1311, 0
        %v1321 = vsel %vm363, %v1312, 0
        %v1324 = vsel %vm363, %v1313, 0
        %1326 = vmatprep.subr.bf16.mxu0 0
        %1327 = vmatpush1.bf16.msra.mxu0 %v355
        %1328 = vmatprep.subr.bf16.mxu0 0
        %1329 = vmatpush1.bf16.msra.mxu0 %v356
        %1330 = vmatprep.subr.bf16.mxu0 0
        %1331 = vmatpush1.bf16.msra.mxu0 %v357
        %1332 = vmatprep.subr.bf16.mxu0 0
        %1333 = vmatpush1.bf16.msra.mxu0 %v358
        %1334 = vmatprep.subr.bf16.mxu0 0
        %1335 = vmatpush1.bf16.msra.mxu0 0
        %1336 = vmatprep.subr.bf16.mxu0 0
        %1337 = vmatpush1.bf16.msra.mxu0 0
        %1338 = vmatprep.subr.bf16.mxu0 0
        %1339 = vmatpush1.bf16.msra.mxu0 0
        %1340 = vmatprep.subr.bf16.mxu0 0
        %1341 = vmatpush1.bf16.msra.mxu0 0
        %1342 = vmatprep.subr.bf16.mxu0 0
        %1343 = vmatpush1.bf16.msra.mxu0 0
        %1344 = vmatprep.subr.bf16.mxu0 0
        %1345 = vmatpush1.bf16.msra.mxu0 0
        %1346 = vmatprep.subr.bf16.mxu0 0
        %1347 = vmatpush1.bf16.msra.mxu0 0
        %1348 = vmatprep.subr.bf16.mxu0 0
        %1349 = vmatpush1.bf16.msra.mxu0 0
        %1350 = vmatprep.subr.bf16.mxu0 0
        %1351 = vmatpush1.bf16.msra.mxu0 0
        %1352 = vmatprep.subr.bf16.mxu0 0
        %1353 = vmatpush1.bf16.msra.mxu0 0
        %1354 = vmatprep.subr.bf16.mxu0 0
        %1355 = vmatpush1.bf16.msra.mxu0 0
        %1356 = vmatprep.subr.bf16.mxu0 0
        %1357 = vmatpush1.bf16.msra.mxu0 0
        %1358 = vmatprep.mubr.bf16.mxu0 0
        %1359 = vmatmul.mubr.bf16.gmra.mrb[0].mxu0 %v1315
        %v1360 = vpop.f32.mrb[0].mxu0
        %v1361 = vadd.f32 0.0, %v1360
        %v1362 = vpop.f32.mrb[0].mxu0
        %v1363 = vpop.f32.mrb[0].mxu0
        %v1364 = vadd.f32 0.0, %v1363
        %v1365 = vpop.f32.mrb[0].mxu0
        %1366 = vmatprep.mubr.bf16.mxu0 0
        %1367 = vmatmul.mubr.bf16.gmra.mrb[0].mxu0 %v1318
        %v1368 = vpop.f32.mrb[0].mxu0
        %v1369 = vadd.f32 0.0, %v1368
        %v1370 = vpop.f32.mrb[0].mxu0
        %v1371 = vpop.f32.mrb[0].mxu0
        %v1372 = vadd.f32 0.0, %v1371
        %v1373 = vpop.f32.mrb[0].mxu0
        %1374 = vmatprep.mubr.bf16.mxu0 0
        %1375 = vmatmul.mubr.bf16.gmra.mrb[0].mxu0 %v1321
        %v1376 = vpop.f32.mrb[0].mxu0
        %v1377 = vadd.f32 0.0, %v1376
        %v1378 = vpop.f32.mrb[0].mxu0
        %v1379 = vpop.f32.mrb[0].mxu0
        %v1380 = vadd.f32 0.0, %v1379
        %v1381 = vpop.f32.mrb[0].mxu0
        %1382 = vmatprep.mubr.bf16.mxu0 0
        %1383 = vmatmul.mubr.bf16.gmra.mrb[0].mxu0 %v1324
        %v1384 = vpop.f32.mrb[0].mxu0
        %v1385 = vadd.f32 0.0, %v1384
        %v1386 = vpop.f32.mrb[0].mxu0
        %v1387 = vpop.f32.mrb[0].mxu0
        %v1388 = vadd.f32 0.0, %v1387
        %v1389 = vpop.f32.mrb[0].mxu0
        %1390 = vdwg.mxu0
        %v1391 = vpack.c.bf16 %v1364, %v1361
        %v1392 = vpack.c.bf16 %v1372, %v1369
        %v1393 = vpack.c.bf16 %v1380, %v1377
        %v1394 = vpack.c.bf16 %v1388, %v1385
        %s1395 = scalar_lea.vmem [#allocation5], 80
        %v1396 = vld [vmem:[%s1395] sm:$0xf]
        %v1397 = vld [vmem:[%s1395 + $0x4] sm:$0xf]
        %v1398 = vld [vmem:[%s1395 + $0x8] sm:$0xf]
        %v1399 = vld [vmem:[%s1395 + $0xc] sm:$0xf]
        %v1404 = vunpack.c.l.b16 %v1396
        %v1405 = vunpack.c.l.b16 %v1397
        %v1406 = vunpack.c.l.b16 %v1398
        %v1407 = vunpack.c.l.b16 %v1399
        %v1408 = vpack.c.b16 %v1405, %v1404
        %v1409 = vpack.c.b16 %v1407, %v1406
        %v1413 = vsel %vm461, %v1391, 0
        %v1416 = vsel %vm461, %v1392, 0
        %v1419 = vsel %vm461, %v1393, 0
        %v1422 = vsel %vm461, %v1394, 0
        %1424 = vmatprep.subr.bf16.mxu0 0
        %1425 = vmatpush1.bf16.msra.mxu0 %v1408
        %1426 = vmatprep.subr.bf16.mxu0 0
        %1427 = vmatpush1.bf16.msra.mxu0 %v1409
        %1428 = vmatprep.subr.bf16.mxu0 0
        %1429 = vmatpush1.bf16.msra.mxu0 0
        %1430 = vmatprep.subr.bf16.mxu0 0
        %1431 = vmatpush1.bf16.msra.mxu0 0
        %1432 = vmatprep.subr.bf16.mxu0 0
        %1433 = vmatpush1.bf16.msra.mxu0 0
        %1434 = vmatprep.subr.bf16.mxu0 0
        %1435 = vmatpush1.bf16.msra.mxu0 0
        %1436 = vmatprep.subr.bf16.mxu0 0
        %1437 = vmatpush1.bf16.msra.mxu0 0
        %1438 = vmatprep.subr.bf16.mxu0 0
        %1439 = vmatpush1.bf16.msra.mxu0 0
        %1440 = vmatprep.subr.bf16.mxu0 0
        %1441 = vmatpush1.bf16.msra.mxu0 0
        %1442 = vmatprep.subr.bf16.mxu0 0
        %1443 = vmatpush1.bf16.msra.mxu0 0
        %1444 = vmatprep.subr.bf16.mxu0 0
        %1445 = vmatpush1.bf16.msra.mxu0 0
        %1446 = vmatprep.subr.bf16.mxu0 0
        %1447 = vmatpush1.bf16.msra.mxu0 0
        %1448 = vmatprep.subr.bf16.mxu0 0
        %1449 = vmatpush1.bf16.msra.mxu0 0
        %1450 = vmatprep.subr.bf16.mxu0 0
        %1451 = vmatpush1.bf16.msra.mxu0 0
        %1452 = vmatprep.subr.bf16.mxu0 0
        %1453 = vmatpush1.bf16.msra.mxu0 0
        %1454 = vmatprep.subr.bf16.mxu0 0
        %1455 = vmatpush1.bf16.msra.mxu0 0
        %1456 = vmatprep.mubr.bf16.mxu0 0
        %1457 = vmatmul.mubr.bf16.gmra.mrb[0].mxu0 %v1413
        %v1458 = vpop.f32.mrb[0].mxu0
        %v1459 = vadd.f32 0.0, %v1458
        %v1460 = vpop.f32.mrb[0].mxu0
        %v1461 = vpop.f32.mrb[0].mxu0
        %v1462 = vadd.f32 0.0, %v1461
        %v1463 = vpop.f32.mrb[0].mxu0
        %1464 = vmatprep.mubr.bf16.mxu0 0
        %1465 = vmatmul.mubr.bf16.gmra.mrb[0].mxu0 %v1416
        %v1466 = vpop.f32.mrb[0].mxu0
        %v1467 = vadd.f32 0.0, %v1466
        %v1468 = vpop.f32.mrb[0].mxu0
        %v1469 = vpop.f32.mrb[0].mxu0
        %v1470 = vadd.f32 0.0, %v1469
        %v1471 = vpop.f32.mrb[0].mxu0
        %1472 = vmatprep.mubr.bf16.mxu0 0
        %1473 = vmatmul.mubr.bf16.gmra.mrb[0].mxu0 %v1419
        %v1474 = vpop.f32.mrb[0].mxu0
        %v1475 = vadd.f32 0.0, %v1474
        %v1476 = vpop.f32.mrb[0].mxu0
        %v1477 = vpop.f32.mrb[0].mxu0
        %v1478 = vadd.f32 0.0, %v1477
        %v1479 = vpop.f32.mrb[0].mxu0
        %1480 = vmatprep.mubr.bf16.mxu0 0
        %1481 = vmatmul.mubr.bf16.gmra.mrb[0].mxu0 %v1422
        %v1482 = vpop.f32.mrb[0].mxu0
        %v1483 = vadd.f32 0.0, %v1482
        %v1484 = vpop.f32.mrb[0].mxu0
        %v1485 = vpop.f32.mrb[0].mxu0
        %v1486 = vadd.f32 0.0, %v1485
        %v1487 = vpop.f32.mrb[0].mxu0
        %1488 = vdwg.mxu0
        %v1489 = vadd.f32 %v1277, %v1459
        %v1490 = vadd.f32 %v1278, %v1462
        %v1491 = vadd.f32 %v1279, %v1467
        %v1492 = vadd.f32 %v1280, %v1470
        %v1493 = vadd.f32 %v1281, %v1475
        %v1494 = vadd.f32 %v1282, %v1478
        %v1495 = vadd.f32 %v1283, %v1483
        %v1496 = vadd.f32 %v1284, %v1486
        %s1497 = scalar_lea.vmem [#allocation2], 192
        %v1498 = vld [vmem:[%s1497] sm:$0xf]
        %v1499 = vld [vmem:[%s1497 + $0x4] sm:$0xf]
        %v1500 = vld [vmem:[%s1497 + $0x8] sm:$0xf]
        %v1501 = vld [vmem:[%s1497 + $0xc] sm:$0xf]
        %v1502 = vld [vmem:[%s1497 + $0x10] sm:$0xf]
        %v1503 = vld [vmem:[%s1497 + $0x14] sm:$0xf]
        %v1504 = vld [vmem:[%s1497 + $0x18] sm:$0xf]
        %v1505 = vld [vmem:[%s1497 + $0x1c] sm:$0xf]
        %v1514 = vunpack.c.l.b16 %v1498
        %v1515 = vunpack.c.l.b16 %v1499
        %v1516 = vunpack.c.l.b16 %v1500
        %v1517 = vunpack.c.l.b16 %v1501
        %v1518 = vunpack.c.l.b16 %v1502
        %v1519 = vunpack.c.l.b16 %v1503
        %v1520 = vunpack.c.l.b16 %v1504
        %v1521 = vunpack.c.l.b16 %v1505
        %v1522 = vpack.c.b16 %v1515, %v1514
        %v1523 = vpack.c.b16 %v1517, %v1516
        %v1524 = vpack.c.b16 %v1519, %v1518
        %v1525 = vpack.c.b16 %v1521, %v1520
        %v1527 = vsel %vm363, %v1522, 0
        %v1530 = vsel %vm363, %v1523, 0
        %v1533 = vsel %vm363, %v1524, 0
        %v1536 = vsel %vm363, %v1525, 0
        %1538 = vmatprep.subr.bf16.mxu0 0
        %1539 = vmatpush1.bf16.msra.mxu0 %v355
        %1540 = vmatprep.subr.bf16.mxu0 0
        %1541 = vmatpush1.bf16.msra.mxu0 %v356
        %1542 = vmatprep.subr.bf16.mxu0 0
        %1543 = vmatpush1.bf16.msra.mxu0 %v357
        %1544 = vmatprep.subr.bf16.mxu0 0
        %1545 = vmatpush1.bf16.msra.mxu0 %v358
        %1546 = vmatprep.subr.bf16.mxu0 0
        %1547 = vmatpush1.bf16.msra.mxu0 0
        %1548 = vmatprep.subr.bf16.mxu0 0
        %1549 = vmatpush1.bf16.msra.mxu0 0
        %1550 = vmatprep.subr.bf16.mxu0 0
        %1551 = vmatpush1.bf16.msra.mxu0 0
        %1552 = vmatprep.subr.bf16.mxu0 0
        %1553 = vmatpush1.bf16.msra.mxu0 0
        %1554 = vmatprep.subr.bf16.mxu0 0
        %1555 = vmatpush1.bf16.msra.mxu0 0
        %1556 = vmatprep.subr.bf16.mxu0 0
        %1557 = vmatpush1.bf16.msra.mxu0 0
        %1558 = vmatprep.subr.bf16.mxu0 0
        %1559 = vmatpush1.bf16.msra.mxu0 0
        %1560 = vmatprep.subr.bf16.mxu0 0
        %1561 = vmatpush1.bf16.msra.mxu0 0
        %1562 = vmatprep.subr.bf16.mxu0 0
        %1563 = vmatpush1.bf16.msra.mxu0 0
        %1564 = vmatprep.subr.bf16.mxu0 0
        %1565 = vmatpush1.bf16.msra.mxu0 0
        %1566 = vmatprep.subr.bf16.mxu0 0
        %1567 = vmatpush1.bf16.msra.mxu0 0
        %1568 = vmatprep.subr.bf16.mxu0 0
        %1569 = vmatpush1.bf16.msra.mxu0 0
        %1570 = vmatprep.mubr.bf16.mxu0 0
        %1571 = vmatmul.mubr.bf16.gmra.mrb[0].mxu0 %v1527
        %v1572 = vpop.f32.mrb[0].mxu0
        %v1573 = vadd.f32 0.0, %v1572
        %v1574 = vpop.f32.mrb[0].mxu0
        %v1575 = vpop.f32.mrb[0].mxu0
        %v1576 = vadd.f32 0.0, %v1575
        %v1577 = vpop.f32.mrb[0].mxu0
        %1578 = vmatprep.mubr.bf16.mxu0 0
        %1579 = vmatmul.mubr.bf16.gmra.mrb[0].mxu0 %v1530
        %v1580 = vpop.f32.mrb[0].mxu0
        %v1581 = vadd.f32 0.0, %v1580
        %v1582 = vpop.f32.mrb[0].mxu0
        %v1583 = vpop.f32.mrb[0].mxu0
        %v1584 = vadd.f32 0.0, %v1583
        %v1585 = vpop.f32.mrb[0].mxu0
        %1586 = vmatprep.mubr.bf16.mxu0 0
        %1587 = vmatmul.mubr.bf16.gmra.mrb[0].mxu0 %v1533
        %v1588 = vpop.f32.mrb[0].mxu0
        %v1589 = vadd.f32 0.0, %v1588
        %v1590 = vpop.f32.mrb[0].mxu0
        %v1591 = vpop.f32.mrb[0].mxu0
        %v1592 = vadd.f32 0.0, %v1591
        %v1593 = vpop.f32.mrb[0].mxu0
        %1594 = vmatprep.mubr.bf16.mxu0 0
        %1595 = vmatmul.mubr.bf16.gmra.mrb[0].mxu0 %v1536
        %v1596 = vpop.f32.mrb[0].mxu0
        %v1597 = vadd.f32 0.0, %v1596
        %v1598 = vpop.f32.mrb[0].mxu0
        %v1599 = vpop.f32.mrb[0].mxu0
        %v1600 = vadd.f32 0.0, %v1599
        %v1601 = vpop.f32.mrb[0].mxu0
        %1602 = vdwg.mxu0
        %v1603 = vpack.c.bf16 %v1576, %v1573
        %v1604 = vpack.c.bf16 %v1584, %v1581
        %v1605 = vpack.c.bf16 %v1592, %v1589
        %v1606 = vpack.c.bf16 %v1600, %v1597
        %s1607 = scalar_lea.vmem [#allocation5], 96
        %v1608 = vld [vmem:[%s1607] sm:$0xf]
        %v1609 = vld [vmem:[%s1607 + $0x4] sm:$0xf]
        %v1610 = vld [vmem:[%s1607 + $0x8] sm:$0xf]
        %v1611 = vld [vmem:[%s1607 + $0xc] sm:$0xf]
        %v1616 = vunpack.c.l.b16 %v1608
        %v1617 = vunpack.c.l.b16 %v1609
        %v1618 = vunpack.c.l.b16 %v1610
        %v1619 = vunpack.c.l.b16 %v1611
        %v1620 = vpack.c.b16 %v1617, %v1616
        %v1621 = vpack.c.b16 %v1619, %v1618
        %v1625 = vsel %vm461, %v1603, 0
        %v1628 = vsel %vm461, %v1604, 0
        %v1631 = vsel %vm461, %v1605, 0
        %v1634 = vsel %vm461, %v1606, 0
        %1636 = vmatprep.subr.bf16.mxu0 0
        %1637 = vmatpush1.bf16.msra.mxu0 %v1620
        %1638 = vmatprep.subr.bf16.mxu0 0
        %1639 = vmatpush1.bf16.msra.mxu0 %v1621
        %1640 = vmatprep.subr.bf16.mxu0 0
        %1641 = vmatpush1.bf16.msra.mxu0 0
        %1642 = vmatprep.subr.bf16.mxu0 0
        %1643 = vmatpush1.bf16.msra.mxu0 0
        %1644 = vmatprep.subr.bf16.mxu0 0
        %1645 = vmatpush1.bf16.msra.mxu0 0
        %1646 = vmatprep.subr.bf16.mxu0 0
        %1647 = vmatpush1.bf16.msra.mxu0 0
        %1648 = vmatprep.subr.bf16.mxu0 0
        %1649 = vmatpush1.bf16.msra.mxu0 0
        %1650 = vmatprep.subr.bf16.mxu0 0
        %1651 = vmatpush1.bf16.msra.mxu0 0
        %1652 = vmatprep.subr.bf16.mxu0 0
        %1653 = vmatpush1.bf16.msra.mxu0 0
        %1654 = vmatprep.subr.bf16.mxu0 0
        %1655 = vmatpush1.bf16.msra.mxu0 0
        %1656 = vmatprep.subr.bf16.mxu0 0
        %1657 = vmatpush1.bf16.msra.mxu0 0
        %1658 = vmatprep.subr.bf16.mxu0 0
        %1659 = vmatpush1.bf16.msra.mxu0 0
        %1660 = vmatprep.subr.bf16.mxu0 0
        %1661 = vmatpush1.bf16.msra.mxu0 0
        %1662 = vmatprep.subr.bf16.mxu0 0
        %1663 = vmatpush1.bf16.msra.mxu0 0
        %1664 = vmatprep.subr.bf16.mxu0 0
        %1665 = vmatpush1.bf16.msra.mxu0 0
        %1666 = vmatprep.subr.bf16.mxu0 0
        %1667 = vmatpush1.bf16.msra.mxu0 0
        %1668 = vmatprep.mubr.bf16.mxu0 0
        %1669 = vmatmul.mubr.bf16.gmra.mrb[0].mxu0 %v1625
        %v1670 = vpop.f32.mrb[0].mxu0
        %v1671 = vadd.f32 0.0, %v1670
        %v1672 = vpop.f32.mrb[0].mxu0
        %v1673 = vpop.f32.mrb[0].mxu0
        %v1674 = vadd.f32 0.0, %v1673
        %v1675 = vpop.f32.mrb[0].mxu0
        %1676 = vmatprep.mubr.bf16.mxu0 0
        %1677 = vmatmul.mubr.bf16.gmra.mrb[0].mxu0 %v1628
        %v1678 = vpop.f32.mrb[0].mxu0
        %v1679 = vadd.f32 0.0, %v1678
        %v1680 = vpop.f32.mrb[0].mxu0
        %v1681 = vpop.f32.mrb[0].mxu0
        %v1682 = vadd.f32 0.0, %v1681
        %v1683 = vpop.f32.mrb[0].mxu0
        %1684 = vmatprep.mubr.bf16.mxu0 0
        %1685 = vmatmul.mubr.bf16.gmra.mrb[0].mxu0 %v1631
        %v1686 = vpop.f32.mrb[0].mxu0
        %v1687 = vadd.f32 0.0, %v1686
        %v1688 = vpop.f32.mrb[0].mxu0
        %v1689 = vpop.f32.mrb[0].mxu0
        %v1690 = vadd.f32 0.0, %v1689
        %v1691 = vpop.f32.mrb[0].mxu0
        %1692 = vmatprep.mubr.bf16.mxu0 0
        %1693 = vmatmul.mubr.bf16.gmra.mrb[0].mxu0 %v1634
        %v1694 = vpop.f32.mrb[0].mxu0
        %v1695 = vadd.f32 0.0, %v1694
        %v1696 = vpop.f32.mrb[0].mxu0
        %v1697 = vpop.f32.mrb[0].mxu0
        %v1698 = vadd.f32 0.0, %v1697
        %v1699 = vpop.f32.mrb[0].mxu0
        %1700 = vdwg.mxu0
        %v1701 = vadd.f32 %v1489, %v1671
        %v1702 = vadd.f32 %v1490, %v1674
        %v1703 = vadd.f32 %v1491, %v1679
        %v1704 = vadd.f32 %v1492, %v1682
        %v1705 = vadd.f32 %v1493, %v1687
        %v1706 = vadd.f32 %v1494, %v1690
        %v1707 = vadd.f32 %v1495, %v1695
        %v1708 = vadd.f32 %v1496, %v1698
        %s1709 = scalar_lea.vmem [#allocation2], 224
        %v1710 = vld [vmem:[%s1709] sm:$0xf]
        %v1711 = vld [vmem:[%s1709 + $0x4] sm:$0xf]
        %v1712 = vld [vmem:[%s1709 + $0x8] sm:$0xf]
        %v1713 = vld [vmem:[%s1709 + $0xc] sm:$0xf]
        %v1714 = vld [vmem:[%s1709 + $0x10] sm:$0xf]
        %v1715 = vld [vmem:[%s1709 + $0x14] sm:$0xf]
        %v1716 = vld [vmem:[%s1709 + $0x18] sm:$0xf]
        %v1717 = vld [vmem:[%s1709 + $0x1c] sm:$0xf]
        %v1726 = vunpack.c.l.b16 %v1710
        %v1727 = vunpack.c.l.b16 %v1711
        %v1728 = vunpack.c.l.b16 %v1712
        %v1729 = vunpack.c.l.b16 %v1713
        %v1730 = vunpack.c.l.b16 %v1714
        %v1731 = vunpack.c.l.b16 %v1715
        %v1732 = vunpack.c.l.b16 %v1716
        %v1733 = vunpack.c.l.b16 %v1717
        %v1734 = vpack.c.b16 %v1727, %v1726
        %v1735 = vpack.c.b16 %v1729, %v1728
        %v1736 = vpack.c.b16 %v1731, %v1730
        %v1737 = vpack.c.b16 %v1733, %v1732
        %v1739 = vsel %vm363, %v1734, 0
        %v1742 = vsel %vm363, %v1735, 0
        %v1745 = vsel %vm363, %v1736, 0
        %v1748 = vsel %vm363, %v1737, 0
        %1750 = vmatprep.subr.bf16.mxu0 0
        %1751 = vmatpush1.bf16.msra.mxu0 %v355
        %1752 = vmatprep.subr.bf16.mxu0 0
        %1753 = vmatpush1.bf16.msra.mxu0 %v356
        %1754 = vmatprep.subr.bf16.mxu0 0
        %1755 = vmatpush1.bf16.msra.mxu0 %v357
        %1756 = vmatprep.subr.bf16.mxu0 0
        %1757 = vmatpush1.bf16.msra.mxu0 %v358
        %1758 = vmatprep.subr.bf16.mxu0 0
        %1759 = vmatpush1.bf16.msra.mxu0 0
        %1760 = vmatprep.subr.bf16.mxu0 0
        %1761 = vmatpush1.bf16.msra.mxu0 0
        %1762 = vmatprep.subr.bf16.mxu0 0
        %1763 = vmatpush1.bf16.msra.mxu0 0
        %1764 = vmatprep.subr.bf16.mxu0 0
        %1765 = vmatpush1.bf16.msra.mxu0 0
        %1766 = vmatprep.subr.bf16.mxu0 0
        %1767 = vmatpush1.bf16.msra.mxu0 0
        %1768 = vmatprep.subr.bf16.mxu0 0
        %1769 = vmatpush1.bf16.msra.mxu0 0
        %1770 = vmatprep.subr.bf16.mxu0 0
        %1771 = vmatpush1.bf16.msra.mxu0 0
        %1772 = vmatprep.subr.bf16.mxu0 0
        %1773 = vmatpush1.bf16.msra.mxu0 0
        %1774 = vmatprep.subr.bf16.mxu0 0
        %1775 = vmatpush1.bf16.msra.mxu0 0
        %1776 = vmatprep.subr.bf16.mxu0 0
        %1777 = vmatpush1.bf16.msra.mxu0 0
        %1778 = vmatprep.subr.bf16.mxu0 0
        %1779 = vmatpush1.bf16.msra.mxu0 0
        %1780 = vmatprep.subr.bf16.mxu0 0
        %1781 = vmatpush1.bf16.msra.mxu0 0
        %1782 = vmatprep.mubr.bf16.mxu0 0
        %1783 = vmatmul.mubr.bf16.gmra.mrb[0].mxu0 %v1739
        %v1784 = vpop.f32.mrb[0].mxu0
        %v1785 = vadd.f32 0.0, %v1784
        %v1786 = vpop.f32.mrb[0].mxu0
        %v1787 = vpop.f32.mrb[0].mxu0
        %v1788 = vadd.f32 0.0, %v1787
        %v1789 = vpop.f32.mrb[0].mxu0
        %1790 = vmatprep.mubr.bf16.mxu0 0
        %1791 = vmatmul.mubr.bf16.gmra.mrb[0].mxu0 %v1742
        %v1792 = vpop.f32.mrb[0].mxu0
        %v1793 = vadd.f32 0.0, %v1792
        %v1794 = vpop.f32.mrb[0].mxu0
        %v1795 = vpop.f32.mrb[0].mxu0
        %v1796 = vadd.f32 0.0, %v1795
        %v1797 = vpop.f32.mrb[0].mxu0
        %1798 = vmatprep.mubr.bf16.mxu0 0
        %1799 = vmatmul.mubr.bf16.gmra.mrb[0].mxu0 %v1745
        %v1800 = vpop.f32.mrb[0].mxu0
        %v1801 = vadd.f32 0.0, %v1800
        %v1802 = vpop.f32.mrb[0].mxu0
        %v1803 = vpop.f32.mrb[0].mxu0
        %v1804 = vadd.f32 0.0, %v1803
        %v1805 = vpop.f32.mrb[0].mxu0
        %1806 = vmatprep.mubr.bf16.mxu0 0
        %1807 = vmatmul.mubr.bf16.gmra.mrb[0].mxu0 %v1748
        %v1808 = vpop.f32.mrb[0].mxu0
        %v1809 = vadd.f32 0.0, %v1808
        %v1810 = vpop.f32.mrb[0].mxu0
        %v1811 = vpop.f32.mrb[0].mxu0
        %v1812 = vadd.f32 0.0, %v1811
        %v1813 = vpop.f32.mrb[0].mxu0
        %1814 = vdwg.mxu0
        %v1815 = vpack.c.bf16 %v1788, %v1785
        %v1816 = vpack.c.bf16 %v1796, %v1793
        %v1817 = vpack.c.bf16 %v1804, %v1801
        %v1818 = vpack.c.bf16 %v1812, %v1809
        %s1819 = scalar_lea.vmem [#allocation5], 112
        %v1820 = vld [vmem:[%s1819] sm:$0xf]
        %v1821 = vld [vmem:[%s1819 + $0x4] sm:$0xf]
        %v1822 = vld [vmem:[%s1819 + $0x8] sm:$0xf]
        %v1823 = vld [vmem:[%s1819 + $0xc] sm:$0xf]
        %v1828 = vunpack.c.l.b16 %v1820
        %v1829 = vunpack.c.l.b16 %v1821
        %v1830 = vunpack.c.l.b16 %v1822
        %v1831 = vunpack.c.l.b16 %v1823
        %v1832 = vpack.c.b16 %v1829, %v1828
        %v1833 = vpack.c.b16 %v1831, %v1830
        %v1837 = vsel %vm461, %v1815, 0
        %v1840 = vsel %vm461, %v1816, 0
        %v1843 = vsel %vm461, %v1817, 0
        %v1846 = vsel %vm461, %v1818, 0
        %1848 = vmatprep.subr.bf16.mxu0 0
        %1849 = vmatpush1.bf16.msra.mxu0 %v1832
        %1850 = vmatprep.subr.bf16.mxu0 0
        %1851 = vmatpush1.bf16.msra.mxu0 %v1833
        %1852 = vmatprep.subr.bf16.mxu0 0
        %1853 = vmatpush1.bf16.msra.mxu0 0
        %1854 = vmatprep.subr.bf16.mxu0 0
        %1855 = vmatpush1.bf16.msra.mxu0 0
        %1856 = vmatprep.subr.bf16.mxu0 0
        %1857 = vmatpush1.bf16.msra.mxu0 0
        %1858 = vmatprep.subr.bf16.mxu0 0
        %1859 = vmatpush1.bf16.msra.mxu0 0
        %1860 = vmatprep.subr.bf16.mxu0 0
        %1861 = vmatpush1.bf16.msra.mxu0 0
        %1862 = vmatprep.subr.bf16.mxu0 0
        %1863 = vmatpush1.bf16.msra.mxu0 0
        %1864 = vmatprep.subr.bf16.mxu0 0
        %1865 = vmatpush1.bf16.msra.mxu0 0
        %1866 = vmatprep.subr.bf16.mxu0 0
        %1867 = vmatpush1.bf16.msra.mxu0 0
        %1868 = vmatprep.subr.bf16.mxu0 0
        %1869 = vmatpush1.bf16.msra.mxu0 0
        %1870 = vmatprep.subr.bf16.mxu0 0
        %1871 = vmatpush1.bf16.msra.mxu0 0
        %1872 = vmatprep.subr.bf16.mxu0 0
        %1873 = vmatpush1.bf16.msra.mxu0 0
        %1874 = vmatprep.subr.bf16.mxu0 0
        %1875 = vmatpush1.bf16.msra.mxu0 0
        %1876 = vmatprep.subr.bf16.mxu0 0
        %1877 = vmatpush1.bf16.msra.mxu0 0
        %1878 = vmatprep.subr.bf16.mxu0 0
        %1879 = vmatpush1.bf16.msra.mxu0 0
        %1880 = vmatprep.mubr.bf16.mxu0 0
        %1881 = vmatmul.mubr.bf16.gmra.mrb[0].mxu0 %v1837
        %v1882 = vpop.f32.mrb[0].mxu0
        %v1883 = vadd.f32 0.0, %v1882
        %v1884 = vpop.f32.mrb[0].mxu0
        %v1885 = vpop.f32.mrb[0].mxu0
        %v1886 = vadd.f32 0.0, %v1885
        %v1887 = vpop.f32.mrb[0].mxu0
        %1888 = vmatprep.mubr.bf16.mxu0 0
        %1889 = vmatmul.mubr.bf16.gmra.mrb[0].mxu0 %v1840
        %v1890 = vpop.f32.mrb[0].mxu0
        %v1891 = vadd.f32 0.0, %v1890
        %v1892 = vpop.f32.mrb[0].mxu0
        %v1893 = vpop.f32.mrb[0].mxu0
        %v1894 = vadd.f32 0.0, %v1893
        %v1895 = vpop.f32.mrb[0].mxu0
        %1896 = vmatprep.mubr.bf16.mxu0 0
        %1897 = vmatmul.mubr.bf16.gmra.mrb[0].mxu0 %v1843
        %v1898 = vpop.f32.mrb[0].mxu0
        %v1899 = vadd.f32 0.0, %v1898
        %v1900 = vpop.f32.mrb[0].mxu0
        %v1901 = vpop.f32.mrb[0].mxu0
        %v1902 = vadd.f32 0.0, %v1901
        %v1903 = vpop.f32.mrb[0].mxu0
        %1904 = vmatprep.mubr.bf16.mxu0 0
        %1905 = vmatmul.mubr.bf16.gmra.mrb[0].mxu0 %v1846
        %v1906 = vpop.f32.mrb[0].mxu0
        %v1907 = vadd.f32 0.0, %v1906
        %v1908 = vpop.f32.mrb[0].mxu0
        %v1909 = vpop.f32.mrb[0].mxu0
        %v1910 = vadd.f32 0.0, %v1909
        %v1911 = vpop.f32.mrb[0].mxu0
        %1912 = vdwg.mxu0
        %v1913 = vadd.f32 %v1701, %v1883
        %v1914 = vadd.f32 %v1702, %v1886
        %v1915 = vadd.f32 %v1703, %v1891
        %v1916 = vadd.f32 %v1704, %v1894
        %v1917 = vadd.f32 %v1705, %v1899
        %v1918 = vadd.f32 %v1706, %v1902
        %v1919 = vadd.f32 %v1707, %v1907
        %v1920 = vadd.f32 %v1708, %v1910
        %s1921 = scalar_lea.vmem [#allocation2], 256
        %v1922 = vld [vmem:[%s1921] sm:$0xf]
        %v1923 = vld [vmem:[%s1921 + $0x4] sm:$0xf]
        %v1924 = vld [vmem:[%s1921 + $0x8] sm:$0xf]
        %v1925 = vld [vmem:[%s1921 + $0xc] sm:$0xf]
        %v1926 = vld [vmem:[%s1921 + $0x10] sm:$0xf]
        %v1927 = vld [vmem:[%s1921 + $0x14] sm:$0xf]
        %v1928 = vld [vmem:[%s1921 + $0x18] sm:$0xf]
        %v1929 = vld [vmem:[%s1921 + $0x1c] sm:$0xf]
        %v1938 = vunpack.c.l.b16 %v1922
        %v1939 = vunpack.c.l.b16 %v1923
        %v1940 = vunpack.c.l.b16 %v1924
        %v1941 = vunpack.c.l.b16 %v1925
        %v1942 = vunpack.c.l.b16 %v1926
        %v1943 = vunpack.c.l.b16 %v1927
        %v1944 = vunpack.c.l.b16 %v1928
        %v1945 = vunpack.c.l.b16 %v1929
        %v1946 = vpack.c.b16 %v1939, %v1938
        %v1947 = vpack.c.b16 %v1941, %v1940
        %v1948 = vpack.c.b16 %v1943, %v1942
        %v1949 = vpack.c.b16 %v1945, %v1944
        %v1951 = vsel %vm363, %v1946, 0
        %v1954 = vsel %vm363, %v1947, 0
        %v1957 = vsel %vm363, %v1948, 0
        %v1960 = vsel %vm363, %v1949, 0
        %1962 = vmatprep.subr.bf16.mxu0 0
        %1963 = vmatpush1.bf16.msra.mxu0 %v355
        %1964 = vmatprep.subr.bf16.mxu0 0
        %1965 = vmatpush1.bf16.msra.mxu0 %v356
        %1966 = vmatprep.subr.bf16.mxu0 0
        %1967 = vmatpush1.bf16.msra.mxu0 %v357
        %1968 = vmatprep.subr.bf16.mxu0 0
        %1969 = vmatpush1.bf16.msra.mxu0 %v358
        %1970 = vmatprep.subr.bf16.mxu0 0
        %1971 = vmatpush1.bf16.msra.mxu0 0
        %1972 = vmatprep.subr.bf16.mxu0 0
        %1973 = vmatpush1.bf16.msra.mxu0 0
        %1974 = vmatprep.subr.bf16.mxu0 0
        %1975 = vmatpush1.bf16.msra.mxu0 0
        %1976 = vmatprep.subr.bf16.mxu0 0
        %1977 = vmatpush1.bf16.msra.mxu0 0
        %1978 = vmatprep.subr.bf16.mxu0 0
        %1979 = vmatpush1.bf16.msra.mxu0 0
        %1980 = vmatprep.subr.bf16.mxu0 0
        %1981 = vmatpush1.bf16.msra.mxu0 0
        %1982 = vmatprep.subr.bf16.mxu0 0
        %1983 = vmatpush1.bf16.msra.mxu0 0
        %1984 = vmatprep.subr.bf16.mxu0 0
        %1985 = vmatpush1.bf16.msra.mxu0 0
        %1986 = vmatprep.subr.bf16.mxu0 0
        %1987 = vmatpush1.bf16.msra.mxu0 0
        %1988 = vmatprep.subr.bf16.mxu0 0
        %1989 = vmatpush1.bf16.msra.mxu0 0
        %1990 = vmatprep.subr.bf16.mxu0 0
        %1991 = vmatpush1.bf16.msra.mxu0 0
        %1992 = vmatprep.subr.bf16.mxu0 0
        %1993 = vmatpush1.bf16.msra.mxu0 0
        %1994 = vmatprep.mubr.bf16.mxu0 0
        %1995 = vmatmul.mubr.bf16.gmra.mrb[0].mxu0 %v1951
        %v1996 = vpop.f32.mrb[0].mxu0
        %v1997 = vadd.f32 0.0, %v1996
        %v1998 = vpop.f32.mrb[0].mxu0
        %v1999 = vpop.f32.mrb[0].mxu0
        %v2000 = vadd.f32 0.0, %v1999
        %v2001 = vpop.f32.mrb[0].mxu0
        %2002 = vmatprep.mubr.bf16.mxu0 0
        %2003 = vmatmul.mubr.bf16.gmra.mrb[0].mxu0 %v1954
        %v2004 = vpop.f32.mrb[0].mxu0
        %v2005 = vadd.f32 0.0, %v2004
        %v2006 = vpop.f32.mrb[0].mxu0
        %v2007 = vpop.f32.mrb[0].mxu0
        %v2008 = vadd.f32 0.0, %v2007
        %v2009 = vpop.f32.mrb[0].mxu0
        %2010 = vmatprep.mubr.bf16.mxu0 0
        %2011 = vmatmul.mubr.bf16.gmra.mrb[0].mxu0 %v1957
        %v2012 = vpop.f32.mrb[0].mxu0
        %v2013 = vadd.f32 0.0, %v2012
        %v2014 = vpop.f32.mrb[0].mxu0
        %v2015 = vpop.f32.mrb[0].mxu0
        %v2016 = vadd.f32 0.0, %v2015
        %v2017 = vpop.f32.mrb[0].mxu0
        %2018 = vmatprep.mubr.bf16.mxu0 0
        %2019 = vmatmul.mubr.bf16.gmra.mrb[0].mxu0 %v1960
        %v2020 = vpop.f32.mrb[0].mxu0
        %v2021 = vadd.f32 0.0, %v2020
        %v2022 = vpop.f32.mrb[0].mxu0
        %v2023 = vpop.f32.mrb[0].mxu0
        %v2024 = vadd.f32 0.0, %v2023
        %v2025 = vpop.f32.mrb[0].mxu0
        %2026 = vdwg.mxu0
        %v2027 = vpack.c.bf16 %v2000, %v1997
        %v2028 = vpack.c.bf16 %v2008, %v2005
        %v2029 = vpack.c.bf16 %v2016, %v2013
        %v2030 = vpack.c.bf16 %v2024, %v2021
        %s2031 = scalar_lea.vmem [#allocation5], 128
        %v2032 = vld [vmem:[%s2031] sm:$0xf]
        %v2033 = vld [vmem:[%s2031 + $0x4] sm:$0xf]
        %v2034 = vld [vmem:[%s2031 + $0x8] sm:$0xf]
        %v2035 = vld [vmem:[%s2031 + $0xc] sm:$0xf]
        %v2040 = vunpack.c.l.b16 %v2032
        %v2041 = vunpack.c.l.b16 %v2033
        %v2042 = vunpack.c.l.b16 %v2034
        %v2043 = vunpack.c.l.b16 %v2035
        %v2044 = vpack.c.b16 %v2041, %v2040
        %v2045 = vpack.c.b16 %v2043, %v2042
        %v2049 = vsel %vm461, %v2027, 0
        %v2052 = vsel %vm461, %v2028, 0
        %v2055 = vsel %vm461, %v2029, 0
        %v2058 = vsel %vm461, %v2030, 0
        %2060 = vmatprep.subr.bf16.mxu0 0
        %2061 = vmatpush1.bf16.msra.mxu0 %v2044
        %2062 = vmatprep.subr.bf16.mxu0 0
        %2063 = vmatpush1.bf16.msra.mxu0 %v2045
        %2064 = vmatprep.subr.bf16.mxu0 0
        %2065 = vmatpush1.bf16.msra.mxu0 0
        %2066 = vmatprep.subr.bf16.mxu0 0
        %2067 = vmatpush1.bf16.msra.mxu0 0
        %2068 = vmatprep.subr.bf16.mxu0 0
        %2069 = vmatpush1.bf16.msra.mxu0 0
        %2070 = vmatprep.subr.bf16.mxu0 0
        %2071 = vmatpush1.bf16.msra.mxu0 0
        %2072 = vmatprep.subr.bf16.mxu0 0
        %2073 = vmatpush1.bf16.msra.mxu0 0
        %2074 = vmatprep.subr.bf16.mxu0 0
        %2075 = vmatpush1.bf16.msra.mxu0 0
        %2076 = vmatprep.subr.bf16.mxu0 0
        %2077 = vmatpush1.bf16.msra.mxu0 0
        %2078 = vmatprep.subr.bf16.mxu0 0
        %2079 = vmatpush1.bf16.msra.mxu0 0
        %2080 = vmatprep.subr.bf16.mxu0 0
        %2081 = vmatpush1.bf16.msra.mxu0 0
        %2082 = vmatprep.subr.bf16.mxu0 0
        %2083 = vmatpush1.bf16.msra.mxu0 0
        %2084 = vmatprep.subr.bf16.mxu0 0
        %2085 = vmatpush1.bf16.msra.mxu0 0
        %2086 = vmatprep.subr.bf16.mxu0 0
        %2087 = vmatpush1.bf16.msra.mxu0 0
        %2088 = vmatprep.subr.bf16.mxu0 0
        %2089 = vmatpush1.bf16.msra.mxu0 0
        %2090 = vmatprep.subr.bf16.mxu0 0
        %2091 = vmatpush1.bf16.msra.mxu0 0
        %2092 = vmatprep.mubr.bf16.mxu0 0
        %2093 = vmatmul.mubr.bf16.gmra.mrb[0].mxu0 %v2049
        %v2094 = vpop.f32.mrb[0].mxu0
        %v2095 = vadd.f32 0.0, %v2094
        %v2096 = vpop.f32.mrb[0].mxu0
        %v2097 = vpop.f32.mrb[0].mxu0
        %v2098 = vadd.f32 0.0, %v2097
        %v2099 = vpop.f32.mrb[0].mxu0
        %2100 = vmatprep.mubr.bf16.mxu0 0
        %2101 = vmatmul.mubr.bf16.gmra.mrb[0].mxu0 %v2052
        %v2102 = vpop.f32.mrb[0].mxu0
        %v2103 = vadd.f32 0.0, %v2102
        %v2104 = vpop.f32.mrb[0].mxu0
        %v2105 = vpop.f32.mrb[0].mxu0
        %v2106 = vadd.f32 0.0, %v2105
        %v2107 = vpop.f32.mrb[0].mxu0
        %2108 = vmatprep.mubr.bf16.mxu0 0
        %2109 = vmatmul.mubr.bf16.gmra.mrb[0].mxu0 %v2055
        %v2110 = vpop.f32.mrb[0].mxu0
        %v2111 = vadd.f32 0.0, %v2110
        %v2112 = vpop.f32.mrb[0].mxu0
        %v2113 = vpop.f32.mrb[0].mxu0
        %v2114 = vadd.f32 0.0, %v2113
        %v2115 = vpop.f32.mrb[0].mxu0
        %2116 = vmatprep.mubr.bf16.mxu0 0
        %2117 = vmatmul.mubr.bf16.gmra.mrb[0].mxu0 %v2058
        %v2118 = vpop.f32.mrb[0].mxu0
        %v2119 = vadd.f32 0.0, %v2118
        %v2120 = vpop.f32.mrb[0].mxu0
        %v2121 = vpop.f32.mrb[0].mxu0
        %v2122 = vadd.f32 0.0, %v2121
        %v2123 = vpop.f32.mrb[0].mxu0
        %2124 = vdwg.mxu0
        %v2125 = vadd.f32 %v1913, %v2095
        %v2126 = vadd.f32 %v1914, %v2098
        %v2127 = vadd.f32 %v1915, %v2103
        %v2128 = vadd.f32 %v1916, %v2106
        %v2129 = vadd.f32 %v1917, %v2111
        %v2130 = vadd.f32 %v1918, %v2114
        %v2131 = vadd.f32 %v1919, %v2119
        %v2132 = vadd.f32 %v1920, %v2122
        %v2133 = vmax.f32 %v2125, 0.0
        %v2134 = vmax.f32 %v2126, 0.0
        %v2135 = vmax.f32 %v2127, 0.0
        %v2136 = vmax.f32 %v2128, 0.0
        %v2137 = vmax.f32 %v2129, 0.0
        %v2138 = vmax.f32 %v2130, 0.0
        %v2139 = vmax.f32 %v2131, 0.0
        %v2140 = vmax.f32 %v2132, 0.0
        %v2141 = vpack.c.bf16 %v2134, %v2133
        %v2142 = vpack.c.bf16 %v2136, %v2135
        %v2143 = vpack.c.bf16 %v2138, %v2137
        %v2144 = vpack.c.bf16 %v2140, %v2139
        %v2145 = vld [vmem:[%s5] sm:$0x1]
        %v2147 = vlaneseq
        %v2148 = vshrl.u32 %v2147, 7
        %v2149 = vsub.s32 0, %v2148
        %v2150 = vrot.slane %v2145, %v2149
        %v2152 = vadd.f32 %v2150, 0.0
        %2153 = vmatprep.subr.bf16.mxu0 0
        %2154 = vmatpush1.bf16.msra.mxu0 %v2141
        %2155 = vmatprep.subr.bf16.mxu0 0
        %2156 = vmatpush1.bf16.msra.mxu0 %v2142
        %2157 = vmatprep.subr.bf16.mxu0 0
        %2158 = vmatpush1.bf16.msra.mxu0 %v2143
        %2159 = vmatprep.subr.bf16.mxu0 0
        %2160 = vmatpush1.bf16.msra.mxu0 %v2144
        %2161 = vmatprep.subr.bf16.mxu0 0
        %2162 = vmatpush1.bf16.msra.mxu0 0
        %2163 = vmatprep.subr.bf16.mxu0 0
        %2164 = vmatpush1.bf16.msra.mxu0 0
        %2165 = vmatprep.subr.bf16.mxu0 0
        %2166 = vmatpush1.bf16.msra.mxu0 0
        %2167 = vmatprep.subr.bf16.mxu0 0
        %2168 = vmatpush1.bf16.msra.mxu0 0
        %2169 = vmatprep.subr.bf16.mxu0 0
        %2170 = vmatpush1.bf16.msra.mxu0 0
        %2171 = vmatprep.subr.bf16.mxu0 0
        %2172 = vmatpush1.bf16.msra.mxu0 0
        %2173 = vmatprep.subr.bf16.mxu0 0
        %2174 = vmatpush1.bf16.msra.mxu0 0
        %2175 = vmatprep.subr.bf16.mxu0 0
        %2176 = vmatpush1.bf16.msra.mxu0 0
        %2177 = vmatprep.subr.bf16.mxu0 0
        %2178 = vmatpush1.bf16.msra.mxu0 0
        %2179 = vmatprep.subr.bf16.mxu0 0
        %2180 = vmatpush1.bf16.msra.mxu0 0
        %2181 = vmatprep.subr.bf16.mxu0 0
        %2182 = vmatpush1.bf16.msra.mxu0 0
        %2183 = vmatprep.subr.bf16.mxu0 0
        %2184 = vmatpush1.bf16.msra.mxu0 0
        %2185 = vmatprep.mubr.bf16.mxu0 0
        %2186 = vmatmul.mubr.bf16.gmra.mrb[0].mxu0 %v365
        %v2187 = vpop.f32.mrb[0].mxu0
        %v2188 = vadd.f32 0.0, %v2187
        %v2189 = vpop.f32.mrb[0].mxu0
        %v2190 = vpop.f32.mrb[0].mxu0
        %v2191 = vadd.f32 0.0, %v2190
        %v2192 = vpop.f32.mrb[0].mxu0
        %2193 = vmatprep.mubr.bf16.mxu0 0
        %2194 = vmatmul.mubr.bf16.gmra.mrb[0].mxu0 %v368
        %v2195 = vpop.f32.mrb[0].mxu0
        %v2196 = vadd.f32 0.0, %v2195
        %v2197 = vpop.f32.mrb[0].mxu0
        %v2198 = vpop.f32.mrb[0].mxu0
        %v2199 = vadd.f32 0.0, %v2198
        %v2200 = vpop.f32.mrb[0].mxu0
        %2201 = vmatprep.mubr.bf16.mxu0 0
        %2202 = vmatmul.mubr.bf16.gmra.mrb[0].mxu0 %v371
        %v2203 = vpop.f32.mrb[0].mxu0
        %v2204 = vadd.f32 0.0, %v2203
        %v2205 = vpop.f32.mrb[0].mxu0
        %v2206 = vpop.f32.mrb[0].mxu0
        %v2207 = vadd.f32 0.0, %v2206
        %v2208 = vpop.f32.mrb[0].mxu0
        %2209 = vmatprep.mubr.bf16.mxu0 0
        %2210 = vmatmul.mubr.bf16.gmra.mrb[0].mxu0 %v374
        %v2211 = vpop.f32.mrb[0].mxu0
        %v2212 = vadd.f32 0.0, %v2211
        %v2213 = vpop.f32.mrb[0].mxu0
        %v2214 = vpop.f32.mrb[0].mxu0
        %v2215 = vadd.f32 0.0, %v2214
        %v2216 = vpop.f32.mrb[0].mxu0
        %2217 = vdwg.mxu0
        %v2218 = vpack.c.bf16 %v2191, %v2188
        %v2219 = vpack.c.bf16 %v2199, %v2196
        %v2220 = vpack.c.bf16 %v2207, %v2204
        %v2221 = vpack.c.bf16 %v2215, %v2212
        %v2222 = vld [vmem:[#allocation7] sm:$0xf]
        %v2223 = vld [vmem:[#allocation7 + $0x4] sm:$0xf]
        %v2224 = vld [vmem:[#allocation7 + $0x8] sm:$0xf]
        %v2225 = vld [vmem:[#allocation7 + $0xc] sm:$0xf]
        %v2226 = vld [vmem:[#allocation7 + $0x10] sm:$0xf]
        %v2227 = vld [vmem:[#allocation7 + $0x14] sm:$0xf]
        %v2228 = vld [vmem:[#allocation7 + $0x18] sm:$0xf]
        %v2229 = vld [vmem:[#allocation7 + $0x1c] sm:$0xf]
        %v2230 = vld [vmem:[#allocation7 + $0x20] sm:$0xf]
        %v2231 = vld [vmem:[#allocation7 + $0x24] sm:$0xf]
        %v2232 = vld [vmem:[#allocation7 + $0x28] sm:$0xf]
        %v2233 = vld [vmem:[#allocation7 + $0x2c] sm:$0xf]
        %v2234 = vld [vmem:[#allocation7 + $0x30] sm:$0xf]
        %v2235 = vld [vmem:[#allocation7 + $0x34] sm:$0xf]
        %v2236 = vld [vmem:[#allocation7 + $0x38] sm:$0xf]
        %v2237 = vld [vmem:[#allocation7 + $0x3c] sm:$0xf]
        %v2254 = vunpack.c.l.b16 %v2222
        %v2255 = vunpack.c.l.b16 %v2223
        %v2256 = vunpack.c.l.b16 %v2224
        %v2257 = vunpack.c.l.b16 %v2225
        %v2258 = vunpack.c.l.b16 %v2226
        %v2259 = vunpack.c.l.b16 %v2227
        %v2260 = vunpack.c.l.b16 %v2228
        %v2261 = vunpack.c.l.b16 %v2229
        %v2262 = vunpack.c.l.b16 %v2230
        %v2263 = vunpack.c.l.b16 %v2231
        %v2264 = vunpack.c.l.b16 %v2232
        %v2265 = vunpack.c.l.b16 %v2233
        %v2266 = vunpack.c.l.b16 %v2234
        %v2267 = vunpack.c.l.b16 %v2235
        %v2268 = vunpack.c.l.b16 %v2236
        %v2269 = vunpack.c.l.b16 %v2237
        %v2270 = vpack.c.b16 %v2255, %v2254
        %v2271 = vpack.c.b16 %v2257, %v2256
        %v2272 = vpack.c.b16 %v2259, %v2258
        %v2273 = vpack.c.b16 %v2261, %v2260
        %v2274 = vpack.c.b16 %v2263, %v2262
        %v2275 = vpack.c.b16 %v2265, %v2264
        %v2276 = vpack.c.b16 %v2267, %v2266
        %v2277 = vpack.c.b16 %v2269, %v2268
        %2286 = vmatprep.subr.bf16.mxu0 0
        %2287 = vmatpush1.bf16.msra.mxu0 %v2270
        %2288 = vmatprep.subr.bf16.mxu0 0
        %2289 = vmatpush1.bf16.msra.mxu0 %v2271
        %2290 = vmatprep.subr.bf16.mxu0 0
        %2291 = vmatpush1.bf16.msra.mxu0 %v2272
        %2292 = vmatprep.subr.bf16.mxu0 0
        %2293 = vmatpush1.bf16.msra.mxu0 %v2273
        %2294 = vmatprep.subr.bf16.mxu0 0
        %2295 = vmatpush1.bf16.msra.mxu0 %v2274
        %2296 = vmatprep.subr.bf16.mxu0 0
        %2297 = vmatpush1.bf16.msra.mxu0 %v2275
        %2298 = vmatprep.subr.bf16.mxu0 0
        %2299 = vmatpush1.bf16.msra.mxu0 %v2276
        %2300 = vmatprep.subr.bf16.mxu0 0
        %2301 = vmatpush1.bf16.msra.mxu0 %v2277
        %2302 = vmatprep.subr.bf16.mxu0 0
        %2303 = vmatpush1.bf16.msra.mxu0 0
        %2304 = vmatprep.subr.bf16.mxu0 0
        %2305 = vmatpush1.bf16.msra.mxu0 0
        %2306 = vmatprep.subr.bf16.mxu0 0
        %2307 = vmatpush1.bf16.msra.mxu0 0
        %2308 = vmatprep.subr.bf16.mxu0 0
        %2309 = vmatpush1.bf16.msra.mxu0 0
        %2310 = vmatprep.subr.bf16.mxu0 0
        %2311 = vmatpush1.bf16.msra.mxu0 0
        %2312 = vmatprep.subr.bf16.mxu0 0
        %2313 = vmatpush1.bf16.msra.mxu0 0
        %2314 = vmatprep.subr.bf16.mxu0 0
        %2315 = vmatpush1.bf16.msra.mxu0 0
        %2316 = vmatprep.subr.bf16.mxu0 0
        %2317 = vmatpush1.bf16.msra.mxu0 0
        %2318 = vmatprep.mubr.bf16.mxu0 0
        %2319 = vmatmul.mubr.bf16.gmra.mrb[0].mxu0 %v2218
        %v2320 = vpop.f32.mrb[0].mxu0
        %v2321 = vadd.f32 0.0, %v2320
        %v2322 = vpop.f32.mrb[0].mxu0
        %v2323 = vpop.f32.mrb[0].mxu0
        %v2324 = vadd.f32 0.0, %v2323
        %v2325 = vpop.f32.mrb[0].mxu0
        %2326 = vmatprep.mubr.bf16.mxu0 0
        %2327 = vmatmul.mubr.bf16.gmra.mrb[0].mxu0 %v2219
        %v2328 = vpop.f32.mrb[0].mxu0
        %v2329 = vadd.f32 0.0, %v2328
        %v2330 = vpop.f32.mrb[0].mxu0
        %v2331 = vpop.f32.mrb[0].mxu0
        %v2332 = vadd.f32 0.0, %v2331
        %v2333 = vpop.f32.mrb[0].mxu0
        %2334 = vmatprep.mubr.bf16.mxu0 0
        %2335 = vmatmul.mubr.bf16.gmra.mrb[0].mxu0 %v2220
        %v2336 = vpop.f32.mrb[0].mxu0
        %v2337 = vadd.f32 0.0, %v2336
        %v2338 = vpop.f32.mrb[0].mxu0
        %v2339 = vpop.f32.mrb[0].mxu0
        %v2340 = vadd.f32 0.0, %v2339
        %v2341 = vpop.f32.mrb[0].mxu0
        %2342 = vmatprep.mubr.bf16.mxu0 0
        %2343 = vmatmul.mubr.bf16.gmra.mrb[0].mxu0 %v2221
        %v2344 = vpop.f32.mrb[0].mxu0
        %v2345 = vadd.f32 0.0, %v2344
        %v2346 = vpop.f32.mrb[0].mxu0
        %v2347 = vpop.f32.mrb[0].mxu0
        %v2348 = vadd.f32 0.0, %v2347
        %v2349 = vpop.f32.mrb[0].mxu0
        %2350 = vdwg.mxu0
        %v2351 = vadd.f32 %v2152, %v2321
        %v2352 = vadd.f32 %v2152, %v2324
        %v2353 = vadd.f32 %v2152, %v2329
        %v2354 = vadd.f32 %v2152, %v2332
        %v2355 = vadd.f32 %v2152, %v2337
        %v2356 = vadd.f32 %v2152, %v2340
        %v2357 = vadd.f32 %v2152, %v2345
        %v2358 = vadd.f32 %v2152, %v2348
        %2359 = vmatprep.subr.bf16.mxu0 0
        %2360 = vmatpush1.bf16.msra.mxu0 %v2141
        %2361 = vmatprep.subr.bf16.mxu0 0
        %2362 = vmatpush1.bf16.msra.mxu0 %v2142
        %2363 = vmatprep.subr.bf16.mxu0 0
        %2364 = vmatpush1.bf16.msra.mxu0 %v2143
        %2365 = vmatprep.subr.bf16.mxu0 0
        %2366 = vmatpush1.bf16.msra.mxu0 %v2144
        %2367 = vmatprep.subr.bf16.mxu0 0
        %2368 = vmatpush1.bf16.msra.mxu0 0
        %2369 = vmatprep.subr.bf16.mxu0 0
        %2370 = vmatpush1.bf16.msra.mxu0 0
        %2371 = vmatprep.subr.bf16.mxu0 0
        %2372 = vmatpush1.bf16.msra.mxu0 0
        %2373 = vmatprep.subr.bf16.mxu0 0
        %2374 = vmatpush1.bf16.msra.mxu0 0
        %2375 = vmatprep.subr.bf16.mxu0 0
        %2376 = vmatpush1.bf16.msra.mxu0 0
        %2377 = vmatprep.subr.bf16.mxu0 0
        %2378 = vmatpush1.bf16.msra.mxu0 0
        %2379 = vmatprep.subr.bf16.mxu0 0
        %2380 = vmatpush1.bf16.msra.mxu0 0
        %2381 = vmatprep.subr.bf16.mxu0 0
        %2382 = vmatpush1.bf16.msra.mxu0 0
        %2383 = vmatprep.subr.bf16.mxu0 0
        %2384 = vmatpush1.bf16.msra.mxu0 0
        %2385 = vmatprep.subr.bf16.mxu0 0
        %2386 = vmatpush1.bf16.msra.mxu0 0
        %2387 = vmatprep.subr.bf16.mxu0 0
        %2388 = vmatpush1.bf16.msra.mxu0 0
        %2389 = vmatprep.subr.bf16.mxu0 0
        %2390 = vmatpush1.bf16.msra.mxu0 0
        %2391 = vmatprep.mubr.bf16.mxu0 0
        %2392 = vmatmul.mubr.bf16.gmra.mrb[0].mxu0 %v577
        %v2393 = vpop.f32.mrb[0].mxu0
        %v2394 = vadd.f32 0.0, %v2393
        %v2395 = vpop.f32.mrb[0].mxu0
        %v2396 = vpop.f32.mrb[0].mxu0
        %v2397 = vadd.f32 0.0, %v2396
        %v2398 = vpop.f32.mrb[0].mxu0
        %2399 = vmatprep.mubr.bf16.mxu0 0
        %2400 = vmatmul.mubr.bf16.gmra.mrb[0].mxu0 %v580
        %v2401 = vpop.f32.mrb[0].mxu0
        %v2402 = vadd.f32 0.0, %v2401
        %v2403 = vpop.f32.mrb[0].mxu0
        %v2404 = vpop.f32.mrb[0].mxu0
        %v2405 = vadd.f32 0.0, %v2404
        %v2406 = vpop.f32.mrb[0].mxu0
        %2407 = vmatprep.mubr.bf16.mxu0 0
        %2408 = vmatmul.mubr.bf16.gmra.mrb[0].mxu0 %v583
        %v2409 = vpop.f32.mrb[0].mxu0
        %v2410 = vadd.f32 0.0, %v2409
        %v2411 = vpop.f32.mrb[0].mxu0
        %v2412 = vpop.f32.mrb[0].mxu0
        %v2413 = vadd.f32 0.0, %v2412
        %v2414 = vpop.f32.mrb[0].mxu0
        %2415 = vmatprep.mubr.bf16.mxu0 0
        %2416 = vmatmul.mubr.bf16.gmra.mrb[0].mxu0 %v586
        %v2417 = vpop.f32.mrb[0].mxu0
        %v2418 = vadd.f32 0.0, %v2417
        %v2419 = vpop.f32.mrb[0].mxu0
        %v2420 = vpop.f32.mrb[0].mxu0
        %v2421 = vadd.f32 0.0, %v2420
        %v2422 = vpop.f32.mrb[0].mxu0
        %2423 = vdwg.mxu0
        %v2424 = vpack.c.bf16 %v2397, %v2394
        %v2425 = vpack.c.bf16 %v2405, %v2402
        %v2426 = vpack.c.bf16 %v2413, %v2410
        %v2427 = vpack.c.bf16 %v2421, %v2418
        %s2428 = scalar_lea.vmem [#allocation7], 64
        %v2429 = vld [vmem:[%s2428] sm:$0xf]
        %v2430 = vld [vmem:[%s2428 + $0x4] sm:$0xf]
        %v2431 = vld [vmem:[%s2428 + $0x8] sm:$0xf]
        %v2432 = vld [vmem:[%s2428 + $0xc] sm:$0xf]
        %v2433 = vld [vmem:[%s2428 + $0x10] sm:$0xf]
        %v2434 = vld [vmem:[%s2428 + $0x14] sm:$0xf]
        %v2435 = vld [vmem:[%s2428 + $0x18] sm:$0xf]
        %v2436 = vld [vmem:[%s2428 + $0x1c] sm:$0xf]
        %v2437 = vld [vmem:[%s2428 + $0x20] sm:$0xf]
        %v2438 = vld [vmem:[%s2428 + $0x24] sm:$0xf]
        %v2439 = vld [vmem:[%s2428 + $0x28] sm:$0xf]
        %v2440 = vld [vmem:[%s2428 + $0x2c] sm:$0xf]
        %v2441 = vld [vmem:[%s2428 + $0x30] sm:$0xf]
        %v2442 = vld [vmem:[%s2428 + $0x34] sm:$0xf]
        %v2443 = vld [vmem:[%s2428 + $0x38] sm:$0xf]
        %v2444 = vld [vmem:[%s2428 + $0x3c] sm:$0xf]
        %v2461 = vunpack.c.l.b16 %v2429
        %v2462 = vunpack.c.l.b16 %v2430
        %v2463 = vunpack.c.l.b16 %v2431
        %v2464 = vunpack.c.l.b16 %v2432
        %v2465 = vunpack.c.l.b16 %v2433
        %v2466 = vunpack.c.l.b16 %v2434
        %v2467 = vunpack.c.l.b16 %v2435
        %v2468 = vunpack.c.l.b16 %v2436
        %v2469 = vunpack.c.l.b16 %v2437
        %v2470 = vunpack.c.l.b16 %v2438
        %v2471 = vunpack.c.l.b16 %v2439
        %v2472 = vunpack.c.l.b16 %v2440
        %v2473 = vunpack.c.l.b16 %v2441
        %v2474 = vunpack.c.l.b16 %v2442
        %v2475 = vunpack.c.l.b16 %v2443
        %v2476 = vunpack.c.l.b16 %v2444
        %v2477 = vpack.c.b16 %v2462, %v2461
        %v2478 = vpack.c.b16 %v2464, %v2463
        %v2479 = vpack.c.b16 %v2466, %v2465
        %v2480 = vpack.c.b16 %v2468, %v2467
        %v2481 = vpack.c.b16 %v2470, %v2469
        %v2482 = vpack.c.b16 %v2472, %v2471
        %v2483 = vpack.c.b16 %v2474, %v2473
        %v2484 = vpack.c.b16 %v2476, %v2475
        %2493 = vmatprep.subr.bf16.mxu0 0
        %2494 = vmatpush1.bf16.msra.mxu0 %v2477
        %2495 = vmatprep.subr.bf16.mxu0 0
        %2496 = vmatpush1.bf16.msra.mxu0 %v2478
        %2497 = vmatprep.subr.bf16.mxu0 0
        %2498 = vmatpush1.bf16.msra.mxu0 %v2479
        %2499 = vmatprep.subr.bf16.mxu0 0
        %2500 = vmatpush1.bf16.msra.mxu0 %v2480
        %2501 = vmatprep.subr.bf16.mxu0 0
        %2502 = vmatpush1.bf16.msra.mxu0 %v2481
        %2503 = vmatprep.subr.bf16.mxu0 0
        %2504 = vmatpush1.bf16.msra.mxu0 %v2482
        %2505 = vmatprep.subr.bf16.mxu0 0
        %2506 = vmatpush1.bf16.msra.mxu0 %v2483
        %2507 = vmatprep.subr.bf16.mxu0 0
        %2508 = vmatpush1.bf16.msra.mxu0 %v2484
        %2509 = vmatprep.subr.bf16.mxu0 0
        %2510 = vmatpush1.bf16.msra.mxu0 0
        %2511 = vmatprep.subr.bf16.mxu0 0
        %2512 = vmatpush1.bf16.msra.mxu0 0
        %2513 = vmatprep.subr.bf16.mxu0 0
        %2514 = vmatpush1.bf16.msra.mxu0 0
        %2515 = vmatprep.subr.bf16.mxu0 0
        %2516 = vmatpush1.bf16.msra.mxu0 0
        %2517 = vmatprep.subr.bf16.mxu0 0
        %2518 = vmatpush1.bf16.msra.mxu0 0
        %2519 = vmatprep.subr.bf16.mxu0 0
        %2520 = vmatpush1.bf16.msra.mxu0 0
        %2521 = vmatprep.subr.bf16.mxu0 0
        %2522 = vmatpush1.bf16.msra.mxu0 0
        %2523 = vmatprep.subr.bf16.mxu0 0
        %2524 = vmatpush1.bf16.msra.mxu0 0
        %2525 = vmatprep.mubr.bf16.mxu0 0
        %2526 = vmatmul.mubr.bf16.gmra.mrb[0].mxu0 %v2424
        %v2527 = vpop.f32.mrb[0].mxu0
        %v2528 = vadd.f32 0.0, %v2527
        %v2529 = vpop.f32.mrb[0].mxu0
        %v2530 = vpop.f32.mrb[0].mxu0
        %v2531 = vadd.f32 0.0, %v2530
        %v2532 = vpop.f32.mrb[0].mxu0
        %2533 = vmatprep.mubr.bf16.mxu0 0
        %2534 = vmatmul.mubr.bf16.gmra.mrb[0].mxu0 %v2425
        %v2535 = vpop.f32.mrb[0].mxu0
        %v2536 = vadd.f32 0.0, %v2535
        %v2537 = vpop.f32.mrb[0].mxu0
        %v2538 = vpop.f32.mrb[0].mxu0
        %v2539 = vadd.f32 0.0, %v2538
        %v2540 = vpop.f32.mrb[0].mxu0
        %2541 = vmatprep.mubr.bf16.mxu0 0
        %2542 = vmatmul.mubr.bf16.gmra.mrb[0].mxu0 %v2426
        %v2543 = vpop.f32.mrb[0].mxu0
        %v2544 = vadd.f32 0.0, %v2543
        %v2545 = vpop.f32.mrb[0].mxu0
        %v2546 = vpop.f32.mrb[0].mxu0
        %v2547 = vadd.f32 0.0, %v2546
        %v2548 = vpop.f32.mrb[0].mxu0
        %2549 = vmatprep.mubr.bf16.mxu0 0
        %2550 = vmatmul.mubr.bf16.gmra.mrb[0].mxu0 %v2427
        %v2551 = vpop.f32.mrb[0].mxu0
        %v2552 = vadd.f32 0.0, %v2551
        %v2553 = vpop.f32.mrb[0].mxu0
        %v2554 = vpop.f32.mrb[0].mxu0
        %v2555 = vadd.f32 0.0, %v2554
        %v2556 = vpop.f32.mrb[0].mxu0
        %2557 = vdwg.mxu0
        %v2558 = vadd.f32 %v2351, %v2528
        %v2559 = vadd.f32 %v2352, %v2531
        %v2560 = vadd.f32 %v2353, %v2536
        %v2561 = vadd.f32 %v2354, %v2539
        %v2562 = vadd.f32 %v2355, %v2544
        %v2563 = vadd.f32 %v2356, %v2547
        %v2564 = vadd.f32 %v2357, %v2552
        %v2565 = vadd.f32 %v2358, %v2555
        %2566 = vmatprep.subr.bf16.mxu0 0
        %2567 = vmatpush1.bf16.msra.mxu0 %v2141
        %2568 = vmatprep.subr.bf16.mxu0 0
        %2569 = vmatpush1.bf16.msra.mxu0 %v2142
        %2570 = vmatprep.subr.bf16.mxu0 0
        %2571 = vmatpush1.bf16.msra.mxu0 %v2143
        %2572 = vmatprep.subr.bf16.mxu0 0
        %2573 = vmatpush1.bf16.msra.mxu0 %v2144
        %2574 = vmatprep.subr.bf16.mxu0 0
        %2575 = vmatpush1.bf16.msra.mxu0 0
        %2576 = vmatprep.subr.bf16.mxu0 0
        %2577 = vmatpush1.bf16.msra.mxu0 0
        %2578 = vmatprep.subr.bf16.mxu0 0
        %2579 = vmatpush1.bf16.msra.mxu0 0
        %2580 = vmatprep.subr.bf16.mxu0 0
        %2581 = vmatpush1.bf16.msra.mxu0 0
        %2582 = vmatprep.subr.bf16.mxu0 0
        %2583 = vmatpush1.bf16.msra.mxu0 0
        %2584 = vmatprep.subr.bf16.mxu0 0
        %2585 = vmatpush1.bf16.msra.mxu0 0
        %2586 = vmatprep.subr.bf16.mxu0 0
        %2587 = vmatpush1.bf16.msra.mxu0 0
        %2588 = vmatprep.subr.bf16.mxu0 0
        %2589 = vmatpush1.bf16.msra.mxu0 0
        %2590 = vmatprep.subr.bf16.mxu0 0
        %2591 = vmatpush1.bf16.msra.mxu0 0
        %2592 = vmatprep.subr.bf16.mxu0 0
        %2593 = vmatpush1.bf16.msra.mxu0 0
        %2594 = vmatprep.subr.bf16.mxu0 0
        %2595 = vmatpush1.bf16.msra.mxu0 0
        %2596 = vmatprep.subr.bf16.mxu0 0
        %2597 = vmatpush1.bf16.msra.mxu0 0
        %2598 = vmatprep.mubr.bf16.mxu0 0
        %2599 = vmatmul.mubr.bf16.gmra.mrb[0].mxu0 %v789
        %v2600 = vpop.f32.mrb[0].mxu0
        %v2601 = vadd.f32 0.0, %v2600
        %v2602 = vpop.f32.mrb[0].mxu0
        %v2603 = vpop.f32.mrb[0].mxu0
        %v2604 = vadd.f32 0.0, %v2603
        %v2605 = vpop.f32.mrb[0].mxu0
        %2606 = vmatprep.mubr.bf16.mxu0 0
        %2607 = vmatmul.mubr.bf16.gmra.mrb[0].mxu0 %v792
        %v2608 = vpop.f32.mrb[0].mxu0
        %v2609 = vadd.f32 0.0, %v2608
        %v2610 = vpop.f32.mrb[0].mxu0
        %v2611 = vpop.f32.mrb[0].mxu0
        %v2612 = vadd.f32 0.0, %v2611
        %v2613 = vpop.f32.mrb[0].mxu0
        %2614 = vmatprep.mubr.bf16.mxu0 0
        %2615 = vmatmul.mubr.bf16.gmra.mrb[0].mxu0 %v795
        %v2616 = vpop.f32.mrb[0].mxu0
        %v2617 = vadd.f32 0.0, %v2616
        %v2618 = vpop.f32.mrb[0].mxu0
        %v2619 = vpop.f32.mrb[0].mxu0
        %v2620 = vadd.f32 0.0, %v2619
        %v2621 = vpop.f32.mrb[0].mxu0
        %2622 = vmatprep.mubr.bf16.mxu0 0
        %2623 = vmatmul.mubr.bf16.gmra.mrb[0].mxu0 %v798
        %v2624 = vpop.f32.mrb[0].mxu0
        %v2625 = vadd.f32 0.0, %v2624
        %v2626 = vpop.f32.mrb[0].mxu0
        %v2627 = vpop.f32.mrb[0].mxu0
        %v2628 = vadd.f32 0.0, %v2627
        %v2629 = vpop.f32.mrb[0].mxu0
        %2630 = vdwg.mxu0
        %v2631 = vpack.c.bf16 %v2604, %v2601
        %v2632 = vpack.c.bf16 %v2612, %v2609
        %v2633 = vpack.c.bf16 %v2620, %v2617
        %v2634 = vpack.c.bf16 %v2628, %v2625
        %s2635 = scalar_lea.vmem [#allocation7], 128
        %v2636 = vld [vmem:[%s2635] sm:$0xf]
        %v2637 = vld [vmem:[%s2635 + $0x4] sm:$0xf]
        %v2638 = vld [vmem:[%s2635 + $0x8] sm:$0xf]
        %v2639 = vld [vmem:[%s2635 + $0xc] sm:$0xf]
        %v2640 = vld [vmem:[%s2635 + $0x10] sm:$0xf]
        %v2641 = vld [vmem:[%s2635 + $0x14] sm:$0xf]
        %v2642 = vld [vmem:[%s2635 + $0x18] sm:$0xf]
        %v2643 = vld [vmem:[%s2635 + $0x1c] sm:$0xf]
        %v2644 = vld [vmem:[%s2635 + $0x20] sm:$0xf]
        %v2645 = vld [vmem:[%s2635 + $0x24] sm:$0xf]
        %v2646 = vld [vmem:[%s2635 + $0x28] sm:$0xf]
        %v2647 = vld [vmem:[%s2635 + $0x2c] sm:$0xf]
        %v2648 = vld [vmem:[%s2635 + $0x30] sm:$0xf]
        %v2649 = vld [vmem:[%s2635 + $0x34] sm:$0xf]
        %v2650 = vld [vmem:[%s2635 + $0x38] sm:$0xf]
        %v2651 = vld [vmem:[%s2635 + $0x3c] sm:$0xf]
        %v2668 = vunpack.c.l.b16 %v2636
        %v2669 = vunpack.c.l.b16 %v2637
        %v2670 = vunpack.c.l.b16 %v2638
        %v2671 = vunpack.c.l.b16 %v2639
        %v2672 = vunpack.c.l.b16 %v2640
        %v2673 = vunpack.c.l.b16 %v2641
        %v2674 = vunpack.c.l.b16 %v2642
        %v2675 = vunpack.c.l.b16 %v2643
        %v2676 = vunpack.c.l.b16 %v2644
        %v2677 = vunpack.c.l.b16 %v2645
        %v2678 = vunpack.c.l.b16 %v2646
        %v2679 = vunpack.c.l.b16 %v2647
        %v2680 = vunpack.c.l.b16 %v2648
        %v2681 = vunpack.c.l.b16 %v2649
        %v2682 = vunpack.c.l.b16 %v2650
        %v2683 = vunpack.c.l.b16 %v2651
        %v2684 = vpack.c.b16 %v2669, %v2668
        %v2685 = vpack.c.b16 %v2671, %v2670
        %v2686 = vpack.c.b16 %v2673, %v2672
        %v2687 = vpack.c.b16 %v2675, %v2674
        %v2688 = vpack.c.b16 %v2677, %v2676
        %v2689 = vpack.c.b16 %v2679, %v2678
        %v2690 = vpack.c.b16 %v2681, %v2680
        %v2691 = vpack.c.b16 %v2683, %v2682
        %2700 = vmatprep.subr.bf16.mxu0 0
        %2701 = vmatpush1.bf16.msra.mxu0 %v2684
        %2702 = vmatprep.subr.bf16.mxu0 0
        %2703 = vmatpush1.bf16.msra.mxu0 %v2685
        %2704 = vmatprep.subr.bf16.mxu0 0
        %2705 = vmatpush1.bf16.msra.mxu0 %v2686
        %2706 = vmatprep.subr.bf16.mxu0 0
        %2707 = vmatpush1.bf16.msra.mxu0 %v2687
        %2708 = vmatprep.subr.bf16.mxu0 0
        %2709 = vmatpush1.bf16.msra.mxu0 %v2688
        %2710 = vmatprep.subr.bf16.mxu0 0
        %2711 = vmatpush1.bf16.msra.mxu0 %v2689
        %2712 = vmatprep.subr.bf16.mxu0 0
        %2713 = vmatpush1.bf16.msra.mxu0 %v2690
        %2714 = vmatprep.subr.bf16.mxu0 0
        %2715 = vmatpush1.bf16.msra.mxu0 %v2691
        %2716 = vmatprep.subr.bf16.mxu0 0
        %2717 = vmatpush1.bf16.msra.mxu0 0
        %2718 = vmatprep.subr.bf16.mxu0 0
        %2719 = vmatpush1.bf16.msra.mxu0 0
        %2720 = vmatprep.subr.bf16.mxu0 0
        %2721 = vmatpush1.bf16.msra.mxu0 0
        %2722 = vmatprep.subr.bf16.mxu0 0
        %2723 = vmatpush1.bf16.msra.mxu0 0
        %2724 = vmatprep.subr.bf16.mxu0 0
        %2725 = vmatpush1.bf16.msra.mxu0 0
        %2726 = vmatprep.subr.bf16.mxu0 0
        %2727 = vmatpush1.bf16.msra.mxu0 0
        %2728 = vmatprep.subr.bf16.mxu0 0
        %2729 = vmatpush1.bf16.msra.mxu0 0
        %2730 = vmatprep.subr.bf16.mxu0 0
        %2731 = vmatpush1.bf16.msra.mxu0 0
        %2732 = vmatprep.mubr.bf16.mxu0 0
        %2733 = vmatmul.mubr.bf16.gmra.mrb[0].mxu0 %v2631
        %v2734 = vpop.f32.mrb[0].mxu0
        %v2735 = vadd.f32 0.0, %v2734
        %v2736 = vpop.f32.mrb[0].mxu0
        %v2737 = vpop.f32.mrb[0].mxu0
        %v2738 = vadd.f32 0.0, %v2737
        %v2739 = vpop.f32.mrb[0].mxu0
        %2740 = vmatprep.mubr.bf16.mxu0 0
        %2741 = vmatmul.mubr.bf16.gmra.mrb[0].mxu0 %v2632
        %v2742 = vpop.f32.mrb[0].mxu0
        %v2743 = vadd.f32 0.0, %v2742
        %v2744 = vpop.f32.mrb[0].mxu0
        %v2745 = vpop.f32.mrb[0].mxu0
        %v2746 = vadd.f32 0.0, %v2745
        %v2747 = vpop.f32.mrb[0].mxu0
        %2748 = vmatprep.mubr.bf16.mxu0 0
        %2749 = vmatmul.mubr.bf16.gmra.mrb[0].mxu0 %v2633
        %v2750 = vpop.f32.mrb[0].mxu0
        %v2751 = vadd.f32 0.0, %v2750
        %v2752 = vpop.f32.mrb[0].mxu0
        %v2753 = vpop.f32.mrb[0].mxu0
        %v2754 = vadd.f32 0.0, %v2753
        %v2755 = vpop.f32.mrb[0].mxu0
        %2756 = vmatprep.mubr.bf16.mxu0 0
        %2757 = vmatmul.mubr.bf16.gmra.mrb[0].mxu0 %v2634
        %v2758 = vpop.f32.mrb[0].mxu0
        %v2759 = vadd.f32 0.0, %v2758
        %v2760 = vpop.f32.mrb[0].mxu0
        %v2761 = vpop.f32.mrb[0].mxu0
        %v2762 = vadd.f32 0.0, %v2761
        %v2763 = vpop.f32.mrb[0].mxu0
        %2764 = vdwg.mxu0
        %v2765 = vadd.f32 %v2558, %v2735
        %v2766 = vadd.f32 %v2559, %v2738
        %v2767 = vadd.f32 %v2560, %v2743
        %v2768 = vadd.f32 %v2561, %v2746
        %v2769 = vadd.f32 %v2562, %v2751
        %v2770 = vadd.f32 %v2563, %v2754
        %v2771 = vadd.f32 %v2564, %v2759
        %v2772 = vadd.f32 %v2565, %v2762
        %2773 = vmatprep.subr.bf16.mxu0 0
        %2774 = vmatpush1.bf16.msra.mxu0 %v2141
        %2775 = vmatprep.subr.bf16.mxu0 0
        %2776 = vmatpush1.bf16.msra.mxu0 %v2142
        %2777 = vmatprep.subr.bf16.mxu0 0
        %2778 = vmatpush1.bf16.msra.mxu0 %v2143
        %2779 = vmatprep.subr.bf16.mxu0 0
        %2780 = vmatpush1.bf16.msra.mxu0 %v2144
        %2781 = vmatprep.subr.bf16.mxu0 0
        %2782 = vmatpush1.bf16.msra.mxu0 0
        %2783 = vmatprep.subr.bf16.mxu0 0
        %2784 = vmatpush1.bf16.msra.mxu0 0
        %2785 = vmatprep.subr.bf16.mxu0 0
        %2786 = vmatpush1.bf16.msra.mxu0 0
        %2787 = vmatprep.subr.bf16.mxu0 0
        %2788 = vmatpush1.bf16.msra.mxu0 0
        %2789 = vmatprep.subr.bf16.mxu0 0
        %2790 = vmatpush1.bf16.msra.mxu0 0
        %2791 = vmatprep.subr.bf16.mxu0 0
        %2792 = vmatpush1.bf16.msra.mxu0 0
        %2793 = vmatprep.subr.bf16.mxu0 0
        %2794 = vmatpush1.bf16.msra.mxu0 0
        %2795 = vmatprep.subr.bf16.mxu0 0
        %2796 = vmatpush1.bf16.msra.mxu0 0
        %2797 = vmatprep.subr.bf16.mxu0 0
        %2798 = vmatpush1.bf16.msra.mxu0 0
        %2799 = vmatprep.subr.bf16.mxu0 0
        %2800 = vmatpush1.bf16.msra.mxu0 0
        %2801 = vmatprep.subr.bf16.mxu0 0
        %2802 = vmatpush1.bf16.msra.mxu0 0
        %2803 = vmatprep.subr.bf16.mxu0 0
        %2804 = vmatpush1.bf16.msra.mxu0 0
        %2805 = vmatprep.mubr.bf16.mxu0 0
        %2806 = vmatmul.mubr.bf16.gmra.mrb[0].mxu0 %v1001
        %v2807 = vpop.f32.mrb[0].mxu0
        %v2808 = vadd.f32 0.0, %v2807
        %v2809 = vpop.f32.mrb[0].mxu0
        %v2810 = vpop.f32.mrb[0].mxu0
        %v2811 = vadd.f32 0.0, %v2810
        %v2812 = vpop.f32.mrb[0].mxu0
        %2813 = vmatprep.mubr.bf16.mxu0 0
        %2814 = vmatmul.mubr.bf16.gmra.mrb[0].mxu0 %v1004
        %v2815 = vpop.f32.mrb[0].mxu0
        %v2816 = vadd.f32 0.0, %v2815
        %v2817 = vpop.f32.mrb[0].mxu0
        %v2818 = vpop.f32.mrb[0].mxu0
        %v2819 = vadd.f32 0.0, %v2818
        %v2820 = vpop.f32.mrb[0].mxu0
        %2821 = vmatprep.mubr.bf16.mxu0 0
        %2822 = vmatmul.mubr.bf16.gmra.mrb[0].mxu0 %v1007
        %v2823 = vpop.f32.mrb[0].mxu0
        %v2824 = vadd.f32 0.0, %v2823
        %v2825 = vpop.f32.mrb[0].mxu0
        %v2826 = vpop.f32.mrb[0].mxu0
        %v2827 = vadd.f32 0.0, %v2826
        %v2828 = vpop.f32.mrb[0].mxu0
        %2829 = vmatprep.mubr.bf16.mxu0 0
        %2830 = vmatmul.mubr.bf16.gmra.mrb[0].mxu0 %v1010
        %v2831 = vpop.f32.mrb[0].mxu0
        %v2832 = vadd.f32 0.0, %v2831
        %v2833 = vpop.f32.mrb[0].mxu0
        %v2834 = vpop.f32.mrb[0].mxu0
        %v2835 = vadd.f32 0.0, %v2834
        %v2836 = vpop.f32.mrb[0].mxu0
        %2837 = vdwg.mxu0
        %v2838 = vpack.c.bf16 %v2811, %v2808
        %v2839 = vpack.c.bf16 %v2819, %v2816
        %v2840 = vpack.c.bf16 %v2827, %v2824
        %v2841 = vpack.c.bf16 %v2835, %v2832
        %s2842 = scalar_lea.vmem [#allocation7], 192
        %v2843 = vld [vmem:[%s2842] sm:$0xf]
        %v2844 = vld [vmem:[%s2842 + $0x4] sm:$0xf]
        %v2845 = vld [vmem:[%s2842 + $0x8] sm:$0xf]
        %v2846 = vld [vmem:[%s2842 + $0xc] sm:$0xf]
        %v2847 = vld [vmem:[%s2842 + $0x10] sm:$0xf]
        %v2848 = vld [vmem:[%s2842 + $0x14] sm:$0xf]
        %v2849 = vld [vmem:[%s2842 + $0x18] sm:$0xf]
        %v2850 = vld [vmem:[%s2842 + $0x1c] sm:$0xf]
        %v2851 = vld [vmem:[%s2842 + $0x20] sm:$0xf]
        %v2852 = vld [vmem:[%s2842 + $0x24] sm:$0xf]
        %v2853 = vld [vmem:[%s2842 + $0x28] sm:$0xf]
        %v2854 = vld [vmem:[%s2842 + $0x2c] sm:$0xf]
        %v2855 = vld [vmem:[%s2842 + $0x30] sm:$0xf]
        %v2856 = vld [vmem:[%s2842 + $0x34] sm:$0xf]
        %v2857 = vld [vmem:[%s2842 + $0x38] sm:$0xf]
        %v2858 = vld [vmem:[%s2842 + $0x3c] sm:$0xf]
        %v2875 = vunpack.c.l.b16 %v2843
        %v2876 = vunpack.c.l.b16 %v2844
        %v2877 = vunpack.c.l.b16 %v2845
        %v2878 = vunpack.c.l.b16 %v2846
        %v2879 = vunpack.c.l.b16 %v2847
        %v2880 = vunpack.c.l.b16 %v2848
        %v2881 = vunpack.c.l.b16 %v2849
        %v2882 = vunpack.c.l.b16 %v2850
        %v2883 = vunpack.c.l.b16 %v2851
        %v2884 = vunpack.c.l.b16 %v2852
        %v2885 = vunpack.c.l.b16 %v2853
        %v2886 = vunpack.c.l.b16 %v2854
        %v2887 = vunpack.c.l.b16 %v2855
        %v2888 = vunpack.c.l.b16 %v2856
        %v2889 = vunpack.c.l.b16 %v2857
        %v2890 = vunpack.c.l.b16 %v2858
        %v2891 = vpack.c.b16 %v2876, %v2875
        %v2892 = vpack.c.b16 %v2878, %v2877
        %v2893 = vpack.c.b16 %v2880, %v2879
        %v2894 = vpack.c.b16 %v2882, %v2881
        %v2895 = vpack.c.b16 %v2884, %v2883
        %v2896 = vpack.c.b16 %v2886, %v2885
        %v2897 = vpack.c.b16 %v2888, %v2887
        %v2898 = vpack.c.b16 %v2890, %v2889
        %2907 = vmatprep.subr.bf16.mxu0 0
        %2908 = vmatpush1.bf16.msra.mxu0 %v2891
        %2909 = vmatprep.subr.bf16.mxu0 0
        %2910 = vmatpush1.bf16.msra.mxu0 %v2892
        %2911 = vmatprep.subr.bf16.mxu0 0
        %2912 = vmatpush1.bf16.msra.mxu0 %v2893
        %2913 = vmatprep.subr.bf16.mxu0 0
        %2914 = vmatpush1.bf16.msra.mxu0 %v2894
        %2915 = vmatprep.subr.bf16.mxu0 0
        %2916 = vmatpush1.bf16.msra.mxu0 %v2895
        %2917 = vmatprep.subr.bf16.mxu0 0
        %2918 = vmatpush1.bf16.msra.mxu0 %v2896
        %2919 = vmatprep.subr.bf16.mxu0 0
        %2920 = vmatpush1.bf16.msra.mxu0 %v2897
        %2921 = vmatprep.subr.bf16.mxu0 0
        %2922 = vmatpush1.bf16.msra.mxu0 %v2898
        %2923 = vmatprep.subr.bf16.mxu0 0
        %2924 = vmatpush1.bf16.msra.mxu0 0
        %2925 = vmatprep.subr.bf16.mxu0 0
        %2926 = vmatpush1.bf16.msra.mxu0 0
        %2927 = vmatprep.subr.bf16.mxu0 0
        %2928 = vmatpush1.bf16.msra.mxu0 0
        %2929 = vmatprep.subr.bf16.mxu0 0
        %2930 = vmatpush1.bf16.msra.mxu0 0
        %2931 = vmatprep.subr.bf16.mxu0 0
        %2932 = vmatpush1.bf16.msra.mxu0 0
        %2933 = vmatprep.subr.bf16.mxu0 0
        %2934 = vmatpush1.bf16.msra.mxu0 0
        %2935 = vmatprep.subr.bf16.mxu0 0
        %2936 = vmatpush1.bf16.msra.mxu0 0
        %2937 = vmatprep.subr.bf16.mxu0 0
        %2938 = vmatpush1.bf16.msra.mxu0 0
        %2939 = vmatprep.mubr.bf16.mxu0 0
        %2940 = vmatmul.mubr.bf16.gmra.mrb[0].mxu0 %v2838
        %v2941 = vpop.f32.mrb[0].mxu0
        %v2942 = vadd.f32 0.0, %v2941
        %v2943 = vpop.f32.mrb[0].mxu0
        %v2944 = vpop.f32.mrb[0].mxu0
        %v2945 = vadd.f32 0.0, %v2944
        %v2946 = vpop.f32.mrb[0].mxu0
        %2947 = vmatprep.mubr.bf16.mxu0 0
        %2948 = vmatmul.mubr.bf16.gmra.mrb[0].mxu0 %v2839
        %v2949 = vpop.f32.mrb[0].mxu0
        %v2950 = vadd.f32 0.0, %v2949
        %v2951 = vpop.f32.mrb[0].mxu0
        %v2952 = vpop.f32.mrb[0].mxu0
        %v2953 = vadd.f32 0.0, %v2952
        %v2954 = vpop.f32.mrb[0].mxu0
        %2955 = vmatprep.mubr.bf16.mxu0 0
        %2956 = vmatmul.mubr.bf16.gmra.mrb[0].mxu0 %v2840
        %v2957 = vpop.f32.mrb[0].mxu0
        %v2958 = vadd.f32 0.0, %v2957
        %v2959 = vpop.f32.mrb[0].mxu0
        %v2960 = vpop.f32.mrb[0].mxu0
        %v2961 = vadd.f32 0.0, %v2960
        %v2962 = vpop.f32.mrb[0].mxu0
        %2963 = vmatprep.mubr.bf16.mxu0 0
        %2964 = vmatmul.mubr.bf16.gmra.mrb[0].mxu0 %v2841
        %v2965 = vpop.f32.mrb[0].mxu0
        %v2966 = vadd.f32 0.0, %v2965
        %v2967 = vpop.f32.mrb[0].mxu0
        %v2968 = vpop.f32.mrb[0].mxu0
        %v2969 = vadd.f32 0.0, %v2968
        %v2970 = vpop.f32.mrb[0].mxu0
        %2971 = vdwg.mxu0
        %v2972 = vadd.f32 %v2765, %v2942
        %v2973 = vadd.f32 %v2766, %v2945
        %v2974 = vadd.f32 %v2767, %v2950
        %v2975 = vadd.f32 %v2768, %v2953
        %v2976 = vadd.f32 %v2769, %v2958
        %v2977 = vadd.f32 %v2770, %v2961
        %v2978 = vadd.f32 %v2771, %v2966
        %v2979 = vadd.f32 %v2772, %v2969
        %s2980 = scalar_lea.vmem [#allocation7], 256
        %v2981 = vld [vmem:[%s2980] sm:$0xf]
        %v2982 = vld [vmem:[%s2980 + $0x4] sm:$0xf]
        %v2983 = vld [vmem:[%s2980 + $0x8] sm:$0xf]
        %v2984 = vld [vmem:[%s2980 + $0xc] sm:$0xf]
        %v2985 = vld [vmem:[%s2980 + $0x10] sm:$0xf]
        %v2986 = vld [vmem:[%s2980 + $0x14] sm:$0xf]
        %v2987 = vld [vmem:[%s2980 + $0x18] sm:$0xf]
        %v2988 = vld [vmem:[%s2980 + $0x1c] sm:$0xf]
        %v2989 = vld [vmem:[%s2980 + $0x20] sm:$0xf]
        %v2990 = vld [vmem:[%s2980 + $0x24] sm:$0xf]
        %v2991 = vld [vmem:[%s2980 + $0x28] sm:$0xf]
        %v2992 = vld [vmem:[%s2980 + $0x2c] sm:$0xf]
        %v2993 = vld [vmem:[%s2980 + $0x30] sm:$0xf]
        %v2994 = vld [vmem:[%s2980 + $0x34] sm:$0xf]
        %v2995 = vld [vmem:[%s2980 + $0x38] sm:$0xf]
        %v2996 = vld [vmem:[%s2980 + $0x3c] sm:$0xf]
        %v3013 = vunpack.c.l.b16 %v2981
        %v3014 = vunpack.c.l.b16 %v2982
        %v3015 = vunpack.c.l.b16 %v2983
        %v3016 = vunpack.c.l.b16 %v2984
        %v3017 = vunpack.c.l.b16 %v2985
        %v3018 = vunpack.c.l.b16 %v2986
        %v3019 = vunpack.c.l.b16 %v2987
        %v3020 = vunpack.c.l.b16 %v2988
        %v3021 = vunpack.c.l.b16 %v2989
        %v3022 = vunpack.c.l.b16 %v2990
        %v3023 = vunpack.c.l.b16 %v2991
        %v3024 = vunpack.c.l.b16 %v2992
        %v3025 = vunpack.c.l.b16 %v2993
        %v3026 = vunpack.c.l.b16 %v2994
        %v3027 = vunpack.c.l.b16 %v2995
        %v3028 = vunpack.c.l.b16 %v2996
        %v3029 = vpack.c.b16 %v3014, %v3013
        %v3030 = vpack.c.b16 %v3016, %v3015
        %v3031 = vpack.c.b16 %v3018, %v3017
        %v3032 = vpack.c.b16 %v3020, %v3019
        %v3033 = vpack.c.b16 %v3022, %v3021
        %v3034 = vpack.c.b16 %v3024, %v3023
        %v3035 = vpack.c.b16 %v3026, %v3025
        %v3036 = vpack.c.b16 %v3028, %v3027
        %3045 = vmatprep.subr.bf16.mxu0 0
        %3046 = vmatpush1.bf16.msra.mxu0 %v3029
        %3047 = vmatprep.subr.bf16.mxu0 0
        %3048 = vmatpush1.bf16.msra.mxu0 %v3030
        %3049 = vmatprep.subr.bf16.mxu0 0
        %3050 = vmatpush1.bf16.msra.mxu0 %v3031
        %3051 = vmatprep.subr.bf16.mxu0 0
        %3052 = vmatpush1.bf16.msra.mxu0 %v3032
        %3053 = vmatprep.subr.bf16.mxu0 0
        %3054 = vmatpush1.bf16.msra.mxu0 %v3033
        %3055 = vmatprep.subr.bf16.mxu0 0
        %3056 = vmatpush1.bf16.msra.mxu0 %v3034
        %3057 = vmatprep.subr.bf16.mxu0 0
        %3058 = vmatpush1.bf16.msra.mxu0 %v3035
        %3059 = vmatprep.subr.bf16.mxu0 0
        %3060 = vmatpush1.bf16.msra.mxu0 %v3036
        %3061 = vmatprep.subr.bf16.mxu0 0
        %3062 = vmatpush1.bf16.msra.mxu0 0
        %3063 = vmatprep.subr.bf16.mxu0 0
        %3064 = vmatpush1.bf16.msra.mxu0 0
        %3065 = vmatprep.subr.bf16.mxu0 0
        %3066 = vmatpush1.bf16.msra.mxu0 0
        %3067 = vmatprep.subr.bf16.mxu0 0
        %3068 = vmatpush1.bf16.msra.mxu0 0
        %3069 = vmatprep.subr.bf16.mxu0 0
        %3070 = vmatpush1.bf16.msra.mxu0 0
        %3071 = vmatprep.subr.bf16.mxu0 0
        %3072 = vmatpush1.bf16.msra.mxu0 0
        %3073 = vmatprep.subr.bf16.mxu0 0
        %3074 = vmatpush1.bf16.msra.mxu0 0
        %3075 = vmatprep.subr.bf16.mxu0 0
        %3076 = vmatpush1.bf16.msra.mxu0 0
        %3077 = vmatprep.mubr.bf16.mxu0 0
        %3078 = vmatmul.mubr.bf16.gmra.mrb[0].mxu0 %v2141
        %v3079 = vpop.f32.mrb[0].mxu0
        %v3080 = vadd.f32 0.0, %v3079
        %v3081 = vpop.f32.mrb[0].mxu0
        %v3082 = vpop.f32.mrb[0].mxu0
        %v3083 = vadd.f32 0.0, %v3082
        %v3084 = vpop.f32.mrb[0].mxu0
        %3085 = vmatprep.mubr.bf16.mxu0 0
        %3086 = vmatmul.mubr.bf16.gmra.mrb[0].mxu0 %v2142
        %v3087 = vpop.f32.mrb[0].mxu0
        %v3088 = vadd.f32 0.0, %v3087
        %v3089 = vpop.f32.mrb[0].mxu0
        %v3090 = vpop.f32.mrb[0].mxu0
        %v3091 = vadd.f32 0.0, %v3090
        %v3092 = vpop.f32.mrb[0].mxu0
        %3093 = vmatprep.mubr.bf16.mxu0 0
        %3094 = vmatmul.mubr.bf16.gmra.mrb[0].mxu0 %v2143
        %v3095 = vpop.f32.mrb[0].mxu0
        %v3096 = vadd.f32 0.0, %v3095
        %v3097 = vpop.f32.mrb[0].mxu0
        %v3098 = vpop.f32.mrb[0].mxu0
        %v3099 = vadd.f32 0.0, %v3098
        %v3100 = vpop.f32.mrb[0].mxu0
        %3101 = vmatprep.mubr.bf16.mxu0 0
        %3102 = vmatmul.mubr.bf16.gmra.mrb[0].mxu0 %v2144
        %v3103 = vpop.f32.mrb[0].mxu0
        %v3104 = vadd.f32 0.0, %v3103
        %v3105 = vpop.f32.mrb[0].mxu0
        %v3106 = vpop.f32.mrb[0].mxu0
        %v3107 = vadd.f32 0.0, %v3106
        %v3108 = vpop.f32.mrb[0].mxu0
        %3109 = vdwg.mxu0
        %v3110 = vadd.f32 %v2972, %v3080
        %v3111 = vadd.f32 %v2973, %v3083
        %v3112 = vadd.f32 %v2974, %v3088
        %v3113 = vadd.f32 %v2975, %v3091
        %v3114 = vadd.f32 %v2976, %v3096
        %v3115 = vadd.f32 %v2977, %v3099
        %v3116 = vadd.f32 %v2978, %v3104
        %v3117 = vadd.f32 %v2979, %v3107
        %3118 = vmatprep.subr.bf16.mxu0 0
        %3119 = vmatpush1.bf16.msra.mxu0 %v2141
        %3120 = vmatprep.subr.bf16.mxu0 0
        %3121 = vmatpush1.bf16.msra.mxu0 %v2142
        %3122 = vmatprep.subr.bf16.mxu0 0
        %3123 = vmatpush1.bf16.msra.mxu0 %v2143
        %3124 = vmatprep.subr.bf16.mxu0 0
        %3125 = vmatpush1.bf16.msra.mxu0 %v2144
        %3126 = vmatprep.subr.bf16.mxu0 0
        %3127 = vmatpush1.bf16.msra.mxu0 0
        %3128 = vmatprep.subr.bf16.mxu0 0
        %3129 = vmatpush1.bf16.msra.mxu0 0
        %3130 = vmatprep.subr.bf16.mxu0 0
        %3131 = vmatpush1.bf16.msra.mxu0 0
        %3132 = vmatprep.subr.bf16.mxu0 0
        %3133 = vmatpush1.bf16.msra.mxu0 0
        %3134 = vmatprep.subr.bf16.mxu0 0
        %3135 = vmatpush1.bf16.msra.mxu0 0
        %3136 = vmatprep.subr.bf16.mxu0 0
        %3137 = vmatpush1.bf16.msra.mxu0 0
        %3138 = vmatprep.subr.bf16.mxu0 0
        %3139 = vmatpush1.bf16.msra.mxu0 0
        %3140 = vmatprep.subr.bf16.mxu0 0
        %3141 = vmatpush1.bf16.msra.mxu0 0
        %3142 = vmatprep.subr.bf16.mxu0 0
        %3143 = vmatpush1.bf16.msra.mxu0 0
        %3144 = vmatprep.subr.bf16.mxu0 0
        %3145 = vmatpush1.bf16.msra.mxu0 0
        %3146 = vmatprep.subr.bf16.mxu0 0
        %3147 = vmatpush1.bf16.msra.mxu0 0
        %3148 = vmatprep.subr.bf16.mxu0 0
        %3149 = vmatpush1.bf16.msra.mxu0 0
        %3150 = vmatprep.mubr.bf16.mxu0 0
        %3151 = vmatmul.mubr.bf16.gmra.mrb[0].mxu0 %v1315
        %v3152 = vpop.f32.mrb[0].mxu0
        %v3153 = vadd.f32 0.0, %v3152
        %v3154 = vpop.f32.mrb[0].mxu0
        %v3155 = vpop.f32.mrb[0].mxu0
        %v3156 = vadd.f32 0.0, %v3155
        %v3157 = vpop.f32.mrb[0].mxu0
        %3158 = vmatprep.mubr.bf16.mxu0 0
        %3159 = vmatmul.mubr.bf16.gmra.mrb[0].mxu0 %v1318
        %v3160 = vpop.f32.mrb[0].mxu0
        %v3161 = vadd.f32 0.0, %v3160
        %v3162 = vpop.f32.mrb[0].mxu0
        %v3163 = vpop.f32.mrb[0].mxu0
        %v3164 = vadd.f32 0.0, %v3163
        %v3165 = vpop.f32.mrb[0].mxu0
        %3166 = vmatprep.mubr.bf16.mxu0 0
        %3167 = vmatmul.mubr.bf16.gmra.mrb[0].mxu0 %v1321
        %v3168 = vpop.f32.mrb[0].mxu0
        %v3169 = vadd.f32 0.0, %v3168
        %v3170 = vpop.f32.mrb[0].mxu0
        %v3171 = vpop.f32.mrb[0].mxu0
        %v3172 = vadd.f32 0.0, %v3171
        %v3173 = vpop.f32.mrb[0].mxu0
        %3174 = vmatprep.mubr.bf16.mxu0 0
        %3175 = vmatmul.mubr.bf16.gmra.mrb[0].mxu0 %v1324
        %v3176 = vpop.f32.mrb[0].mxu0
        %v3177 = vadd.f32 0.0, %v3176
        %v3178 = vpop.f32.mrb[0].mxu0
        %v3179 = vpop.f32.mrb[0].mxu0
        %v3180 = vadd.f32 0.0, %v3179
        %v3181 = vpop.f32.mrb[0].mxu0
        %3182 = vdwg.mxu0
        %v3183 = vpack.c.bf16 %v3156, %v3153
        %v3184 = vpack.c.bf16 %v3164, %v3161
        %v3185 = vpack.c.bf16 %v3172, %v3169
        %v3186 = vpack.c.bf16 %v3180, %v3177
        %s3187 = scalar_lea.vmem [#allocation7], 320
        %v3188 = vld [vmem:[%s3187] sm:$0xf]
        %v3189 = vld [vmem:[%s3187 + $0x4] sm:$0xf]
        %v3190 = vld [vmem:[%s3187 + $0x8] sm:$0xf]
        %v3191 = vld [vmem:[%s3187 + $0xc] sm:$0xf]
        %v3192 = vld [vmem:[%s3187 + $0x10] sm:$0xf]
        %v3193 = vld [vmem:[%s3187 + $0x14] sm:$0xf]
        %v3194 = vld [vmem:[%s3187 + $0x18] sm:$0xf]
        %v3195 = vld [vmem:[%s3187 + $0x1c] sm:$0xf]
        %v3196 = vld [vmem:[%s3187 + $0x20] sm:$0xf]
        %v3197 = vld [vmem:[%s3187 + $0x24] sm:$0xf]
        %v3198 = vld [vmem:[%s3187 + $0x28] sm:$0xf]
        %v3199 = vld [vmem:[%s3187 + $0x2c] sm:$0xf]
        %v3200 = vld [vmem:[%s3187 + $0x30] sm:$0xf]
        %v3201 = vld [vmem:[%s3187 + $0x34] sm:$0xf]
        %v3202 = vld [vmem:[%s3187 + $0x38] sm:$0xf]
        %v3203 = vld [vmem:[%s3187 + $0x3c] sm:$0xf]
        %v3220 = vunpack.c.l.b16 %v3188
        %v3221 = vunpack.c.l.b16 %v3189
        %v3222 = vunpack.c.l.b16 %v3190
        %v3223 = vunpack.c.l.b16 %v3191
        %v3224 = vunpack.c.l.b16 %v3192
        %v3225 = vunpack.c.l.b16 %v3193
        %v3226 = vunpack.c.l.b16 %v3194
        %v3227 = vunpack.c.l.b16 %v3195
        %v3228 = vunpack.c.l.b16 %v3196
        %v3229 = vunpack.c.l.b16 %v3197
        %v3230 = vunpack.c.l.b16 %v3198
        %v3231 = vunpack.c.l.b16 %v3199
        %v3232 = vunpack.c.l.b16 %v3200
        %v3233 = vunpack.c.l.b16 %v3201
        %v3234 = vunpack.c.l.b16 %v3202
        %v3235 = vunpack.c.l.b16 %v3203
        %v3236 = vpack.c.b16 %v3221, %v3220
        %v3237 = vpack.c.b16 %v3223, %v3222
        %v3238 = vpack.c.b16 %v3225, %v3224
        %v3239 = vpack.c.b16 %v3227, %v3226
        %v3240 = vpack.c.b16 %v3229, %v3228
        %v3241 = vpack.c.b16 %v3231, %v3230
        %v3242 = vpack.c.b16 %v3233, %v3232
        %v3243 = vpack.c.b16 %v3235, %v3234
        %3252 = vmatprep.subr.bf16.mxu0 0
        %3253 = vmatpush1.bf16.msra.mxu0 %v3236
        %3254 = vmatprep.subr.bf16.mxu0 0
        %3255 = vmatpush1.bf16.msra.mxu0 %v3237
        %3256 = vmatprep.subr.bf16.mxu0 0
        %3257 = vmatpush1.bf16.msra.mxu0 %v3238
        %3258 = vmatprep.subr.bf16.mxu0 0
        %3259 = vmatpush1.bf16.msra.mxu0 %v3239
        %3260 = vmatprep.subr.bf16.mxu0 0
        %3261 = vmatpush1.bf16.msra.mxu0 %v3240
        %3262 = vmatprep.subr.bf16.mxu0 0
        %3263 = vmatpush1.bf16.msra.mxu0 %v3241
        %3264 = vmatprep.subr.bf16.mxu0 0
        %3265 = vmatpush1.bf16.msra.mxu0 %v3242
        %3266 = vmatprep.subr.bf16.mxu0 0
        %3267 = vmatpush1.bf16.msra.mxu0 %v3243
        %3268 = vmatprep.subr.bf16.mxu0 0
        %3269 = vmatpush1.bf16.msra.mxu0 0
        %3270 = vmatprep.subr.bf16.mxu0 0
        %3271 = vmatpush1.bf16.msra.mxu0 0
        %3272 = vmatprep.subr.bf16.mxu0 0
        %3273 = vmatpush1.bf16.msra.mxu0 0
        %3274 = vmatprep.subr.bf16.mxu0 0
        %3275 = vmatpush1.bf16.msra.mxu0 0
        %3276 = vmatprep.subr.bf16.mxu0 0
        %3277 = vmatpush1.bf16.msra.mxu0 0
        %3278 = vmatprep.subr.bf16.mxu0 0
        %3279 = vmatpush1.bf16.msra.mxu0 0
        %3280 = vmatprep.subr.bf16.mxu0 0
        %3281 = vmatpush1.bf16.msra.mxu0 0
        %3282 = vmatprep.subr.bf16.mxu0 0
        %3283 = vmatpush1.bf16.msra.mxu0 0
        %3284 = vmatprep.mubr.bf16.mxu0 0
        %3285 = vmatmul.mubr.bf16.gmra.mrb[0].mxu0 %v3183
        %v3286 = vpop.f32.mrb[0].mxu0
        %v3287 = vadd.f32 0.0, %v3286
        %v3288 = vpop.f32.mrb[0].mxu0
        %v3289 = vpop.f32.mrb[0].mxu0
        %v3290 = vadd.f32 0.0, %v3289
        %v3291 = vpop.f32.mrb[0].mxu0
        %3292 = vmatprep.mubr.bf16.mxu0 0
        %3293 = vmatmul.mubr.bf16.gmra.mrb[0].mxu0 %v3184
        %v3294 = vpop.f32.mrb[0].mxu0
        %v3295 = vadd.f32 0.0, %v3294
        %v3296 = vpop.f32.mrb[0].mxu0
        %v3297 = vpop.f32.mrb[0].mxu0
        %v3298 = vadd.f32 0.0, %v3297
        %v3299 = vpop.f32.mrb[0].mxu0
        %3300 = vmatprep.mubr.bf16.mxu0 0
        %3301 = vmatmul.mubr.bf16.gmra.mrb[0].mxu0 %v3185
        %v3302 = vpop.f32.mrb[0].mxu0
        %v3303 = vadd.f32 0.0, %v3302
        %v3304 = vpop.f32.mrb[0].mxu0
        %v3305 = vpop.f32.mrb[0].mxu0
        %v3306 = vadd.f32 0.0, %v3305
        %v3307 = vpop.f32.mrb[0].mxu0
        %3308 = vmatprep.mubr.bf16.mxu0 0
        %3309 = vmatmul.mubr.bf16.gmra.mrb[0].mxu0 %v3186
        %v3310 = vpop.f32.mrb[0].mxu0
        %v3311 = vadd.f32 0.0, %v3310
        %v3312 = vpop.f32.mrb[0].mxu0
        %v3313 = vpop.f32.mrb[0].mxu0
        %v3314 = vadd.f32 0.0, %v3313
        %v3315 = vpop.f32.mrb[0].mxu0
        %3316 = vdwg.mxu0
        %v3317 = vadd.f32 %v3110, %v3287
        %v3318 = vadd.f32 %v3111, %v3290
        %v3319 = vadd.f32 %v3112, %v3295
        %v3320 = vadd.f32 %v3113, %v3298
        %v3321 = vadd.f32 %v3114, %v3303
        %v3322 = vadd.f32 %v3115, %v3306
        %v3323 = vadd.f32 %v3116, %v3311
        %v3324 = vadd.f32 %v3117, %v3314
        %3325 = vmatprep.subr.bf16.mxu0 0
        %3326 = vmatpush1.bf16.msra.mxu0 %v2141
        %3327 = vmatprep.subr.bf16.mxu0 0
        %3328 = vmatpush1.bf16.msra.mxu0 %v2142
        %3329 = vmatprep.subr.bf16.mxu0 0
        %3330 = vmatpush1.bf16.msra.mxu0 %v2143
        %3331 = vmatprep.subr.bf16.mxu0 0
        %3332 = vmatpush1.bf16.msra.mxu0 %v2144
        %3333 = vmatprep.subr.bf16.mxu0 0
        %3334 = vmatpush1.bf16.msra.mxu0 0
        %3335 = vmatprep.subr.bf16.mxu0 0
        %3336 = vmatpush1.bf16.msra.mxu0 0
        %3337 = vmatprep.subr.bf16.mxu0 0
        %3338 = vmatpush1.bf16.msra.mxu0 0
        %3339 = vmatprep.subr.bf16.mxu0 0
        %3340 = vmatpush1.bf16.msra.mxu0 0
        %3341 = vmatprep.subr.bf16.mxu0 0
        %3342 = vmatpush1.bf16.msra.mxu0 0
        %3343 = vmatprep.subr.bf16.mxu0 0
        %3344 = vmatpush1.bf16.msra.mxu0 0
        %3345 = vmatprep.subr.bf16.mxu0 0
        %3346 = vmatpush1.bf16.msra.mxu0 0
        %3347 = vmatprep.subr.bf16.mxu0 0
        %3348 = vmatpush1.bf16.msra.mxu0 0
        %3349 = vmatprep.subr.bf16.mxu0 0
        %3350 = vmatpush1.bf16.msra.mxu0 0
        %3351 = vmatprep.subr.bf16.mxu0 0
        %3352 = vmatpush1.bf16.msra.mxu0 0
        %3353 = vmatprep.subr.bf16.mxu0 0
        %3354 = vmatpush1.bf16.msra.mxu0 0
        %3355 = vmatprep.subr.bf16.mxu0 0
        %3356 = vmatpush1.bf16.msra.mxu0 0
        %3357 = vmatprep.mubr.bf16.mxu0 0
        %3358 = vmatmul.mubr.bf16.gmra.mrb[0].mxu0 %v1527
        %v3359 = vpop.f32.mrb[0].mxu0
        %v3360 = vadd.f32 0.0, %v3359
        %v3361 = vpop.f32.mrb[0].mxu0
        %v3362 = vpop.f32.mrb[0].mxu0
        %v3363 = vadd.f32 0.0, %v3362
        %v3364 = vpop.f32.mrb[0].mxu0
        %3365 = vmatprep.mubr.bf16.mxu0 0
        %3366 = vmatmul.mubr.bf16.gmra.mrb[0].mxu0 %v1530
        %v3367 = vpop.f32.mrb[0].mxu0
        %v3368 = vadd.f32 0.0, %v3367
        %v3369 = vpop.f32.mrb[0].mxu0
        %v3370 = vpop.f32.mrb[0].mxu0
        %v3371 = vadd.f32 0.0, %v3370
        %v3372 = vpop.f32.mrb[0].mxu0
        %3373 = vmatprep.mubr.bf16.mxu0 0
        %3374 = vmatmul.mubr.bf16.gmra.mrb[0].mxu0 %v1533
        %v3375 = vpop.f32.mrb[0].mxu0
        %v3376 = vadd.f32 0.0, %v3375
        %v3377 = vpop.f32.mrb[0].mxu0
        %v3378 = vpop.f32.mrb[0].mxu0
        %v3379 = vadd.f32 0.0, %v3378
        %v3380 = vpop.f32.mrb[0].mxu0
        %3381 = vmatprep.mubr.bf16.mxu0 0
        %3382 = vmatmul.mubr.bf16.gmra.mrb[0].mxu0 %v1536
        %v3383 = vpop.f32.mrb[0].mxu0
        %v3384 = vadd.f32 0.0, %v3383
        %v3385 = vpop.f32.mrb[0].mxu0
        %v3386 = vpop.f32.mrb[0].mxu0
        %v3387 = vadd.f32 0.0, %v3386
        %v3388 = vpop.f32.mrb[0].mxu0
        %3389 = vdwg.mxu0
        %v3390 = vpack.c.bf16 %v3363, %v3360
        %v3391 = vpack.c.bf16 %v3371, %v3368
        %v3392 = vpack.c.bf16 %v3379, %v3376
        %v3393 = vpack.c.bf16 %v3387, %v3384
        %s3394 = scalar_lea.vmem [#allocation7], 384
        %v3395 = vld [vmem:[%s3394] sm:$0xf]
        %v3396 = vld [vmem:[%s3394 + $0x4] sm:$0xf]
        %v3397 = vld [vmem:[%s3394 + $0x8] sm:$0xf]
        %v3398 = vld [vmem:[%s3394 + $0xc] sm:$0xf]
        %v3399 = vld [vmem:[%s3394 + $0x10] sm:$0xf]
        %v3400 = vld [vmem:[%s3394 + $0x14] sm:$0xf]
        %v3401 = vld [vmem:[%s3394 + $0x18] sm:$0xf]
        %v3402 = vld [vmem:[%s3394 + $0x1c] sm:$0xf]
        %v3403 = vld [vmem:[%s3394 + $0x20] sm:$0xf]
        %v3404 = vld [vmem:[%s3394 + $0x24] sm:$0xf]
        %v3405 = vld [vmem:[%s3394 + $0x28] sm:$0xf]
        %v3406 = vld [vmem:[%s3394 + $0x2c] sm:$0xf]
        %v3407 = vld [vmem:[%s3394 + $0x30] sm:$0xf]
        %v3408 = vld [vmem:[%s3394 + $0x34] sm:$0xf]
        %v3409 = vld [vmem:[%s3394 + $0x38] sm:$0xf]
        %v3410 = vld [vmem:[%s3394 + $0x3c] sm:$0xf]
        %v3427 = vunpack.c.l.b16 %v3395
        %v3428 = vunpack.c.l.b16 %v3396
        %v3429 = vunpack.c.l.b16 %v3397
        %v3430 = vunpack.c.l.b16 %v3398
        %v3431 = vunpack.c.l.b16 %v3399
        %v3432 = vunpack.c.l.b16 %v3400
        %v3433 = vunpack.c.l.b16 %v3401
        %v3434 = vunpack.c.l.b16 %v3402
        %v3435 = vunpack.c.l.b16 %v3403
        %v3436 = vunpack.c.l.b16 %v3404
        %v3437 = vunpack.c.l.b16 %v3405
        %v3438 = vunpack.c.l.b16 %v3406
        %v3439 = vunpack.c.l.b16 %v3407
        %v3440 = vunpack.c.l.b16 %v3408
        %v3441 = vunpack.c.l.b16 %v3409
        %v3442 = vunpack.c.l.b16 %v3410
        %v3443 = vpack.c.b16 %v3428, %v3427
        %v3444 = vpack.c.b16 %v3430, %v3429
        %v3445 = vpack.c.b16 %v3432, %v3431
        %v3446 = vpack.c.b16 %v3434, %v3433
        %v3447 = vpack.c.b16 %v3436, %v3435
        %v3448 = vpack.c.b16 %v3438, %v3437
        %v3449 = vpack.c.b16 %v3440, %v3439
        %v3450 = vpack.c.b16 %v3442, %v3441
        %3459 = vmatprep.subr.bf16.mxu0 0
        %3460 = vmatpush1.bf16.msra.mxu0 %v3443
        %3461 = vmatprep.subr.bf16.mxu0 0
        %3462 = vmatpush1.bf16.msra.mxu0 %v3444
        %3463 = vmatprep.subr.bf16.mxu0 0
        %3464 = vmatpush1.bf16.msra.mxu0 %v3445
        %3465 = vmatprep.subr.bf16.mxu0 0
        %3466 = vmatpush1.bf16.msra.mxu0 %v3446
        %3467 = vmatprep.subr.bf16.mxu0 0
        %3468 = vmatpush1.bf16.msra.mxu0 %v3447
        %3469 = vmatprep.subr.bf16.mxu0 0
        %3470 = vmatpush1.bf16.msra.mxu0 %v3448
        %3471 = vmatprep.subr.bf16.mxu0 0
        %3472 = vmatpush1.bf16.msra.mxu0 %v3449
        %3473 = vmatprep.subr.bf16.mxu0 0
        %3474 = vmatpush1.bf16.msra.mxu0 %v3450
        %3475 = vmatprep.subr.bf16.mxu0 0
        %3476 = vmatpush1.bf16.msra.mxu0 0
        %3477 = vmatprep.subr.bf16.mxu0 0
        %3478 = vmatpush1.bf16.msra.mxu0 0
        %3479 = vmatprep.subr.bf16.mxu0 0
        %3480 = vmatpush1.bf16.msra.mxu0 0
        %3481 = vmatprep.subr.bf16.mxu0 0
        %3482 = vmatpush1.bf16.msra.mxu0 0
        %3483 = vmatprep.subr.bf16.mxu0 0
        %3484 = vmatpush1.bf16.msra.mxu0 0
        %3485 = vmatprep.subr.bf16.mxu0 0
        %3486 = vmatpush1.bf16.msra.mxu0 0
        %3487 = vmatprep.subr.bf16.mxu0 0
        %3488 = vmatpush1.bf16.msra.mxu0 0
        %3489 = vmatprep.subr.bf16.mxu0 0
        %3490 = vmatpush1.bf16.msra.mxu0 0
        %3491 = vmatprep.mubr.bf16.mxu0 0
        %3492 = vmatmul.mubr.bf16.gmra.mrb[0].mxu0 %v3390
        %v3493 = vpop.f32.mrb[0].mxu0
        %v3494 = vadd.f32 0.0, %v3493
        %v3495 = vpop.f32.mrb[0].mxu0
        %v3496 = vpop.f32.mrb[0].mxu0
        %v3497 = vadd.f32 0.0, %v3496
        %v3498 = vpop.f32.mrb[0].mxu0
        %3499 = vmatprep.mubr.bf16.mxu0 0
        %3500 = vmatmul.mubr.bf16.gmra.mrb[0].mxu0 %v3391
        %v3501 = vpop.f32.mrb[0].mxu0
        %v3502 = vadd.f32 0.0, %v3501
        %v3503 = vpop.f32.mrb[0].mxu0
        %v3504 = vpop.f32.mrb[0].mxu0
        %v3505 = vadd.f32 0.0, %v3504
        %v3506 = vpop.f32.mrb[0].mxu0
        %3507 = vmatprep.mubr.bf16.mxu0 0
        %3508 = vmatmul.mubr.bf16.gmra.mrb[0].mxu0 %v3392
        %v3509 = vpop.f32.mrb[0].mxu0
        %v3510 = vadd.f32 0.0, %v3509
        %v3511 = vpop.f32.mrb[0].mxu0
        %v3512 = vpop.f32.mrb[0].mxu0
        %v3513 = vadd.f32 0.0, %v3512
        %v3514 = vpop.f32.mrb[0].mxu0
        %3515 = vmatprep.mubr.bf16.mxu0 0
        %3516 = vmatmul.mubr.bf16.gmra.mrb[0].mxu0 %v3393
        %v3517 = vpop.f32.mrb[0].mxu0
        %v3518 = vadd.f32 0.0, %v3517
        %v3519 = vpop.f32.mrb[0].mxu0
        %v3520 = vpop.f32.mrb[0].mxu0
        %v3521 = vadd.f32 0.0, %v3520
        %v3522 = vpop.f32.mrb[0].mxu0
        %3523 = vdwg.mxu0
        %v3524 = vadd.f32 %v3317, %v3494
        %v3525 = vadd.f32 %v3318, %v3497
        %v3526 = vadd.f32 %v3319, %v3502
        %v3527 = vadd.f32 %v3320, %v3505
        %v3528 = vadd.f32 %v3321, %v3510
        %v3529 = vadd.f32 %v3322, %v3513
        %v3530 = vadd.f32 %v3323, %v3518
        %v3531 = vadd.f32 %v3324, %v3521
        %3532 = vmatprep.subr.bf16.mxu0 0
        %3533 = vmatpush1.bf16.msra.mxu0 %v2141
        %3534 = vmatprep.subr.bf16.mxu0 0
        %3535 = vmatpush1.bf16.msra.mxu0 %v2142
        %3536 = vmatprep.subr.bf16.mxu0 0
        %3537 = vmatpush1.bf16.msra.mxu0 %v2143
        %3538 = vmatprep.subr.bf16.mxu0 0
        %3539 = vmatpush1.bf16.msra.mxu0 %v2144
        %3540 = vmatprep.subr.bf16.mxu0 0
        %3541 = vmatpush1.bf16.msra.mxu0 0
        %3542 = vmatprep.subr.bf16.mxu0 0
        %3543 = vmatpush1.bf16.msra.mxu0 0
        %3544 = vmatprep.subr.bf16.mxu0 0
        %3545 = vmatpush1.bf16.msra.mxu0 0
        %3546 = vmatprep.subr.bf16.mxu0 0
        %3547 = vmatpush1.bf16.msra.mxu0 0
        %3548 = vmatprep.subr.bf16.mxu0 0
        %3549 = vmatpush1.bf16.msra.mxu0 0
        %3550 = vmatprep.subr.bf16.mxu0 0
        %3551 = vmatpush1.bf16.msra.mxu0 0
        %3552 = vmatprep.subr.bf16.mxu0 0
        %3553 = vmatpush1.bf16.msra.mxu0 0
        %3554 = vmatprep.subr.bf16.mxu0 0
        %3555 = vmatpush1.bf16.msra.mxu0 0
        %3556 = vmatprep.subr.bf16.mxu0 0
        %3557 = vmatpush1.bf16.msra.mxu0 0
        %3558 = vmatprep.subr.bf16.mxu0 0
        %3559 = vmatpush1.bf16.msra.mxu0 0
        %3560 = vmatprep.subr.bf16.mxu0 0
        %3561 = vmatpush1.bf16.msra.mxu0 0
        %3562 = vmatprep.subr.bf16.mxu0 0
        %3563 = vmatpush1.bf16.msra.mxu0 0
        %3564 = vmatprep.mubr.bf16.mxu0 0
        %3565 = vmatmul.mubr.bf16.gmra.mrb[0].mxu0 %v1739
        %v3566 = vpop.f32.mrb[0].mxu0
        %v3567 = vadd.f32 0.0, %v3566
        %v3568 = vpop.f32.mrb[0].mxu0
        %v3569 = vpop.f32.mrb[0].mxu0
        %v3570 = vadd.f32 0.0, %v3569
        %v3571 = vpop.f32.mrb[0].mxu0
        %3572 = vmatprep.mubr.bf16.mxu0 0
        %3573 = vmatmul.mubr.bf16.gmra.mrb[0].mxu0 %v1742
        %v3574 = vpop.f32.mrb[0].mxu0
        %v3575 = vadd.f32 0.0, %v3574
        %v3576 = vpop.f32.mrb[0].mxu0
        %v3577 = vpop.f32.mrb[0].mxu0
        %v3578 = vadd.f32 0.0, %v3577
        %v3579 = vpop.f32.mrb[0].mxu0
        %3580 = vmatprep.mubr.bf16.mxu0 0
        %3581 = vmatmul.mubr.bf16.gmra.mrb[0].mxu0 %v1745
        %v3582 = vpop.f32.mrb[0].mxu0
        %v3583 = vadd.f32 0.0, %v3582
        %v3584 = vpop.f32.mrb[0].mxu0
        %v3585 = vpop.f32.mrb[0].mxu0
        %v3586 = vadd.f32 0.0, %v3585
        %v3587 = vpop.f32.mrb[0].mxu0
        %3588 = vmatprep.mubr.bf16.mxu0 0
        %3589 = vmatmul.mubr.bf16.gmra.mrb[0].mxu0 %v1748
        %v3590 = vpop.f32.mrb[0].mxu0
        %v3591 = vadd.f32 0.0, %v3590
        %v3592 = vpop.f32.mrb[0].mxu0
        %v3593 = vpop.f32.mrb[0].mxu0
        %v3594 = vadd.f32 0.0, %v3593
        %v3595 = vpop.f32.mrb[0].mxu0
        %3596 = vdwg.mxu0
        %v3597 = vpack.c.bf16 %v3570, %v3567
        %v3598 = vpack.c.bf16 %v3578, %v3575
        %v3599 = vpack.c.bf16 %v3586, %v3583
        %v3600 = vpack.c.bf16 %v3594, %v3591
        %s3601 = scalar_lea.vmem [#allocation7], 448
        %v3602 = vld [vmem:[%s3601] sm:$0xf]
        %v3603 = vld [vmem:[%s3601 + $0x4] sm:$0xf]
        %v3604 = vld [vmem:[%s3601 + $0x8] sm:$0xf]
        %v3605 = vld [vmem:[%s3601 + $0xc] sm:$0xf]
        %v3606 = vld [vmem:[%s3601 + $0x10] sm:$0xf]
        %v3607 = vld [vmem:[%s3601 + $0x14] sm:$0xf]
        %v3608 = vld [vmem:[%s3601 + $0x18] sm:$0xf]
        %v3609 = vld [vmem:[%s3601 + $0x1c] sm:$0xf]
        %v3610 = vld [vmem:[%s3601 + $0x20] sm:$0xf]
        %v3611 = vld [vmem:[%s3601 + $0x24] sm:$0xf]
        %v3612 = vld [vmem:[%s3601 + $0x28] sm:$0xf]
        %v3613 = vld [vmem:[%s3601 + $0x2c] sm:$0xf]
        %v3614 = vld [vmem:[%s3601 + $0x30] sm:$0xf]
        %v3615 = vld [vmem:[%s3601 + $0x34] sm:$0xf]
        %v3616 = vld [vmem:[%s3601 + $0x38] sm:$0xf]
        %v3617 = vld [vmem:[%s3601 + $0x3c] sm:$0xf]
        %v3634 = vunpack.c.l.b16 %v3602
        %v3635 = vunpack.c.l.b16 %v3603
        %v3636 = vunpack.c.l.b16 %v3604
        %v3637 = vunpack.c.l.b16 %v3605
        %v3638 = vunpack.c.l.b16 %v3606
        %v3639 = vunpack.c.l.b16 %v3607
        %v3640 = vunpack.c.l.b16 %v3608
        %v3641 = vunpack.c.l.b16 %v3609
        %v3642 = vunpack.c.l.b16 %v3610
        %v3643 = vunpack.c.l.b16 %v3611
        %v3644 = vunpack.c.l.b16 %v3612
        %v3645 = vunpack.c.l.b16 %v3613
        %v3646 = vunpack.c.l.b16 %v3614
        %v3647 = vunpack.c.l.b16 %v3615
        %v3648 = vunpack.c.l.b16 %v3616
        %v3649 = vunpack.c.l.b16 %v3617
        %v3650 = vpack.c.b16 %v3635, %v3634
        %v3651 = vpack.c.b16 %v3637, %v3636
        %v3652 = vpack.c.b16 %v3639, %v3638
        %v3653 = vpack.c.b16 %v3641, %v3640
        %v3654 = vpack.c.b16 %v3643, %v3642
        %v3655 = vpack.c.b16 %v3645, %v3644
        %v3656 = vpack.c.b16 %v3647, %v3646
        %v3657 = vpack.c.b16 %v3649, %v3648
        %3666 = vmatprep.subr.bf16.mxu0 0
        %3667 = vmatpush1.bf16.msra.mxu0 %v3650
        %3668 = vmatprep.subr.bf16.mxu0 0
        %3669 = vmatpush1.bf16.msra.mxu0 %v3651
        %3670 = vmatprep.subr.bf16.mxu0 0
        %3671 = vmatpush1.bf16.msra.mxu0 %v3652
        %3672 = vmatprep.subr.bf16.mxu0 0
        %3673 = vmatpush1.bf16.msra.mxu0 %v3653
        %3674 = vmatprep.subr.bf16.mxu0 0
        %3675 = vmatpush1.bf16.msra.mxu0 %v3654
        %3676 = vmatprep.subr.bf16.mxu0 0
        %3677 = vmatpush1.bf16.msra.mxu0 %v3655
        %3678 = vmatprep.subr.bf16.mxu0 0
        %3679 = vmatpush1.bf16.msra.mxu0 %v3656
        %3680 = vmatprep.subr.bf16.mxu0 0
        %3681 = vmatpush1.bf16.msra.mxu0 %v3657
        %3682 = vmatprep.subr.bf16.mxu0 0
        %3683 = vmatpush1.bf16.msra.mxu0 0
        %3684 = vmatprep.subr.bf16.mxu0 0
        %3685 = vmatpush1.bf16.msra.mxu0 0
        %3686 = vmatprep.subr.bf16.mxu0 0
        %3687 = vmatpush1.bf16.msra.mxu0 0
        %3688 = vmatprep.subr.bf16.mxu0 0
        %3689 = vmatpush1.bf16.msra.mxu0 0
        %3690 = vmatprep.subr.bf16.mxu0 0
        %3691 = vmatpush1.bf16.msra.mxu0 0
        %3692 = vmatprep.subr.bf16.mxu0 0
        %3693 = vmatpush1.bf16.msra.mxu0 0
        %3694 = vmatprep.subr.bf16.mxu0 0
        %3695 = vmatpush1.bf16.msra.mxu0 0
        %3696 = vmatprep.subr.bf16.mxu0 0
        %3697 = vmatpush1.bf16.msra.mxu0 0
        %3698 = vmatprep.mubr.bf16.mxu0 0
        %3699 = vmatmul.mubr.bf16.gmra.mrb[0].mxu0 %v3597
        %v3700 = vpop.f32.mrb[0].mxu0
        %v3701 = vadd.f32 0.0, %v3700
        %v3702 = vpop.f32.mrb[0].mxu0
        %v3703 = vpop.f32.mrb[0].mxu0
        %v3704 = vadd.f32 0.0, %v3703
        %v3705 = vpop.f32.mrb[0].mxu0
        %3706 = vmatprep.mubr.bf16.mxu0 0
        %3707 = vmatmul.mubr.bf16.gmra.mrb[0].mxu0 %v3598
        %v3708 = vpop.f32.mrb[0].mxu0
        %v3709 = vadd.f32 0.0, %v3708
        %v3710 = vpop.f32.mrb[0].mxu0
        %v3711 = vpop.f32.mrb[0].mxu0
        %v3712 = vadd.f32 0.0, %v3711
        %v3713 = vpop.f32.mrb[0].mxu0
        %3714 = vmatprep.mubr.bf16.mxu0 0
        %3715 = vmatmul.mubr.bf16.gmra.mrb[0].mxu0 %v3599
        %v3716 = vpop.f32.mrb[0].mxu0
        %v3717 = vadd.f32 0.0, %v3716
        %v3718 = vpop.f32.mrb[0].mxu0
        %v3719 = vpop.f32.mrb[0].mxu0
        %v3720 = vadd.f32 0.0, %v3719
        %v3721 = vpop.f32.mrb[0].mxu0
        %3722 = vmatprep.mubr.bf16.mxu0 0
        %3723 = vmatmul.mubr.bf16.gmra.mrb[0].mxu0 %v3600
        %v3724 = vpop.f32.mrb[0].mxu0
        %v3725 = vadd.f32 0.0, %v3724
        %v3726 = vpop.f32.mrb[0].mxu0
        %v3727 = vpop.f32.mrb[0].mxu0
        %v3728 = vadd.f32 0.0, %v3727
        %v3729 = vpop.f32.mrb[0].mxu0
        %3730 = vdwg.mxu0
        %v3731 = vadd.f32 %v3524, %v3701
        %v3732 = vadd.f32 %v3525, %v3704
        %v3733 = vadd.f32 %v3526, %v3709
        %v3734 = vadd.f32 %v3527, %v3712
        %v3735 = vadd.f32 %v3528, %v3717
        %v3736 = vadd.f32 %v3529, %v3720
        %v3737 = vadd.f32 %v3530, %v3725
        %v3738 = vadd.f32 %v3531, %v3728
        %3739 = vmatprep.subr.bf16.mxu0 0
        %3740 = vmatpush1.bf16.msra.mxu0 %v2141
        %3741 = vmatprep.subr.bf16.mxu0 0
        %3742 = vmatpush1.bf16.msra.mxu0 %v2142
        %3743 = vmatprep.subr.bf16.mxu0 0
        %3744 = vmatpush1.bf16.msra.mxu0 %v2143
        %3745 = vmatprep.subr.bf16.mxu0 0
        %3746 = vmatpush1.bf16.msra.mxu0 %v2144
        %3747 = vmatprep.subr.bf16.mxu0 0
        %3748 = vmatpush1.bf16.msra.mxu0 0
        %3749 = vmatprep.subr.bf16.mxu0 0
        %3750 = vmatpush1.bf16.msra.mxu0 0
        %3751 = vmatprep.subr.bf16.mxu0 0
        %3752 = vmatpush1.bf16.msra.mxu0 0
        %3753 = vmatprep.subr.bf16.mxu0 0
        %3754 = vmatpush1.bf16.msra.mxu0 0
        %3755 = vmatprep.subr.bf16.mxu0 0
        %3756 = vmatpush1.bf16.msra.mxu0 0
        %3757 = vmatprep.subr.bf16.mxu0 0
        %3758 = vmatpush1.bf16.msra.mxu0 0
        %3759 = vmatprep.subr.bf16.mxu0 0
        %3760 = vmatpush1.bf16.msra.mxu0 0
        %3761 = vmatprep.subr.bf16.mxu0 0
        %3762 = vmatpush1.bf16.msra.mxu0 0
        %3763 = vmatprep.subr.bf16.mxu0 0
        %3764 = vmatpush1.bf16.msra.mxu0 0
        %3765 = vmatprep.subr.bf16.mxu0 0
        %3766 = vmatpush1.bf16.msra.mxu0 0
        %3767 = vmatprep.subr.bf16.mxu0 0
        %3768 = vmatpush1.bf16.msra.mxu0 0
        %3769 = vmatprep.subr.bf16.mxu0 0
        %3770 = vmatpush1.bf16.msra.mxu0 0
        %3771 = vmatprep.mubr.bf16.mxu0 0
        %3772 = vmatmul.mubr.bf16.gmra.mrb[0].mxu0 %v1951
        %v3773 = vpop.f32.mrb[0].mxu0
        %v3774 = vadd.f32 0.0, %v3773
        %v3775 = vpop.f32.mrb[0].mxu0
        %v3776 = vpop.f32.mrb[0].mxu0
        %v3777 = vadd.f32 0.0, %v3776
        %v3778 = vpop.f32.mrb[0].mxu0
        %3779 = vmatprep.mubr.bf16.mxu0 0
        %3780 = vmatmul.mubr.bf16.gmra.mrb[0].mxu0 %v1954
        %v3781 = vpop.f32.mrb[0].mxu0
        %v3782 = vadd.f32 0.0, %v3781
        %v3783 = vpop.f32.mrb[0].mxu0
        %v3784 = vpop.f32.mrb[0].mxu0
        %v3785 = vadd.f32 0.0, %v3784
        %v3786 = vpop.f32.mrb[0].mxu0
        %3787 = vmatprep.mubr.bf16.mxu0 0
        %3788 = vmatmul.mubr.bf16.gmra.mrb[0].mxu0 %v1957
        %v3789 = vpop.f32.mrb[0].mxu0
        %v3790 = vadd.f32 0.0, %v3789
        %v3791 = vpop.f32.mrb[0].mxu0
        %v3792 = vpop.f32.mrb[0].mxu0
        %v3793 = vadd.f32 0.0, %v3792
        %v3794 = vpop.f32.mrb[0].mxu0
        %3795 = vmatprep.mubr.bf16.mxu0 0
        %3796 = vmatmul.mubr.bf16.gmra.mrb[0].mxu0 %v1960
        %v3797 = vpop.f32.mrb[0].mxu0
        %v3798 = vadd.f32 0.0, %v3797
        %v3799 = vpop.f32.mrb[0].mxu0
        %v3800 = vpop.f32.mrb[0].mxu0
        %v3801 = vadd.f32 0.0, %v3800
        %v3802 = vpop.f32.mrb[0].mxu0
        %3803 = vdwg.mxu0
        %v3804 = vpack.c.bf16 %v3777, %v3774
        %v3805 = vpack.c.bf16 %v3785, %v3782
        %v3806 = vpack.c.bf16 %v3793, %v3790
        %v3807 = vpack.c.bf16 %v3801, %v3798
        %s3808 = scalar_lea.vmem [#allocation7], 512
        %v3809 = vld [vmem:[%s3808] sm:$0xf]
        %v3810 = vld [vmem:[%s3808 + $0x4] sm:$0xf]
        %v3811 = vld [vmem:[%s3808 + $0x8] sm:$0xf]
        %v3812 = vld [vmem:[%s3808 + $0xc] sm:$0xf]
        %v3813 = vld [vmem:[%s3808 + $0x10] sm:$0xf]
        %v3814 = vld [vmem:[%s3808 + $0x14] sm:$0xf]
        %v3815 = vld [vmem:[%s3808 + $0x18] sm:$0xf]
        %v3816 = vld [vmem:[%s3808 + $0x1c] sm:$0xf]
        %v3817 = vld [vmem:[%s3808 + $0x20] sm:$0xf]
        %v3818 = vld [vmem:[%s3808 + $0x24] sm:$0xf]
        %v3819 = vld [vmem:[%s3808 + $0x28] sm:$0xf]
        %v3820 = vld [vmem:[%s3808 + $0x2c] sm:$0xf]
        %v3821 = vld [vmem:[%s3808 + $0x30] sm:$0xf]
        %v3822 = vld [vmem:[%s3808 + $0x34] sm:$0xf]
        %v3823 = vld [vmem:[%s3808 + $0x38] sm:$0xf]
        %v3824 = vld [vmem:[%s3808 + $0x3c] sm:$0xf]
        %v3841 = vunpack.c.l.b16 %v3809
        %v3842 = vunpack.c.l.b16 %v3810
        %v3843 = vunpack.c.l.b16 %v3811
        %v3844 = vunpack.c.l.b16 %v3812
        %v3845 = vunpack.c.l.b16 %v3813
        %v3846 = vunpack.c.l.b16 %v3814
        %v3847 = vunpack.c.l.b16 %v3815
        %v3848 = vunpack.c.l.b16 %v3816
        %v3849 = vunpack.c.l.b16 %v3817
        %v3850 = vunpack.c.l.b16 %v3818
        %v3851 = vunpack.c.l.b16 %v3819
        %v3852 = vunpack.c.l.b16 %v3820
        %v3853 = vunpack.c.l.b16 %v3821
        %v3854 = vunpack.c.l.b16 %v3822
        %v3855 = vunpack.c.l.b16 %v3823
        %v3856 = vunpack.c.l.b16 %v3824
        %v3857 = vpack.c.b16 %v3842, %v3841
        %v3858 = vpack.c.b16 %v3844, %v3843
        %v3859 = vpack.c.b16 %v3846, %v3845
        %v3860 = vpack.c.b16 %v3848, %v3847
        %v3861 = vpack.c.b16 %v3850, %v3849
        %v3862 = vpack.c.b16 %v3852, %v3851
        %v3863 = vpack.c.b16 %v3854, %v3853
        %v3864 = vpack.c.b16 %v3856, %v3855
        %3873 = vmatprep.subr.bf16.mxu0 0
        %3874 = vmatpush1.bf16.msra.mxu0 %v3857
        %3875 = vmatprep.subr.bf16.mxu0 0
        %3876 = vmatpush1.bf16.msra.mxu0 %v3858
        %3877 = vmatprep.subr.bf16.mxu0 0
        %3878 = vmatpush1.bf16.msra.mxu0 %v3859
        %3879 = vmatprep.subr.bf16.mxu0 0
        %3880 = vmatpush1.bf16.msra.mxu0 %v3860
        %3881 = vmatprep.subr.bf16.mxu0 0
        %3882 = vmatpush1.bf16.msra.mxu0 %v3861
        %3883 = vmatprep.subr.bf16.mxu0 0
        %3884 = vmatpush1.bf16.msra.mxu0 %v3862
        %3885 = vmatprep.subr.bf16.mxu0 0
        %3886 = vmatpush1.bf16.msra.mxu0 %v3863
        %3887 = vmatprep.subr.bf16.mxu0 0
        %3888 = vmatpush1.bf16.msra.mxu0 %v3864
        %3889 = vmatprep.subr.bf16.mxu0 0
        %3890 = vmatpush1.bf16.msra.mxu0 0
        %3891 = vmatprep.subr.bf16.mxu0 0
        %3892 = vmatpush1.bf16.msra.mxu0 0
        %3893 = vmatprep.subr.bf16.mxu0 0
        %3894 = vmatpush1.bf16.msra.mxu0 0
        %3895 = vmatprep.subr.bf16.mxu0 0
        %3896 = vmatpush1.bf16.msra.mxu0 0
        %3897 = vmatprep.subr.bf16.mxu0 0
        %3898 = vmatpush1.bf16.msra.mxu0 0
        %3899 = vmatprep.subr.bf16.mxu0 0
        %3900 = vmatpush1.bf16.msra.mxu0 0
        %3901 = vmatprep.subr.bf16.mxu0 0
        %3902 = vmatpush1.bf16.msra.mxu0 0
        %3903 = vmatprep.subr.bf16.mxu0 0
        %3904 = vmatpush1.bf16.msra.mxu0 0
        %3905 = vmatprep.mubr.bf16.mxu0 0
        %3906 = vmatmul.mubr.bf16.gmra.mrb[0].mxu0 %v3804
        %v3907 = vpop.f32.mrb[0].mxu0
        %v3908 = vadd.f32 0.0, %v3907
        %v3909 = vpop.f32.mrb[0].mxu0
        %v3910 = vpop.f32.mrb[0].mxu0
        %v3911 = vadd.f32 0.0, %v3910
        %v3912 = vpop.f32.mrb[0].mxu0
        %3913 = vmatprep.mubr.bf16.mxu0 0
        %3914 = vmatmul.mubr.bf16.gmra.mrb[0].mxu0 %v3805
        %v3915 = vpop.f32.mrb[0].mxu0
        %v3916 = vadd.f32 0.0, %v3915
        %v3917 = vpop.f32.mrb[0].mxu0
        %v3918 = vpop.f32.mrb[0].mxu0
        %v3919 = vadd.f32 0.0, %v3918
        %v3920 = vpop.f32.mrb[0].mxu0
        %3921 = vmatprep.mubr.bf16.mxu0 0
        %3922 = vmatmul.mubr.bf16.gmra.mrb[0].mxu0 %v3806
        %v3923 = vpop.f32.mrb[0].mxu0
        %v3924 = vadd.f32 0.0, %v3923
        %v3925 = vpop.f32.mrb[0].mxu0
        %v3926 = vpop.f32.mrb[0].mxu0
        %v3927 = vadd.f32 0.0, %v3926
        %v3928 = vpop.f32.mrb[0].mxu0
        %3929 = vmatprep.mubr.bf16.mxu0 0
        %3930 = vmatmul.mubr.bf16.gmra.mrb[0].mxu0 %v3807
        %v3931 = vpop.f32.mrb[0].mxu0
        %v3932 = vadd.f32 0.0, %v3931
        %v3933 = vpop.f32.mrb[0].mxu0
        %v3934 = vpop.f32.mrb[0].mxu0
        %v3935 = vadd.f32 0.0, %v3934
        %v3936 = vpop.f32.mrb[0].mxu0
        %3937 = vdwg.mxu0
        %v3938 = vadd.f32 %v3731, %v3908
        %v3939 = vadd.f32 %v3732, %v3911
        %v3940 = vadd.f32 %v3733, %v3916
        %v3941 = vadd.f32 %v3734, %v3919
        %v3942 = vadd.f32 %v3735, %v3924
        %v3943 = vadd.f32 %v3736, %v3927
        %v3944 = vadd.f32 %v3737, %v3932
        %v3945 = vadd.f32 %v3738, %v3935
        %v3946 = vmax.f32 %v3938, 0.0
        %v3947 = vmax.f32 %v3939, 0.0
        %v3948 = vmax.f32 %v3940, 0.0
        %v3949 = vmax.f32 %v3941, 0.0
        %v3950 = vmax.f32 %v3942, 0.0
        %v3951 = vmax.f32 %v3943, 0.0
        %v3952 = vmax.f32 %v3944, 0.0
        %v3953 = vmax.f32 %v3945, 0.0
        %v3954 = vpack.c.bf16 %v3947, %v3946
        %v3955 = vpack.c.bf16 %v3949, %v3948
        %v3956 = vpack.c.bf16 %v3951, %v3950
        %v3957 = vpack.c.bf16 %v3953, %v3952
        %v3962 = vunpack.c.l.b16 %v3954
        %v3963 = vunpack.c.h.b16 %v3954
        %v3964 = vunpack.c.l.b16 %v3955
        %v3965 = vunpack.c.h.b16 %v3955
        %v3966 = vunpack.c.l.b16 %v3956
        %v3967 = vunpack.c.h.b16 %v3956
        %v3968 = vunpack.c.l.b16 %v3957
        %v3969 = vunpack.c.h.b16 %v3957
        %v3970 = vpack.c.b16 %v3962, %v3962
        %v3971 = vpack.c.b16 %v3963, %v3963
        %v3972 = vpack.c.b16 %v3964, %v3964
        %v3973 = vpack.c.b16 %v3965, %v3965
        %v3974 = vpack.c.b16 %v3966, %v3966
        %v3975 = vpack.c.b16 %v3967, %v3967
        %v3976 = vpack.c.b16 %v3968, %v3968
        %v3977 = vpack.c.b16 %v3969, %v3969
        %3986 = vst [vmem:[%s288] sm:$0xf] %v3970
        %3987 = vst [vmem:[%s288 + $0x4] sm:$0xf] %v3971
        %3988 = vst [vmem:[%s288 + $0x8] sm:$0xf] %v3972
        %3989 = vst [vmem:[%s288 + $0xc] sm:$0xf] %v3973
        %3990 = vst [vmem:[%s288 + $0x10] sm:$0xf] %v3974
        %3991 = vst [vmem:[%s288 + $0x14] sm:$0xf] %v3975
        %3992 = vst [vmem:[%s288 + $0x18] sm:$0xf] %v3976
        %3993 = vst [vmem:[%s288 + $0x1c] sm:$0xf] %v3977
        %s3994 = sand.u32 %s161, 1
        %s3995 = scalar_lea.sflag [#allocation4], %s3994
        %s3996 = sand.u32 %s161, 1
        %s3997 = smul.addr %s3996, 32
        %s3998 = scalar_lea.vmem [#allocation8], %s3997
        // Predicated region
        $region57: #{tpu_custom_call.1} parent=43 // pred_check
          %p3999 = pneg %p171
        $region58: #{tpu_custom_call.1} parent=43 // pred_check_branch
          %4001 = sbr.rel (%p3999) target = $region60
        $region59: #{tpu_custom_call.1} parent=43 // pred_region
          %s4003 = ssub.s32 512, 512
          %4004 = vsyncadd %s3995, %s4003
          %s4005 = smul.addr %s22, 8
          %s4006 = smul.addr %s4005, 64
          %s4007 = scalar_lea.hbm %s6, %s4006
          %s4008 = sshll.u32 %s3998, 4
          %s4009 = int_to_ptr.vmem [resolvable:$true] %s4008
          %4014 = dma.vmem_to_hbm [thread:$0]  %s4009, 512, %s4007, %s3995, 64, 64, 4
        $region60: #{tpu_custom_call.1} parent=43 // pred_fallthru
          _
      $region44: #{tpu_custom_call.1} parent=5 // pred_fallthru
        _
      %p4015 = scmp.le.s32.totalorder 2, %s17
      // Predicated region
      $region61: #{tpu_custom_call.1} parent=5 // pred_check
        %p4016 = pneg %p4015
      $region62: #{tpu_custom_call.1} parent=5 // pred_check_branch
        %4018 = sbr.rel (%p4016) target = $region64
      $region63: #{tpu_custom_call.1} parent=5 // pred_region
        %s4019 = ssub.s32 %s17, 2
        // Predicated region
        $region65: #{tpu_custom_call.1} parent=63 // pred_check
          %p4020 = pneg %p177
        $region66: #{tpu_custom_call.1} parent=63 // pred_check_branch
          %4022 = sbr.rel (%p4020) target = $region68
        $region67: #{tpu_custom_call.1} parent=63 // pred_region
          %s4023 = sand.u32 %s162, 1
          %s4024 = scalar_lea.sflag [#allocation4], %s4023
          %s4025 = sand.u32 %s162, 1
          %s4026 = smul.addr %s4025, 32
          %s4027 = scalar_lea.vmem [#allocation8], %s4026
          %4028 = dma.done %s4024, 512
        $region68: #{tpu_custom_call.1} parent=63 // pred_fallthru
          _
      $region64: #{tpu_custom_call.1} parent=5 // pred_fallthru
        _
    $region6: #{tpu_custom_call.1} parent=1 // loop_footer
      %s21 = sadd.s32 1, %s17
    $region7: #{tpu_custom_call.1} parent=1 // loop_footer_branch
      %16 = sbr.rel target = $region3
    $region8: #{tpu_custom_call.1} parent=1 // loop_exit
      _
    %4029 = vsyncpa [#allocation3], 1
    %s4030 = scalar_lea.sflag [#allocation3], 1
    %4031 = vsyncpa %s4030, 1
    %4032 = vsyncpa [#allocation6], 1
    %4033 = vsyncpa [#allocation4], 1
    %s4034 = scalar_lea.sflag [#allocation4], 1
    %4035 = vsyncpa %s4034, 1

</llo_original>
